<compile_context>
chip_gen: v6e
topology: v6e:2x2x1
jax: 0.10.0
libtpu: 0.0.40
codegen_flags: <defaults>
</compile_context>

<pallas_src>
import functools
import numpy as np
import jax
import jax.numpy as jnp
from jax import lax
from jax.experimental import pallas as pl
from jax.experimental.pallas import tpu as pltpu


def _round_up(x, m):
    return ((x + m - 1) // m) * m


# ----------------------------------------------------------------------------
# Geometry setup (mirror of FP.param_setting) -- parameter glue, plain JAX.
# ----------------------------------------------------------------------------
def fp_param_setting(args):
    V = args["view"]
    D = args["num_det"]
    N = args["img_size"]
    ps = args["pixel_size"]
    di = args["det_interval"]
    SDD = args["SDD"]
    SCD = args["SCD"]
    DCD = SDD - SCD
    shift = 0.25 * di if args["quarter_offset"] else 0.0

    rot_dir, rot_deg = 1, 360
    d_beta = np.pi * rot_deg / V / 180.0
    beta = rot_dir * jnp.linspace(0.0, (V - 1) * d_beta, V, dtype=jnp.float32)

    axis_x = jnp.linspace(-N / 2, N / 2, N + 1, dtype=jnp.float32) * ps
    axis_y = jnp.linspace(-N / 2, N / 2, N + 1, dtype=jnp.float32) * ps

    if args["mode"] == "equiangular":
        center = (D + 1) / 2 - shift / di
        delta_gamma = di / SDD
        gamma_vec = (jnp.linspace(1.0, D, D, dtype=jnp.float32) - center) * delta_gamma
        range_det_x = SDD * jnp.sin(gamma_vec)
        range_det_y = -(SDD * jnp.cos(gamma_vec) - SCD)
    elif args["mode"] == "equally_spaced":
        range_det_y = -(jnp.ones(D, dtype=jnp.float32) * DCD)
        range_det_x = jnp.linspace(-(D - 1) / 2, (D - 1) / 2, D, dtype=jnp.float32) * di + shift
    else:
        raise ValueError("unknown mode")

    # source point per view (rotation of (0, SCD))
    src_x = 0.0 * jnp.cos(beta) - SCD * jnp.sin(beta)          # [V]
    src_y = 0.0 * jnp.sin(beta) + SCD * jnp.cos(beta)          # [V]

    det_x_rot = jnp.cos(beta)[:, None] * range_det_x[None, :] - jnp.sin(beta)[:, None] * range_det_y[None, :]
    det_y_rot = jnp.sin(beta)[:, None] * range_det_x[None, :] + jnp.cos(beta)[:, None] * range_det_y[None, :]

    ax = (axis_x[None, None, :] - src_x[:, None, None]) / (det_x_rot - src_x[:, None])[:, :, None]
    ay = (axis_y[None, None, :] - src_y[:, None, None]) / (det_y_rot - src_y[:, None])[:, :, None]

    a_min = jnp.maximum(jnp.minimum(ax[:, :, 0], ax[:, :, -1]),
                        jnp.minimum(ay[:, :, 0], ay[:, :, -1]))
    a_min = jnp.where(a_min < 0, 0.0, a_min)
    a_max = jnp.minimum(jnp.maximum(ax[:, :, 0], ax[:, :, -1]),
                        jnp.maximum(ay[:, :, 0], ay[:, :, -1]))
    a_max = jnp.where(a_max > 1, 1.0, a_max)

    axy = jnp.concatenate([ax, ay], axis=2)
    axy = jnp.where((axy > a_max[:, :, None]) | (axy < a_min[:, :, None]), jnp.nan, axy)
    axy = jnp.sort(axy, axis=2)                                  # NaNs sort to the end (same as torch)
    diff_axy = jnp.diff(axy, n=1, axis=2)
    diff_axy = jnp.where(jnp.isnan(diff_axy), 0.0, diff_axy)
    a_mid = axy[:, :, :-1] + diff_axy / 2
    a_mid = jnp.where(jnp.isnan(a_mid), 0.0, a_mid)

    s2d = jnp.sqrt((det_x_rot - src_x[:, None]) ** 2 + (det_y_rot - src_y[:, None]) ** 2)
    weighting = diff_axy * s2d[:, :, None]                       # [V, D, L]

    half = ps * (N - 1) / 2
    x_pos = (a_mid * (det_x_rot[:, :, None] - src_x[:, None, None]) + src_x[:, None, None]) / half
    y_pos = (a_mid * (det_y_rot[:, :, None] - src_y[:, None, None]) + src_y[:, None, None]) / half
    grid_pos = jnp.stack([x_pos, y_pos], axis=-1)                # [V, D, L, 2]
    return grid_pos, weighting


# ----------------------------------------------------------------------------
# Bilinear grid_sample (align_corners=False, padding_mode='zeros'):
# unclipped top-left base flat index (y0*W + x0) + the 4 corner weights.
# INVARIANT (the kernel relies on it): out-of-bounds corners get EXACTLY zero
# weight, so any aliased/out-of-range flat index (base + {0,1,W,W+1}) is a
# harmless zero contribution.
# ----------------------------------------------------------------------------
def bilinear_base_and_weights(grid_pos, H, W):
    gx = grid_pos[..., 0].astype(jnp.float32)
    gy = grid_pos[..., 1].astype(jnp.float32)
    ix = ((gx + 1.0) * W - 1.0) / 2.0
    iy = ((gy + 1.0) * H - 1.0) / 2.0
    x0f = jnp.floor(ix)
    y0f = jnp.floor(iy)
    wx1 = ix - x0f
    wx0 = 1.0 - wx1
    wy1 = iy - y0f
    wy0 = 1.0 - wy1
    x0 = x0f.astype(jnp.int32)
    y0 = y0f.astype(jnp.int32)
    base = y0 * W + x0                                           # unclipped, may alias

    def corner_w(xc, yc, wv):
        valid = (xc >= 0) & (xc <= W - 1) & (yc >= 0) & (yc <= H - 1)
        return jnp.where(valid, wv, 0.0)                         # exact zero for OOB

    w00 = corner_w(x0,     y0,     wy0 * wx0)                    # offset 0
    w01 = corner_w(x0 + 1, y0,     wy0 * wx1)                    # offset 1
    w10 = corner_w(x0,     y0 + 1, wy1 * wx0)                    # offset W
    w11 = corner_w(x0 + 1, y0 + 1, wy1 * wx1)                    # offset W+1
    w4 = jnp.stack([w00, w01, w10, w11], axis=1)                 # [V, 4, D, L]
    return base, w4


# ----------------------------------------------------------------------------
# Pallas kernel: grid = (view_blocks, image_row_tiles), reduction axis last.
#   idx_ref [Lp, TVDp]    int32 : unclipped base flat index y0*W+x0, cols (tv,d)
#   w_ref   [4*Lp, TVDp]  f32   : corner weight * ray weighting, row = 4*l + c
#                                 (OOB corners have exactly-zero weight)
#   img_ref [BCp, TK]     bf16  : image columns k*TK .. k*TK+TK-1 (flattened HW)
#   out_ref [BCp, TVDp]   f32   : sinogram slab for this view block
#                                 (resident across k; accumulated)
# ----------------------------------------------------------------------------
def _fp_kernel(idx_ref, w_ref, img_ref, out_ref, *, width, n_lblk):
    k = pl.program_id(1)
    tk = img_ref.shape[1]
    tvd = out_ref.shape[1]

    # absolute flat pixel index of each mt row (computed once per step)
    grow = lax.broadcasted_iota(jnp.int32, (tk, tvd), 0) + k * tk
    zero = jnp.zeros((), jnp.float32)

    def body(lb, mt):
        # 8 samples (l's) per iteration; aligned dynamic slices on the refs
        # (no full [4L, TVD] value is ever materialized).
        iblk = idx_ref[pl.ds(pl.multiple_of(lb * 8, 8), 8), :]       # [8, TVD] i32
        wblk = w_ref[pl.ds(pl.multiple_of(lb * 32, 32), 32), :]      # [32, TVD] f32
        for r in range(8):
            base = iblk[r, :]                                        # [TVD]
            # four corners at constant offsets {0, 1, W, W+1}; OOB corners
            # carry exactly-zero weight so aliased indices contribute nothing.
            hit = jnp.where(grow == base, wblk[4 * r + 0, :], zero)
            hit = hit + jnp.where(grow == base + 1, wblk[4 * r + 1, :], zero)
            hit = hit + jnp.where(grow == base + width, wblk[4 * r + 2, :], zero)
            hit = hit + jnp.where(grow == base + (width + 1), wblk[4 * r + 3, :], zero)
            mt = mt + hit
        return mt

    # f32 accumulation of the scaled one-hot gather matrix, bf16 only on MXU.
    mt = lax.fori_loop(0, n_lblk, body, jnp.zeros((tk, tvd), jnp.float32))
    part = jnp.dot(img_ref[...], mt.astype(jnp.bfloat16),
                   preferred_element_type=jnp.float32)               # [BCp, TVD]

    @pl.when(k == 0)
    def _init():
        out_ref[...] = part

    @pl.when(k > 0)
    def _acc():
        out_ref[...] = out_ref[...] + part


# ----------------------------------------------------------------------------
# Generation-aware tiling heuristics.
# ----------------------------------------------------------------------------
def _vmem_limit_bytes():
    cap = None
    try:
        info = pltpu.get_tpu_info()
        for name in ("vmem_capacity_bytes", "vmem_size_bytes", "vmem_bytes"):
            v = getattr(info, name, None)
            if isinstance(v, int) and v > 0:
                cap = v
                break
    except Exception:
        cap = None
    if cap is None:
        cap = 64 * 1024 * 1024            # conservative default (v7x per-core size)
    # ~75% of physical, never above 100 MiB: ≈48 MiB on v7x, ≈96 MiB on v5e/v6e.
    return min(cap * 3 // 4, 100 * 1024 * 1024)


def _pick_view_block(V, D, Lp, BCp, budget_bytes):
    # resident bytes per output column: idx (i32) + w (f32), double-buffered,
    # plus out accumulator + matmul result
    per_col = 2 * Lp * 4 + 2 * 4 * Lp * 4 + 3 * BCp * 4
    max_tvd = max(128, int(0.4 * budget_bytes) // per_col)
    best_tv, best_key = 1, None
    for tv in range(1, V + 1):
        if V % tv != 0:
            continue
        tvd = tv * D
        tvd_p = _round_up(tvd, 128)
        if tvd_p > max_tvd and tv > 1:
            continue
        multi = (V // tv) >= 2            # let the "parallel" view axis shard (v7x: 2 TCs)
        waste = (tvd_p - tvd) / tvd_p     # padded (zero-weight) lane fraction
        key = (0 if multi else 1, waste, -tvd_p)
        if best_key is None or key < best_key:
            best_tv, best_key = tv, key
    return best_tv


def _pick_tile_k(HW, TVDp, Lp, BCp, budget_bytes):
    # resident / double-buffered blocks (independent of TK)
    fixed = 2 * Lp * TVDp * 4            # idx, int32
    fixed += 2 * 4 * Lp * TVDp * 4       # w, f32
    fixed += 2 * BCp * TVDp * 4          # out accumulator slab
    fixed += BCp * TVDp * 4              # f32 matmul result
    # per-TK-row bytes: img tile (bf16 x 2 buffers) + [TK, TVD] intermediates
    # (iota i32 + mt f32 + hit f32 + mask + bf16 mt) ~ 18 B/elt
    per_tk = 2 * 2 * BCp + TVDp * 18
    hw_aligned = _round_up(HW, 128)
    avail = budget_bytes - fixed
    if avail <= 0:
        # TODO(synk): resident idx/w exceed the VMEM budget (very large D or L);
        # would need a third grid axis over detector columns.
        return 128
    tk = int(avail // per_tk)
    if tk >= hw_aligned:
        return hw_aligned                # whole flattened image in one k step
    if tk >= 256:
        tk = (tk // 256) * 256           # 256-deep MXU K on v6e/v7x
    else:
        tk = max(128, (tk // 128) * 128) # hard minimum: lane dim of the image tile
    return tk


# ----------------------------------------------------------------------------
# Forward wrapper.
# ----------------------------------------------------------------------------
def fp_forward(img, grid_pos, weighting):
    B, C, H, W = img.shape
    V, D, L, _ = grid_pos.shape
    BC, HW = B * C, H * W

    base, wcor = bilinear_base_and_weights(grid_pos, H, W)       # [V,D,L], [V,4,D,L]
    # fold the ray-intersection weighting into the corner weights; keep f32.
    w4 = (wcor * weighting[:, None, :, :]).astype(jnp.float32)   # [V, 4, D, L]

    BCp = _round_up(max(BC, 8), 8)       # callers should batch more B*C to fill the MXU
    Lp = _round_up(L, 8)
    vmem_limit = _vmem_limit_bytes()
    budget = int(vmem_limit * 0.8)       # headroom for compiler scratch / pipelining

    TV = _pick_view_block(V, D, Lp, BCp, budget)
    VB = V // TV
    TVD = TV * D
    TVDp = _round_up(TVD, 128)           # lane-dense output slab (padded cols: zero weight)

    # idx block: [VB, Lp, TVDp] rows = l, cols = (tv, d); padded entries are 0
    # (weight 0 -> no contribution).
    idx_b = base.reshape(VB, TV, D, L).transpose(0, 3, 1, 2).reshape(VB, L, TVD)
    idx_b = jnp.pad(idx_b, ((0, 0), (0, Lp - L), (0, TVDp - TVD))).astype(jnp.int32)
    # w block: [VB, 4*Lp, TVDp] rows = 4*l + corner, cols = (tv, d).
    w_b = w4.reshape(VB, TV, 4, D, L).transpose(0, 4, 2, 1, 3).reshape(VB, 4 * L, TVD)
    w_b = jnp.pad(w_b, ((0, 0), (0, 4 * Lp - 4 * L), (0, TVDp - TVD))).astype(jnp.float32)

    TK = _pick_tile_k(HW, TVDp, Lp, BCp, budget)
    HWp = _round_up(HW, TK)
    NK = HWp // TK

    img_flat = img.reshape(BC, HW).astype(jnp.bfloat16)
    img_flat = jnp.pad(img_flat, ((0, BCp - BC), (0, HWp - HW)))

    kernel = functools.partial(_fp_kernel, width=W, n_lblk=Lp // 8)

    out = pl.pallas_call(
        kernel,
        out_shape=jax.ShapeDtypeStruct((BCp, VB * TVDp), jnp.float32),
        grid_spec=pltpu.PrefetchScalarGridSpec(
            num_scalar_prefetch=0,
            grid=(VB, NK),
            in_specs=[
                pl.BlockSpec((None, Lp, TVDp), lambda v, k: (v, 0, 0)),     # resident over k
                pl.BlockSpec((None, 4 * Lp, TVDp), lambda v, k: (v, 0, 0)),  # resident over k
                pl.BlockSpec((BCp, TK), lambda v, k: (0, k)),                # streamed image cols
            ],
            out_specs=pl.BlockSpec((BCp, TVDp), lambda v, k: (0, v)),
        ),
        compiler_params=pltpu.CompilerParams(
            dimension_semantics=("parallel", "arbitrary"),
            vmem_limit_bytes=vmem_limit,
        ),
    )(idx_b, w_b, img_flat)

    sino = out[:BC].reshape(BC, VB, TVDp)[:, :, :TVD].reshape(B, C, V, D)
    sino = jnp.where(jnp.isnan(sino), 0.0, sino)                 # sinogram[isnan] = 0
    return sino


# ----------------------------------------------------------------------------
# Pure-JAX reference of the same forward (independent path, for a loose check).
# ----------------------------------------------------------------------------
def fp_forward_reference(img, grid_pos, weighting):
    B, C, H, W = img.shape
    gx = grid_pos[..., 0]
    gy = grid_pos[..., 1]
    ix = ((gx + 1.0) * W - 1.0) / 2.0
    iy = ((gy + 1.0) * H - 1.0) / 2.0
    x0 = jnp.floor(ix)
    y0 = jnp.floor(iy)
    img_flat = img.reshape(B * C, H * W)
    acc = 0.0
    for dy in (0, 1):
        for dx in (0, 1):
            xc = x0 + dx
            yc = y0 + dy
            wx = (1.0 - (ix - x0)) if dx == 0 else (ix - x0)
            wy = (1.0 - (iy - y0)) if dy == 0 else (iy - y0)
            valid = (xc >= 0) & (xc <= W - 1) & (yc >= 0) & (yc <= H - 1)
            wgt = jnp.where(valid, wx * wy, 0.0)
            xi = jnp.clip(xc, 0, W - 1).astype(jnp.int32)
            yi = jnp.clip(yc, 0, H - 1).astype(jnp.int32)
            samp = img_flat[:, yi * W + xi]                      # [BC, V, D, L]
            acc = acc + samp * wgt[None]
    sino = jnp.sum(acc * weighting[None], axis=-1)               # [BC, V, D]
    sino = sino.reshape(B, C, grid_pos.shape[0], grid_pos.shape[1])
    return jnp.where(jnp.isnan(sino), 0.0, sino)


if __name__ == "__main__":
    args = dict(
        view=8, num_det=16, img_size=16,
        pixel_size=1.0, det_interval=1.0,
        SDD=40.0, SCD=20.0,
        mode="equiangular", quarter_offset=False,
        noise=0,  # deterministic (no Poisson) path
    )
    # TODO(synk): Poisson photon-noise branch (torch.poisson) not implemented; args.noise==0.

    grid_pos, weighting = fp_param_setting(args)

    key = jax.random.PRNGKey(0)
    img = jax.random.uniform(key, (2, 4, args["img_size"], args["img_size"]),
                             dtype=jnp.float32)

    sino = fp_forward(img, grid_pos, weighting)
    sino = jax.block_until_ready(sino)

    assert sino.shape == (2, 4, args["view"], args["num_det"])
    assert bool(jnp.all(jnp.isfinite(sino)))

    # loose check vs the f32 reference (image + gather matrix hit the MXU in bf16)
    ref = fp_forward_reference(img, grid_pos, weighting)
    rel_err = float(jnp.max(jnp.abs(sino - ref)) / (jnp.max(jnp.abs(ref)) + 1e-6))
    assert rel_err < 2e-2, f"mismatch vs reference: rel_err={rel_err}"

    print("KERNEL_OK")
</pallas_src>

<mosaic_0001>
module attributes {stable_mosaic.version = 11 : i64} {
  func.func @_fp_kernel(%arg0: i32, %arg1: i32, %arg2: memref<1x40x128xi32, #tpu.memory_space<vmem>>, %arg3: memref<1x160x128xf32, #tpu.memory_space<vmem>>, %arg4: memref<8x256xbf16, #tpu.memory_space<vmem>>, %arg5: memref<8x128xf32, #tpu.memory_space<vmem>>) attributes {dimension_semantics = [#tpu.dimension_semantics<parallel>, #tpu.dimension_semantics<arbitrary>], iteration_bounds = array<i64: 2, 1>, scalar_prefetch = 0 : i64, scratch_operands = 0 : i64, tpu.core_type = #tpu.core_type<tc>, window_params = [{transform_indices = @transform_0, window_bounds = array<i64: 1, 40, 128>}, {transform_indices = @transform_1, window_bounds = array<i64: 1, 160, 128>}, {transform_indices = @transform_2, window_bounds = array<i64: 8, 256>}, {transform_indices = @transform_3, window_bounds = array<i64: 8, 128>}]} {
    %0 = tpu.iota {dimensions = array<i32: 0>} : vector<256x128xi32>
    %c256_i32 = arith.constant 256 : i32
    %1 = arith.muli %arg1, %c256_i32 : i32
    %2 = vector.broadcast %1 : i32 to vector<256x128xi32>
    %3 = arith.addi %0, %2 : vector<256x128xi32>
    %cst = arith.constant 0.000000e+00 : f32
    %4 = vector.broadcast %cst : f32 to vector<256x128xf32>
    %cst_0 = arith.constant 0.000000e+00 : f32
    %c0_i32 = arith.constant 0 : i32
    %c5_i32 = arith.constant 5 : i32
    %5 = arith.addi %c0_i32, %c5_i32 : i32
    %c1_i32 = arith.constant 1 : i32
    %6 = scf.for %arg6 = %c0_i32 to %5 step %c1_i32 iter_args(%arg7 = %4) -> (vector<256x128xf32>)  : i32 {
      %c8_i32 = arith.constant 8 : i32
      %16 = arith.muli %arg6, %c8_i32 : i32
      %17 = tpu.assume_multiple %16, 8 : i32
      %c0_8 = arith.constant 0 : index
      %18 = arith.index_cast %17 : i32 to index
      %c0_9 = arith.constant 0 : index
      %19 = vector.load %arg2[%c0_8, %18, %c0_9] : memref<1x40x128xi32, #tpu.memory_space<vmem>>, vector<1x8x128xi32>
      %20 = vector.shape_cast %19 : vector<1x8x128xi32> to vector<8x128xi32>
      %c32_i32 = arith.constant 32 : i32
      %21 = arith.muli %arg6, %c32_i32 : i32
      %22 = tpu.assume_multiple %21, 32 : i32
      %c0_10 = arith.constant 0 : index
      %23 = arith.index_cast %22 : i32 to index
      %c0_11 = arith.constant 0 : index
      %24 = vector.load %arg3[%c0_10, %23, %c0_11] : memref<1x160x128xf32, #tpu.memory_space<vmem>>, vector<1x32x128xf32>
      %25 = vector.shape_cast %24 : vector<1x32x128xf32> to vector<32x128xf32>
      %26 = vector.extract_strided_slice %20 {offsets = [0, 0], sizes = [1, 128], strides = [1, 1]} : vector<8x128xi32> to vector<1x128xi32>
      %27 = vector.shape_cast %26 : vector<1x128xi32> to vector<128xi32>
      %28 = vector.shape_cast %27 : vector<128xi32> to vector<1x128xi32>
      %29 = vector.broadcast %28 : vector<1x128xi32> to vector<256x128xi32>
      %30 = arith.cmpi eq, %3, %29 : vector<256x128xi32>
      %31 = vector.extract_strided_slice %25 {offsets = [0, 0], sizes = [1, 128], strides = [1, 1]} : vector<32x128xf32> to vector<1x128xf32>
      %32 = vector.shape_cast %31 : vector<1x128xf32> to vector<128xf32>
      %33 = vector.shape_cast %32 : vector<128xf32> to vector<1x128xf32>
      %34 = vector.broadcast %33 : vector<1x128xf32> to vector<256x128xf32>
      %35 = vector.broadcast %cst_0 : f32 to vector<256x128xf32>
      %36 = arith.select %30, %34, %35 : vector<256x128xi1>, vector<256x128xf32>
      %c1_i32_12 = arith.constant 1 : i32
      %37 = vector.broadcast %c1_i32_12 : i32 to vector<128xi32>
      %38 = arith.addi %27, %37 : vector<128xi32>
      %39 = vector.shape_cast %38 : vector<128xi32> to vector<1x128xi32>
      %40 = vector.broadcast %39 : vector<1x128xi32> to vector<256x128xi32>
      %41 = arith.cmpi eq, %3, %40 : vector<256x128xi32>
      %42 = vector.extract_strided_slice %25 {offsets = [1, 0], sizes = [1, 128], strides = [1, 1]} : vector<32x128xf32> to vector<1x128xf32>
      %43 = vector.shape_cast %42 : vector<1x128xf32> to vector<128xf32>
      %44 = vector.shape_cast %43 : vector<128xf32> to vector<1x128xf32>
      %45 = vector.broadcast %44 : vector<1x128xf32> to vector<256x128xf32>
      %46 = vector.broadcast %cst_0 : f32 to vector<256x128xf32>
      %47 = arith.select %41, %45, %46 : vector<256x128xi1>, vector<256x128xf32>
      %48 = arith.addf %36, %47 : vector<256x128xf32>
      %c16_i32 = arith.constant 16 : i32
      %49 = vector.broadcast %c16_i32 : i32 to vector<128xi32>
      %50 = arith.addi %27, %49 : vector<128xi32>
      %51 = vector.shape_cast %50 : vector<128xi32> to vector<1x128xi32>
      %52 = vector.broadcast %51 : vector<1x128xi32> to vector<256x128xi32>
      %53 = arith.cmpi eq, %3, %52 : vector<256x128xi32>
      %54 = vector.extract_strided_slice %25 {offsets = [2, 0], sizes = [1, 128], strides = [1, 1]} : vector<32x128xf32> to vector<1x128xf32>
      %55 = vector.shape_cast %54 : vector<1x128xf32> to vector<128xf32>
      %56 = vector.shape_cast %55 : vector<128xf32> to vector<1x128xf32>
      %57 = vector.broadcast %56 : vector<1x128xf32> to vector<256x128xf32>
      %58 = vector.broadcast %cst_0 : f32 to vector<256x128xf32>
      %59 = arith.select %53, %57, %58 : vector<256x128xi1>, vector<256x128xf32>
      %60 = arith.addf %48, %59 : vector<256x128xf32>
      %c17_i32 = arith.constant 17 : i32
      %61 = vector.broadcast %c17_i32 : i32 to vector<128xi32>
      %62 = arith.addi %27, %61 : vector<128xi32>
      %63 = vector.shape_cast %62 : vector<128xi32> to vector<1x128xi32>
      %64 = vector.broadcast %63 : vector<1x128xi32> to vector<256x128xi32>
      %65 = arith.cmpi eq, %3, %64 : vector<256x128xi32>
      %66 = vector.extract_strided_slice %25 {offsets = [3, 0], sizes = [1, 128], strides = [1, 1]} : vector<32x128xf32> to vector<1x128xf32>
      %67 = vector.shape_cast %66 : vector<1x128xf32> to vector<128xf32>
      %68 = vector.shape_cast %67 : vector<128xf32> to vector<1x128xf32>
      %69 = vector.broadcast %68 : vector<1x128xf32> to vector<256x128xf32>
      %70 = vector.broadcast %cst_0 : f32 to vector<256x128xf32>
      %71 = arith.select %65, %69, %70 : vector<256x128xi1>, vector<256x128xf32>
      %72 = arith.addf %60, %71 : vector<256x128xf32>
      %73 = arith.addf %arg7, %72 : vector<256x128xf32>
      %74 = vector.extract_strided_slice %20 {offsets = [1, 0], sizes = [1, 128], strides = [1, 1]} : vector<8x128xi32> to vector<1x128xi32>
      %75 = vector.shape_cast %74 : vector<1x128xi32> to vector<128xi32>
      %76 = vector.shape_cast %75 : vector<128xi32> to vector<1x128xi32>
      %77 = vector.broadcast %76 : vector<1x128xi32> to vector<256x128xi32>
      %78 = arith.cmpi eq, %3, %77 : vector<256x128xi32>
      %79 = vector.extract_strided_slice %25 {offsets = [4, 0], sizes = [1, 128], strides = [1, 1]} : vector<32x128xf32> to vector<1x128xf32>
      %80 = vector.shape_cast %79 : vector<1x128xf32> to vector<128xf32>
      %81 = vector.shape_cast %80 : vector<128xf32> to vector<1x128xf32>
      %82 = vector.broadcast %81 : vector<1x128xf32> to vector<256x128xf32>
      %83 = vector.broadcast %cst_0 : f32 to vector<256x128xf32>
      %84 = arith.select %78, %82, %83 : vector<256x128xi1>, vector<256x128xf32>
      %c1_i32_13 = arith.constant 1 : i32
      %85 = vector.broadcast %c1_i32_13 : i32 to vector<128xi32>
      %86 = arith.addi %75, %85 : vector<128xi32>
      %87 = vector.shape_cast %86 : vector<128xi32> to vector<1x128xi32>
      %88 = vector.broadcast %87 : vector<1x128xi32> to vector<256x128xi32>
      %89 = arith.cmpi eq, %3, %88 : vector<256x128xi32>
      %90 = vector.extract_strided_slice %25 {offsets = [5, 0], sizes = [1, 128], strides = [1, 1]} : vector<32x128xf32> to vector<1x128xf32>
      %91 = vector.shape_cast %90 : vector<1x128xf32> to vector<128xf32>
      %92 = vector.shape_cast %91 : vector<128xf32> to vector<1x128xf32>
      %93 = vector.broadcast %92 : vector<1x128xf32> to vector<256x128xf32>
      %94 = vector.broadcast %cst_0 : f32 to vector<256x128xf32>
      %95 = arith.select %89, %93, %94 : vector<256x128xi1>, vector<256x128xf32>
      %96 = arith.addf %84, %95 : vector<256x128xf32>
      %c16_i32_14 = arith.constant 16 : i32
      %97 = vector.broadcast %c16_i32_14 : i32 to vector<128xi32>
      %98 = arith.addi %75, %97 : vector<128xi32>
      %99 = vector.shape_cast %98 : vector<128xi32> to vector<1x128xi32>
      %100 = vector.broadcast %99 : vector<1x128xi32> to vector<256x128xi32>
      %101 = arith.cmpi eq, %3, %100 : vector<256x128xi32>
      %102 = vector.extract_strided_slice %25 {offsets = [6, 0], sizes = [1, 128], strides = [1, 1]} : vector<32x128xf32> to vector<1x128xf32>
      %103 = vector.shape_cast %102 : vector<1x128xf32> to vector<128xf32>
      %104 = vector.shape_cast %103 : vector<128xf32> to vector<1x128xf32>
      %105 = vector.broadcast %104 : vector<1x128xf32> to vector<256x128xf32>
      %106 = vector.broadcast %cst_0 : f32 to vector<256x128xf32>
      %107 = arith.select %101, %105, %106 : vector<256x128xi1>, vector<256x128xf32>
      %108 = arith.addf %96, %107 : vector<256x128xf32>
      %c17_i32_15 = arith.constant 17 : i32
      %109 = vector.broadcast %c17_i32_15 : i32 to vector<128xi32>
      %110 = arith.addi %75, %109 : vector<128xi32>
      %111 = vector.shape_cast %110 : vector<128xi32> to vector<1x128xi32>
      %112 = vector.broadcast %111 : vector<1x128xi32> to vector<256x128xi32>
      %113 = arith.cmpi eq, %3, %112 : vector<256x128xi32>
      %114 = vector.extract_strided_slice %25 {offsets = [7, 0], sizes = [1, 128], strides = [1, 1]} : vector<32x128xf32> to vector<1x128xf32>
      %115 = vector.shape_cast %114 : vector<1x128xf32> to vector<128xf32>
      %116 = vector.shape_cast %115 : vector<128xf32> to vector<1x128xf32>
      %117 = vector.broadcast %116 : vector<1x128xf32> to vector<256x128xf32>
      %118 = vector.broadcast %cst_0 : f32 to vector<256x128xf32>
      %119 = arith.select %113, %117, %118 : vector<256x128xi1>, vector<256x128xf32>
      %120 = arith.addf %108, %119 : vector<256x128xf32>
      %121 = arith.addf %73, %120 : vector<256x128xf32>
      %122 = vector.extract_strided_slice %20 {offsets = [2, 0], sizes = [1, 128], strides = [1, 1]} : vector<8x128xi32> to vector<1x128xi32>
      %123 = vector.shape_cast %122 : vector<1x128xi32> to vector<128xi32>
      %124 = vector.shape_cast %123 : vector<128xi32> to vector<1x128xi32>
      %125 = vector.broadcast %124 : vector<1x128xi32> to vector<256x128xi32>
      %126 = arith.cmpi eq, %3, %125 : vector<256x128xi32>
      %127 = vector.extract_strided_slice %25 {offsets = [8, 0], sizes = [1, 128], strides = [1, 1]} : vector<32x128xf32> to vector<1x128xf32>
      %128 = vector.shape_cast %127 : vector<1x128xf32> to vector<128xf32>
      %129 = vector.shape_cast %128 : vector<128xf32> to vector<1x128xf32>
      %130 = vector.broadcast %129 : vector<1x128xf32> to vector<256x128xf32>
      %131 = vector.broadcast %cst_0 : f32 to vector<256x128xf32>
      %132 = arith.select %126, %130, %131 : vector<256x128xi1>, vector<256x128xf32>
      %c1_i32_16 = arith.constant 1 : i32
      %133 = vector.broadcast %c1_i32_16 : i32 to vector<128xi32>
      %134 = arith.addi %123, %133 : vector<128xi32>
      %135 = vector.shape_cast %134 : vector<128xi32> to vector<1x128xi32>
      %136 = vector.broadcast %135 : vector<1x128xi32> to vector<256x128xi32>
      %137 = arith.cmpi eq, %3, %136 : vector<256x128xi32>
      %138 = vector.extract_strided_slice %25 {offsets = [9, 0], sizes = [1, 128], strides = [1, 1]} : vector<32x128xf32> to vector<1x128xf32>
      %139 = vector.shape_cast %138 : vector<1x128xf32> to vector<128xf32>
      %140 = vector.shape_cast %139 : vector<128xf32> to vector<1x128xf32>
      %141 = vector.broadcast %140 : vector<1x128xf32> to vector<256x128xf32>
      %142 = vector.broadcast %cst_0 : f32 to vector<256x128xf32>
      %143 = arith.select %137, %141, %142 : vector<256x128xi1>, vector<256x128xf32>
      %144 = arith.addf %132, %143 : vector<256x128xf32>
      %c16_i32_17 = arith.constant 16 : i32
      %145 = vector.broadcast %c16_i32_17 : i32 to vector<128xi32>
      %146 = arith.addi %123, %145 : vector<128xi32>
      %147 = vector.shape_cast %146 : vector<128xi32> to vector<1x128xi32>
      %148 = vector.broadcast %147 : vector<1x128xi32> to vector<256x128xi32>
      %149 = arith.cmpi eq, %3, %148 : vector<256x128xi32>
      %150 = vector.extract_strided_slice %25 {offsets = [10, 0], sizes = [1, 128], strides = [1, 1]} : vector<32x128xf32> to vector<1x128xf32>
      %151 = vector.shape_cast %150 : vector<1x128xf32> to vector<128xf32>
      %152 = vector.shape_cast %151 : vector<128xf32> to vector<1x128xf32>
      %153 = vector.broadcast %152 : vector<1x128xf32> to vector<256x128xf32>
      %154 = vector.broadcast %cst_0 : f32 to vector<256x128xf32>
      %155 = arith.select %149, %153, %154 : vector<256x128xi1>, vector<256x128xf32>
      %156 = arith.addf %144, %155 : vector<256x128xf32>
      %c17_i32_18 = arith.constant 17 : i32
      %157 = vector.broadcast %c17_i32_18 : i32 to vector<128xi32>
      %158 = arith.addi %123, %157 : vector<128xi32>
      %159 = vector.shape_cast %158 : vector<128xi32> to vector<1x128xi32>
      %160 = vector.broadcast %159 : vector<1x128xi32> to vector<256x128xi32>
      %161 = arith.cmpi eq, %3, %160 : vector<256x128xi32>
      %162 = vector.extract_strided_slice %25 {offsets = [11, 0], sizes = [1, 128], strides = [1, 1]} : vector<32x128xf32> to vector<1x128xf32>
      %163 = vector.shape_cast %162 : vector<1x128xf32> to vector<128xf32>
      %164 = vector.shape_cast %163 : vector<128xf32> to vector<1x128xf32>
      %165 = vector.broadcast %164 : vector<1x128xf32> to vector<256x128xf32>
      %166 = vector.broadcast %cst_0 : f32 to vector<256x128xf32>
      %167 = arith.select %161, %165, %166 : vector<256x128xi1>, vector<256x128xf32>
      %168 = arith.addf %156, %167 : vector<256x128xf32>
      %169 = arith.addf %121, %168 : vector<256x128xf32>
      %170 = vector.extract_strided_slice %20 {offsets = [3, 0], sizes = [1, 128], strides = [1, 1]} : vector<8x128xi32> to vector<1x128xi32>
      %171 = vector.shape_cast %170 : vector<1x128xi32> to vector<128xi32>
      %172 = vector.shape_cast %171 : vector<128xi32> to vector<1x128xi32>
      %173 = vector.broadcast %172 : vector<1x128xi32> to vector<256x128xi32>
      %174 = arith.cmpi eq, %3, %173 : vector<256x128xi32>
      %175 = vector.extract_strided_slice %25 {offsets = [12, 0], sizes = [1, 128], strides = [1, 1]} : vector<32x128xf32> to vector<1x128xf32>
      %176 = vector.shape_cast %175 : vector<1x128xf32> to vector<128xf32>
      %177 = vector.shape_cast %176 : vector<128xf32> to vector<1x128xf32>
      %178 = vector.broadcast %177 : vector<1x128xf32> to vector<256x128xf32>
      %179 = vector.broadcast %cst_0 : f32 to vector<256x128xf32>
      %180 = arith.select %174, %178, %179 : vector<256x128xi1>, vector<256x128xf32>
      %c1_i32_19 = arith.constant 1 : i32
      %181 = vector.broadcast %c1_i32_19 : i32 to vector<128xi32>
      %182 = arith.addi %171, %181 : vector<128xi32>
      %183 = vector.shape_cast %182 : vector<128xi32> to vector<1x128xi32>
      %184 = vector.broadcast %183 : vector<1x128xi32> to vector<256x128xi32>
      %185 = arith.cmpi eq, %3, %184 : vector<256x128xi32>
      %186 = vector.extract_strided_slice %25 {offsets = [13, 0], sizes = [1, 128], strides = [1, 1]} : vector<32x128xf32> to vector<1x128xf32>
      %187 = vector.shape_cast %186 : vector<1x128xf32> to vector<128xf32>
      %188 = vector.shape_cast %187 : vector<128xf32> to vector<1x128xf32>
      %189 = vector.broadcast %188 : vector<1x128xf32> to vector<256x128xf32>
      %190 = vector.broadcast %cst_0 : f32 to vector<256x128xf32>
      %191 = arith.select %185, %189, %190 : vector<256x128xi1>, vector<256x128xf32>
      %192 = arith.addf %180, %191 : vector<256x128xf32>
      %c16_i32_20 = arith.constant 16 : i32
      %193 = vector.broadcast %c16_i32_20 : i32 to vector<128xi32>
      %194 = arith.addi %171, %193 : vector<128xi32>
      %195 = vector.shape_cast %194 : vector<128xi32> to vector<1x128xi32>
      %196 = vector.broadcast %195 : vector<1x128xi32> to vector<256x128xi32>
      %197 = arith.cmpi eq, %3, %196 : vector<256x128xi32>
      %198 = vector.extract_strided_slice %25 {offsets = [14, 0], sizes = [1, 128], strides = [1, 1]} : vector<32x128xf32> to vector<1x128xf32>
      %199 = vector.shape_cast %198 : vector<1x128xf32> to vector<128xf32>
      %200 = vector.shape_cast %199 : vector<128xf32> to vector<1x128xf32>
      %201 = vector.broadcast %200 : vector<1x128xf32> to vector<256x128xf32>
      %202 = vector.broadcast %cst_0 : f32 to vector<256x128xf32>
      %203 = arith.select %197, %201, %202 : vector<256x128xi1>, vector<256x128xf32>
      %204 = arith.addf %192, %203 : vector<256x128xf32>
      %c17_i32_21 = arith.constant 17 : i32
      %205 = vector.broadcast %c17_i32_21 : i32 to vector<128xi32>
      %206 = arith.addi %171, %205 : vector<128xi32>
      %207 = vector.shape_cast %206 : vector<128xi32> to vector<1x128xi32>
      %208 = vector.broadcast %207 : vector<1x128xi32> to vector<256x128xi32>
      %209 = arith.cmpi eq, %3, %208 : vector<256x128xi32>
      %210 = vector.extract_strided_slice %25 {offsets = [15, 0], sizes = [1, 128], strides = [1, 1]} : vector<32x128xf32> to vector<1x128xf32>
      %211 = vector.shape_cast %210 : vector<1x128xf32> to vector<128xf32>
      %212 = vector.shape_cast %211 : vector<128xf32> to vector<1x128xf32>
      %213 = vector.broadcast %212 : vector<1x128xf32> to vector<256x128xf32>
      %214 = vector.broadcast %cst_0 : f32 to vector<256x128xf32>
      %215 = arith.select %209, %213, %214 : vector<256x128xi1>, vector<256x128xf32>
      %216 = arith.addf %204, %215 : vector<256x128xf32>
      %217 = arith.addf %169, %216 : vector<256x128xf32>
      %218 = vector.extract_strided_slice %20 {offsets = [4, 0], sizes = [1, 128], strides = [1, 1]} : vector<8x128xi32> to vector<1x128xi32>
      %219 = vector.shape_cast %218 : vector<1x128xi32> to vector<128xi32>
      %220 = vector.shape_cast %219 : vector<128xi32> to vector<1x128xi32>
      %221 = vector.broadcast %220 : vector<1x128xi32> to vector<256x128xi32>
      %222 = arith.cmpi eq, %3, %221 : vector<256x128xi32>
      %223 = vector.extract_strided_slice %25 {offsets = [16, 0], sizes = [1, 128], strides = [1, 1]} : vector<32x128xf32> to vector<1x128xf32>
      %224 = vector.shape_cast %223 : vector<1x128xf32> to vector<128xf32>
      %225 = vector.shape_cast %224 : vector<128xf32> to vector<1x128xf32>
      %226 = vector.broadcast %225 : vector<1x128xf32> to vector<256x128xf32>
      %227 = vector.broadcast %cst_0 : f32 to vector<256x128xf32>
      %228 = arith.select %222, %226, %227 : vector<256x128xi1>, vector<256x128xf32>
      %c1_i32_22 = arith.constant 1 : i32
      %229 = vector.broadcast %c1_i32_22 : i32 to vector<128xi32>
      %230 = arith.addi %219, %229 : vector<128xi32>
      %231 = vector.shape_cast %230 : vector<128xi32> to vector<1x128xi32>
      %232 = vector.broadcast %231 : vector<1x128xi32> to vector<256x128xi32>
      %233 = arith.cmpi eq, %3, %232 : vector<256x128xi32>
      %234 = vector.extract_strided_slice %25 {offsets = [17, 0], sizes = [1, 128], strides = [1, 1]} : vector<32x128xf32> to vector<1x128xf32>
      %235 = vector.shape_cast %234 : vector<1x128xf32> to vector<128xf32>
      %236 = vector.shape_cast %235 : vector<128xf32> to vector<1x128xf32>
      %237 = vector.broadcast %236 : vector<1x128xf32> to vector<256x128xf32>
      %238 = vector.broadcast %cst_0 : f32 to vector<256x128xf32>
      %239 = arith.select %233, %237, %238 : vector<256x128xi1>, vector<256x128xf32>
      %240 = arith.addf %228, %239 : vector<256x128xf32>
      %c16_i32_23 = arith.constant 16 : i32
      %241 = vector.broadcast %c16_i32_23 : i32 to vector<128xi32>
      %242 = arith.addi %219, %241 : vector<128xi32>
      %243 = vector.shape_cast %242 : vector<128xi32> to vector<1x128xi32>
      %244 = vector.broadcast %243 : vector<1x128xi32> to vector<256x128xi32>
      %245 = arith.cmpi eq, %3, %244 : vector<256x128xi32>
      %246 = vector.extract_strided_slice %25 {offsets = [18, 0], sizes = [1, 128], strides = [1, 1]} : vector<32x128xf32> to vector<1x128xf32>
      %247 = vector.shape_cast %246 : vector<1x128xf32> to vector<128xf32>
      %248 = vector.shape_cast %247 : vector<128xf32> to vector<1x128xf32>
      %249 = vector.broadcast %248 : vector<1x128xf32> to vector<256x128xf32>
      %250 = vector.broadcast %cst_0 : f32 to vector<256x128xf32>
      %251 = arith.select %245, %249, %250 : vector<256x128xi1>, vector<256x128xf32>
      %252 = arith.addf %240, %251 : vector<256x128xf32>
      %c17_i32_24 = arith.constant 17 : i32
      %253 = vector.broadcast %c17_i32_24 : i32 to vector<128xi32>
      %254 = arith.addi %219, %253 : vector<128xi32>
      %255 = vector.shape_cast %254 : vector<128xi32> to vector<1x128xi32>
      %256 = vector.broadcast %255 : vector<1x128xi32> to vector<256x128xi32>
      %257 = arith.cmpi eq, %3, %256 : vector<256x128xi32>
      %258 = vector.extract_strided_slice %25 {offsets = [19, 0], sizes = [1, 128], strides = [1, 1]} : vector<32x128xf32> to vector<1x128xf32>
      %259 = vector.shape_cast %258 : vector<1x128xf32> to vector<128xf32>
      %260 = vector.shape_cast %259 : vector<128xf32> to vector<1x128xf32>
      %261 = vector.broadcast %260 : vector<1x128xf32> to vector<256x128xf32>
      %262 = vector.broadcast %cst_0 : f32 to vector<256x128xf32>
      %263 = arith.select %257, %261, %262 : vector<256x128xi1>, vector<256x128xf32>
      %264 = arith.addf %252, %263 : vector<256x128xf32>
      %265 = arith.addf %217, %264 : vector<256x128xf32>
      %266 = vector.extract_strided_slice %20 {offsets = [5, 0], sizes = [1, 128], strides = [1, 1]} : vector<8x128xi32> to vector<1x128xi32>
      %267 = vector.shape_cast %266 : vector<1x128xi32> to vector<128xi32>
      %268 = vector.shape_cast %267 : vector<128xi32> to vector<1x128xi32>
      %269 = vector.broadcast %268 : vector<1x128xi32> to vector<256x128xi32>
      %270 = arith.cmpi eq, %3, %269 : vector<256x128xi32>
      %271 = vector.extract_strided_slice %25 {offsets = [20, 0], sizes = [1, 128], strides = [1, 1]} : vector<32x128xf32> to vector<1x128xf32>
      %272 = vector.shape_cast %271 : vector<1x128xf32> to vector<128xf32>
      %273 = vector.shape_cast %272 : vector<128xf32> to vector<1x128xf32>
      %274 = vector.broadcast %273 : vector<1x128xf32> to vector<256x128xf32>
      %275 = vector.broadcast %cst_0 : f32 to vector<256x128xf32>
      %276 = arith.select %270, %274, %275 : vector<256x128xi1>, vector<256x128xf32>
      %c1_i32_25 = arith.constant 1 : i32
      %277 = vector.broadcast %c1_i32_25 : i32 to vector<128xi32>
      %278 = arith.addi %267, %277 : vector<128xi32>
      %279 = vector.shape_cast %278 : vector<128xi32> to vector<1x128xi32>
      %280 = vector.broadcast %279 : vector<1x128xi32> to vector<256x128xi32>
      %281 = arith.cmpi eq, %3, %280 : vector<256x128xi32>
      %282 = vector.extract_strided_slice %25 {offsets = [21, 0], sizes = [1, 128], strides = [1, 1]} : vector<32x128xf32> to vector<1x128xf32>
      %283 = vector.shape_cast %282 : vector<1x128xf32> to vector<128xf32>
      %284 = vector.shape_cast %283 : vector<128xf32> to vector<1x128xf32>
      %285 = vector.broadcast %284 : vector<1x128xf32> to vector<256x128xf32>
      %286 = vector.broadcast %cst_0 : f32 to vector<256x128xf32>
      %287 = arith.select %281, %285, %286 : vector<256x128xi1>, vector<256x128xf32>
      %288 = arith.addf %276, %287 : vector<256x128xf32>
      %c16_i32_26 = arith.constant 16 : i32
      %289 = vector.broadcast %c16_i32_26 : i32 to vector<128xi32>
      %290 = arith.addi %267, %289 : vector<128xi32>
      %291 = vector.shape_cast %290 : vector<128xi32> to vector<1x128xi32>
      %292 = vector.broadcast %291 : vector<1x128xi32> to vector<256x128xi32>
      %293 = arith.cmpi eq, %3, %292 : vector<256x128xi32>
      %294 = vector.extract_strided_slice %25 {offsets = [22, 0], sizes = [1, 128], strides = [1, 1]} : vector<32x128xf32> to vector<1x128xf32>
      %295 = vector.shape_cast %294 : vector<1x128xf32> to vector<128xf32>
      %296 = vector.shape_cast %295 : vector<128xf32> to vector<1x128xf32>
      %297 = vector.broadcast %296 : vector<1x128xf32> to vector<256x128xf32>
      %298 = vector.broadcast %cst_0 : f32 to vector<256x128xf32>
      %299 = arith.select %293, %297, %298 : vector<256x128xi1>, vector<256x128xf32>
      %300 = arith.addf %288, %299 : vector<256x128xf32>
      %c17_i32_27 = arith.constant 17 : i32
      %301 = vector.broadcast %c17_i32_27 : i32 to vector<128xi32>
      %302 = arith.addi %267, %301 : vector<128xi32>
      %303 = vector.shape_cast %302 : vector<128xi32> to vector<1x128xi32>
      %304 = vector.broadcast %303 : vector<1x128xi32> to vector<256x128xi32>
      %305 = arith.cmpi eq, %3, %304 : vector<256x128xi32>
      %306 = vector.extract_strided_slice %25 {offsets = [23, 0], sizes = [1, 128], strides = [1, 1]} : vector<32x128xf32> to vector<1x128xf32>
      %307 = vector.shape_cast %306 : vector<1x128xf32> to vector<128xf32>
      %308 = vector.shape_cast %307 : vector<128xf32> to vector<1x128xf32>
      %309 = vector.broadcast %308 : vector<1x128xf32> to vector<256x128xf32>
      %310 = vector.broadcast %cst_0 : f32 to vector<256x128xf32>
      %311 = arith.select %305, %309, %310 : vector<256x128xi1>, vector<256x128xf32>
      %312 = arith.addf %300, %311 : vector<256x128xf32>
      %313 = arith.addf %265, %312 : vector<256x128xf32>
      %314 = vector.extract_strided_slice %20 {offsets = [6, 0], sizes = [1, 128], strides = [1, 1]} : vector<8x128xi32> to vector<1x128xi32>
      %315 = vector.shape_cast %314 : vector<1x128xi32> to vector<128xi32>
      %316 = vector.shape_cast %315 : vector<128xi32> to vector<1x128xi32>
      %317 = vector.broadcast %316 : vector<1x128xi32> to vector<256x128xi32>
      %318 = arith.cmpi eq, %3, %317 : vector<256x128xi32>
      %319 = vector.extract_strided_slice %25 {offsets = [24, 0], sizes = [1, 128], strides = [1, 1]} : vector<32x128xf32> to vector<1x128xf32>
      %320 = vector.shape_cast %319 : vector<1x128xf32> to vector<128xf32>
      %321 = vector.shape_cast %320 : vector<128xf32> to vector<1x128xf32>
      %322 = vector.broadcast %321 : vector<1x128xf32> to vector<256x128xf32>
      %323 = vector.broadcast %cst_0 : f32 to vector<256x128xf32>
      %324 = arith.select %318, %322, %323 : vector<256x128xi1>, vector<256x128xf32>
      %c1_i32_28 = arith.constant 1 : i32
      %325 = vector.broadcast %c1_i32_28 : i32 to vector<128xi32>
      %326 = arith.addi %315, %325 : vector<128xi32>
      %327 = vector.shape_cast %326 : vector<128xi32> to vector<1x128xi32>
      %328 = vector.broadcast %327 : vector<1x128xi32> to vector<256x128xi32>
      %329 = arith.cmpi eq, %3, %328 : vector<256x128xi32>
      %330 = vector.extract_strided_slice %25 {offsets = [25, 0], sizes = [1, 128], strides = [1, 1]} : vector<32x128xf32> to vector<1x128xf32>
      %331 = vector.shape_cast %330 : vector<1x128xf32> to vector<128xf32>
      %332 = vector.shape_cast %331 : vector<128xf32> to vector<1x128xf32>
      %333 = vector.broadcast %332 : vector<1x128xf32> to vector<256x128xf32>
      %334 = vector.broadcast %cst_0 : f32 to vector<256x128xf32>
      %335 = arith.select %329, %333, %334 : vector<256x128xi1>, vector<256x128xf32>
      %336 = arith.addf %324, %335 : vector<256x128xf32>
      %c16_i32_29 = arith.constant 16 : i32
      %337 = vector.broadcast %c16_i32_29 : i32 to vector<128xi32>
      %338 = arith.addi %315, %337 : vector<128xi32>
      %339 = vector.shape_cast %338 : vector<128xi32> to vector<1x128xi32>
      %340 = vector.broadcast %339 : vector<1x128xi32> to vector<256x128xi32>
      %341 = arith.cmpi eq, %3, %340 : vector<256x128xi32>
      %342 = vector.extract_strided_slice %25 {offsets = [26, 0], sizes = [1, 128], strides = [1, 1]} : vector<32x128xf32> to vector<1x128xf32>
      %343 = vector.shape_cast %342 : vector<1x128xf32> to vector<128xf32>
      %344 = vector.shape_cast %343 : vector<128xf32> to vector<1x128xf32>
      %345 = vector.broadcast %344 : vector<1x128xf32> to vector<256x128xf32>
      %346 = vector.broadcast %cst_0 : f32 to vector<256x128xf32>
      %347 = arith.select %341, %345, %346 : vector<256x128xi1>, vector<256x128xf32>
      %348 = arith.addf %336, %347 : vector<256x128xf32>
      %c17_i32_30 = arith.constant 17 : i32
      %349 = vector.broadcast %c17_i32_30 : i32 to vector<128xi32>
      %350 = arith.addi %315, %349 : vector<128xi32>
      %351 = vector.shape_cast %350 : vector<128xi32> to vector<1x128xi32>
      %352 = vector.broadcast %351 : vector<1x128xi32> to vector<256x128xi32>
      %353 = arith.cmpi eq, %3, %352 : vector<256x128xi32>
      %354 = vector.extract_strided_slice %25 {offsets = [27, 0], sizes = [1, 128], strides = [1, 1]} : vector<32x128xf32> to vector<1x128xf32>
      %355 = vector.shape_cast %354 : vector<1x128xf32> to vector<128xf32>
      %356 = vector.shape_cast %355 : vector<128xf32> to vector<1x128xf32>
      %357 = vector.broadcast %356 : vector<1x128xf32> to vector<256x128xf32>
      %358 = vector.broadcast %cst_0 : f32 to vector<256x128xf32>
      %359 = arith.select %353, %357, %358 : vector<256x128xi1>, vector<256x128xf32>
      %360 = arith.addf %348, %359 : vector<256x128xf32>
      %361 = arith.addf %313, %360 : vector<256x128xf32>
      %362 = vector.extract_strided_slice %20 {offsets = [7, 0], sizes = [1, 128], strides = [1, 1]} : vector<8x128xi32> to vector<1x128xi32>
      %363 = vector.shape_cast %362 : vector<1x128xi32> to vector<128xi32>
      %364 = vector.shape_cast %363 : vector<128xi32> to vector<1x128xi32>
      %365 = vector.broadcast %364 : vector<1x128xi32> to vector<256x128xi32>
      %366 = arith.cmpi eq, %3, %365 : vector<256x128xi32>
      %367 = vector.extract_strided_slice %25 {offsets = [28, 0], sizes = [1, 128], strides = [1, 1]} : vector<32x128xf32> to vector<1x128xf32>
      %368 = vector.shape_cast %367 : vector<1x128xf32> to vector<128xf32>
      %369 = vector.shape_cast %368 : vector<128xf32> to vector<1x128xf32>
      %370 = vector.broadcast %369 : vector<1x128xf32> to vector<256x128xf32>
      %371 = vector.broadcast %cst_0 : f32 to vector<256x128xf32>
      %372 = arith.select %366, %370, %371 : vector<256x128xi1>, vector<256x128xf32>
      %c1_i32_31 = arith.constant 1 : i32
      %373 = vector.broadcast %c1_i32_31 : i32 to vector<128xi32>
      %374 = arith.addi %363, %373 : vector<128xi32>
      %375 = vector.shape_cast %374 : vector<128xi32> to vector<1x128xi32>
      %376 = vector.broadcast %375 : vector<1x128xi32> to vector<256x128xi32>
      %377 = arith.cmpi eq, %3, %376 : vector<256x128xi32>
      %378 = vector.extract_strided_slice %25 {offsets = [29, 0], sizes = [1, 128], strides = [1, 1]} : vector<32x128xf32> to vector<1x128xf32>
      %379 = vector.shape_cast %378 : vector<1x128xf32> to vector<128xf32>
      %380 = vector.shape_cast %379 : vector<128xf32> to vector<1x128xf32>
      %381 = vector.broadcast %380 : vector<1x128xf32> to vector<256x128xf32>
      %382 = vector.broadcast %cst_0 : f32 to vector<256x128xf32>
      %383 = arith.select %377, %381, %382 : vector<256x128xi1>, vector<256x128xf32>
      %384 = arith.addf %372, %383 : vector<256x128xf32>
      %c16_i32_32 = arith.constant 16 : i32
      %385 = vector.broadcast %c16_i32_32 : i32 to vector<128xi32>
      %386 = arith.addi %363, %385 : vector<128xi32>
      %387 = vector.shape_cast %386 : vector<128xi32> to vector<1x128xi32>
      %388 = vector.broadcast %387 : vector<1x128xi32> to vector<256x128xi32>
      %389 = arith.cmpi eq, %3, %388 : vector<256x128xi32>
      %390 = vector.extract_strided_slice %25 {offsets = [30, 0], sizes = [1, 128], strides = [1, 1]} : vector<32x128xf32> to vector<1x128xf32>
      %391 = vector.shape_cast %390 : vector<1x128xf32> to vector<128xf32>
      %392 = vector.shape_cast %391 : vector<128xf32> to vector<1x128xf32>
      %393 = vector.broadcast %392 : vector<1x128xf32> to vector<256x128xf32>
      %394 = vector.broadcast %cst_0 : f32 to vector<256x128xf32>
      %395 = arith.select %389, %393, %394 : vector<256x128xi1>, vector<256x128xf32>
      %396 = arith.addf %384, %395 : vector<256x128xf32>
      %c17_i32_33 = arith.constant 17 : i32
      %397 = vector.broadcast %c17_i32_33 : i32 to vector<128xi32>
      %398 = arith.addi %363, %397 : vector<128xi32>
      %399 = vector.shape_cast %398 : vector<128xi32> to vector<1x128xi32>
      %400 = vector.broadcast %399 : vector<1x128xi32> to vector<256x128xi32>
      %401 = arith.cmpi eq, %3, %400 : vector<256x128xi32>
      %402 = vector.extract_strided_slice %25 {offsets = [31, 0], sizes = [1, 128], strides = [1, 1]} : vector<32x128xf32> to vector<1x128xf32>
      %403 = vector.shape_cast %402 : vector<1x128xf32> to vector<128xf32>
      %404 = vector.shape_cast %403 : vector<128xf32> to vector<1x128xf32>
      %405 = vector.broadcast %404 : vector<1x128xf32> to vector<256x128xf32>
      %406 = vector.broadcast %cst_0 : f32 to vector<256x128xf32>
      %407 = arith.select %401, %405, %406 : vector<256x128xi1>, vector<256x128xf32>
      %408 = arith.addf %396, %407 : vector<256x128xf32>
      %409 = arith.addf %361, %408 : vector<256x128xf32>
      scf.yield %409 : vector<256x128xf32>
    }
    %c5_i32_1 = arith.constant 5 : i32
    %c0 = arith.constant 0 : index
    %c0_2 = arith.constant 0 : index
    %7 = vector.load %arg4[%c0, %c0_2] : memref<8x256xbf16, #tpu.memory_space<vmem>>, vector<8x256xbf16>
    %8 = arith.truncf %6 : vector<256x128xf32> to vector<256x128xbf16>
    %cst_3 = arith.constant dense<0.000000e+00> : vector<8x128xf32>
    %9 = tpu.matmul %7, %8, %cst_3 {dimension_numbers = #tpu.dot_dimension_numbers<[1], [0], [0], [1], [0, 0, 1, 1], [], []>} : vector<8x256xbf16>, vector<256x128xbf16>, vector<8x128xf32> -> vector<8x128xf32>
    %c0_i32_4 = arith.constant 0 : i32
    %10 = arith.cmpi eq, %arg1, %c0_i32_4 : i32
    %11 = arith.extui %10 : i1 to i32
    %c0_i32_5 = arith.constant 0 : i32
    %12 = arith.cmpi ne, %11, %c0_i32_5 : i32
    scf.if %12 {
      %c0_8 = arith.constant 0 : index
      %c0_9 = arith.constant 0 : index
      %16 = vector.load %arg5[%c0_8, %c0_9] : memref<8x128xf32, #tpu.memory_space<vmem>>, vector<8x128xf32>
      tpu.vector_store %arg5[%c0_8, %c0_9], %9 {strides = array<i32>} : memref<8x128xf32, #tpu.memory_space<vmem>>, vector<8x128xf32>,
    } else {
    }
    %c0_i32_6 = arith.constant 0 : i32
    %13 = arith.cmpi sgt, %arg1, %c0_i32_6 : i32
    %14 = arith.extui %13 : i1 to i32
    %c0_i32_7 = arith.constant 0 : i32
    %15 = arith.cmpi ne, %14, %c0_i32_7 : i32
    scf.if %15 {
      %c0_8 = arith.constant 0 : index
      %c0_9 = arith.constant 0 : index
      %16 = vector.load %arg5[%c0_8, %c0_9] : memref<8x128xf32, #tpu.memory_space<vmem>>, vector<8x128xf32>
      %17 = arith.addf %16, %9 : vector<8x128xf32>
      %c0_10 = arith.constant 0 : index
      %c0_11 = arith.constant 0 : index
      %18 = vector.load %arg5[%c0_10, %c0_11] : memref<8x128xf32, #tpu.memory_space<vmem>>, vector<8x128xf32>
      tpu.vector_store %arg5[%c0_10, %c0_11], %17 {strides = array<i32>} : memref<8x128xf32, #tpu.memory_space<vmem>>, vector<8x128xf32>,
    } else {
    }
    return
  }
  func.func @transform_0(%arg0: i32, %arg1: i32) -> (i32, i32, i32) {
    %c0_i32 = arith.constant 0 : i32
    %c0_i32_0 = arith.constant 0 : i32
    %c0_i32_1 = arith.constant 0 : i32
    return %arg0, %c0_i32, %c0_i32_0 : i32, i32, i32
  }
  func.func @transform_1(%arg0: i32, %arg1: i32) -> (i32, i32, i32) {
    %c0_i32 = arith.constant 0 : i32
    %c0_i32_0 = arith.constant 0 : i32
    %c0_i32_1 = arith.constant 0 : i32
    return %arg0, %c0_i32, %c0_i32_0 : i32, i32, i32
  }
  func.func @transform_2(%arg0: i32, %arg1: i32) -> (i32, i32) {
    %c0_i32 = arith.constant 0 : i32
    %c0_i32_0 = arith.constant 0 : i32
    return %c0_i32, %arg1 : i32, i32
  }
  func.func @transform_3(%arg0: i32, %arg1: i32) -> (i32, i32) {
    %c0_i32 = arith.constant 0 : i32
    %c0_i32_0 = arith.constant 0 : i32
    return %c0_i32, %arg0 : i32, i32
  }
}

</mosaic_0001>

<llo_original>
// kernel: tpu_custom_call.1
$region0: #{tpu_custom_call.1}
  #allocation0 [shape = 'u32[]', space=smem, size = 0x4, offset = 0x4, fixed_abs, tag = 'smem constant byte address 0x4 - core index']
  #allocation1 [shape = 'u32[144,128]{1,0:T(1,128)}', space=vmem, size = 0x12000, scoped, tag = 'internal scratch']
  %s0 = inlined_call_operand.hbm [shape: s32[2,40,128], index: 0, kind: input, shape index: {}]
  %s1 = inlined_call_operand.hbm [shape: f32[2,160,128], index: 1, kind: input, shape index: {}]
  %s2 = inlined_call_operand.hbm [shape: bf16[8,256], index: 2, kind: input, shape index: {}]
  %s3 = inlined_call_operand.hbm [shape: f32[8,256], index: 3, kind: output, shape index: {}]
  %s4 = sld [smem:[#allocation0]]
  $region72: #{tpu_custom_call.1} parent=0
    _
  %s6 = ssub.s32 1, %s4
  %s7 = scalar_select 0, %s6, %s4
  $region1: #{tpu_custom_call.1} parent=0
    #allocation2 [shape = 'u8[40960]{0}', space=vmem, size = 0xa000, scoped, tag = 'input window, operand 0']
    #allocation3 [shape = 's32[2]{0}', space=sflag, size = 0x8, scoped, tag = 'scoped memory for tpu_custom_call.1']
    #allocation4 [shape = 's32[2]{0}', space=sflag, size = 0x8, scoped, tag = 'scoped memory for tpu_custom_call.1']
    #allocation5 [shape = 'u8[163840]{0}', space=vmem, size = 0x28000, scoped, tag = 'input window, operand 1']
    #allocation6 [shape = 's32[2]{0}', space=sflag, size = 0x8, scoped, tag = 'scoped memory for tpu_custom_call.1']
    #allocation7 [shape = 'u8[4096]{0}', space=vmem, size = 0x1000, scoped, tag = 'input window, operand 2, single buffered']
    #allocation8 [shape = 'u8[8192]{0}', space=vmem, size = 0x2000, scoped, tag = 'output window, operand 0']
    %8 = vsyncpa [#allocation3], 0
    %s9 = scalar_lea.sflag [#allocation3], 1
    %10 = vsyncpa %s9, 0
    %11 = vsyncpa [#allocation6], 0
    %s12 = scalar_lea.sflag [#allocation6], 1
    %13 = vsyncpa %s12, 0
    %14 = vsyncpa [#allocation4], 0
    %s15 = scalar_lea.sflag [#allocation4], 1
    %16 = vsyncpa %s15, 0
    loop: start=0, step=1, limit=4
    $region2: #{tpu_custom_call.1} parent=1 // loop_pre_header
      _
    $region3: #{tpu_custom_call.1} parent=1 // loop_header
      %s18 = sphi 0, %s22
      %p19 = scmp.ge.s32.totalorder %s18, 4
      %s25 = sphi 0, %s37
      %s26 = sphi 0, %s33
      %s27 = sphi 0, %s25
      %s28 = sphi 0, %s26
      %s29 = sphi 0, %s27
      %s30 = sphi 0, %s28
      %s40 = sphi 0, %s42
      %s43 = sphi 0, %s40
      %s44 = sphi 0, %s43
      %s60 = sphi 0, %s44
      %s66 = sphi 0, %s68
      %s69 = sphi 0, %s66
      %s70 = sphi 0, %s69
      %s86 = sphi 0, %s70
      %s92 = sphi 0, %s94
      %s95 = sphi 0, %s92
      %s96 = sphi 0, %s95
      %s112 = sphi 0, %s96
      %s118 = sphi 0, %s120
      %s121 = sphi 0, %s118
      %s122 = sphi 0, %s121
      %s138 = sphi 0, %s122
    $region4: #{tpu_custom_call.1} parent=1 // loop_header_branch
      %21 = sbr.rel (%p19) target = $region8
    $region5: #{tpu_custom_call.1} parent=1 // loop_body
      %s23 = ssub.s32 %s18, 1
      %s24 = ssub.s32 %s18, 2
      %s31 = sadd.s32 1, %s26
      %p32 = scmp.ge.s32.totalorder %s31, 1
      %s33 = scalar_select %p32, 0, %s31
      %s34 = sadd.s32 1, %s25
      %s35 = scalar_select %p32, %s34, %s25
      %p36 = scmp.ge.s32.totalorder %s35, 2
      %s37 = scalar_select %p36, 0, %s35
      %s38 = ssub.s32 %s25, %s37
      %p39 = scmp.eq.s32.totalorder %s38, 0
      %s41 = sadd.s32 %s40, 1
      %s42 = scalar_select %p39, %s40, %s41
      %p45 = pneg %p39
      %p46 = scmp.eq.s32.totalorder %s18, 1
      %p47 = por %p45, %p46
      %p48 = scmp.ne.s32.totalorder %s40, %s43
      %p49 = scmp.eq.s32.totalorder %s18, 0
      %p50 = por %p48, %p49
      %p51 = scmp.ne.s32.totalorder %s40, %s43
      %p52 = scmp.eq.s32.totalorder %s23, 1
      %p53 = por %p51, %p52
      %p54 = scmp.ne.s32.totalorder %s43, %s44
      %p55 = scmp.eq.s32.totalorder %s23, 0
      %p56 = por %p54, %p55
      %p57 = scmp.ne.s32.totalorder %s43, %s44
      %p58 = scmp.eq.s32.totalorder %s24, 1
      %p59 = por %p57, %p58
      %p61 = scmp.ne.s32.totalorder %s44, %s60
      %p62 = scmp.eq.s32.totalorder %s24, 0
      %p63 = por %p61, %p62
      %s64 = ssub.s32 %s25, %s37
      %p65 = scmp.eq.s32.totalorder %s64, 0
      %s67 = sadd.s32 %s66, 1
      %s68 = scalar_select %p65, %s66, %s67
      %p71 = pneg %p65
      %p72 = scmp.eq.s32.totalorder %s18, 1
      %p73 = por %p71, %p72
      %p74 = scmp.ne.s32.totalorder %s66, %s69
      %p75 = scmp.eq.s32.totalorder %s18, 0
      %p76 = por %p74, %p75
      %p77 = scmp.ne.s32.totalorder %s66, %s69
      %p78 = scmp.eq.s32.totalorder %s23, 1
      %p79 = por %p77, %p78
      %p80 = scmp.ne.s32.totalorder %s69, %s70
      %p81 = scmp.eq.s32.totalorder %s23, 0
      %p82 = por %p80, %p81
      %p83 = scmp.ne.s32.totalorder %s69, %s70
      %p84 = scmp.eq.s32.totalorder %s24, 1
      %p85 = por %p83, %p84
      %p87 = scmp.ne.s32.totalorder %s70, %s86
      %p88 = scmp.eq.s32.totalorder %s24, 0
      %p89 = por %p87, %p88
      %s90 = ssub.s32 %s26, %s33
      %p91 = scmp.eq.s32.totalorder %s90, 0
      %s93 = sadd.s32 %s92, 1
      %s94 = scalar_select %p91, %s92, %s93
      %p97 = pneg %p91
      %p98 = scmp.eq.s32.totalorder %s18, 1
      %p99 = por %p97, %p98
      %p100 = scmp.ne.s32.totalorder %s92, %s95
      %p101 = scmp.eq.s32.totalorder %s18, 0
      %p102 = por %p100, %p101
      %p103 = scmp.ne.s32.totalorder %s92, %s95
      %p104 = scmp.eq.s32.totalorder %s23, 1
      %p105 = por %p103, %p104
      %p106 = scmp.ne.s32.totalorder %s95, %s96
      %p107 = scmp.eq.s32.totalorder %s23, 0
      %p108 = por %p106, %p107
      %p109 = scmp.ne.s32.totalorder %s95, %s96
      %p110 = scmp.eq.s32.totalorder %s24, 1
      %p111 = por %p109, %p110
      %p113 = scmp.ne.s32.totalorder %s96, %s112
      %p114 = scmp.eq.s32.totalorder %s24, 0
      %p115 = por %p113, %p114
      %s116 = ssub.s32 %s25, %s37
      %p117 = scmp.eq.s32.totalorder %s116, 0
      %s119 = sadd.s32 %s118, 1
      %s120 = scalar_select %p117, %s118, %s119
      %p123 = pneg %p117
      %p124 = scmp.eq.s32.totalorder %s18, 1
      %p125 = por %p123, %p124
      %p126 = scmp.ne.s32.totalorder %s118, %s121
      %p127 = scmp.eq.s32.totalorder %s18, 0
      %p128 = por %p126, %p127
      %p129 = scmp.ne.s32.totalorder %s118, %s121
      %p130 = scmp.eq.s32.totalorder %s23, 1
      %p131 = por %p129, %p130
      %p132 = scmp.ne.s32.totalorder %s121, %s122
      %p133 = scmp.eq.s32.totalorder %s23, 0
      %p134 = por %p132, %p133
      %p135 = scmp.ne.s32.totalorder %s121, %s122
      %p136 = scmp.eq.s32.totalorder %s24, 1
      %p137 = por %p135, %p136
      %p139 = scmp.ne.s32.totalorder %s122, %s138
      %p140 = scmp.eq.s32.totalorder %s24, 0
      %p141 = por %p139, %p140
      %p142 = scmp.le.s32.totalorder 1, %s18
      %p143 = scmp.lt.s32.totalorder %s18, 3
      %p144 = pnand %p142, %p143
      %p145 = pneg %p144
      // Predicated region
      $region9: #{tpu_custom_call.1} parent=5 // pred_check
        _
      $region10: #{tpu_custom_call.1} parent=5 // pred_check_branch
        %147 = sbr.rel (%p144) target = $region12
      $region11: #{tpu_custom_call.1} parent=5 // pred_region
        %s148 = ssub.s32 %s18, 1
        // Predicated region
        $region13: #{tpu_custom_call.1} parent=11 // pred_check
          %p149 = pneg %p108
        $region14: #{tpu_custom_call.1} parent=11 // pred_check_branch
          %151 = sbr.rel (%p149) target = $region16
        $region15: #{tpu_custom_call.1} parent=11 // pred_region
          %s152 = smul.u32 2, %s28
          %s154 = ssub.s32 128, 128
          %155 = vsyncadd [#allocation6], %s154
          %s156 = smul.addr %s152, 64
          %s157 = scalar_lea.hbm %s2, %s156
          %s159 = sshll.u32 [#allocation7], 4
          %s160 = int_to_ptr.vmem [resolvable:$true] %s159
          %162 = dma.hbm_to_vmem [thread:$0]  %s157, 128, %s160, [#allocation6]
        $region16: #{tpu_custom_call.1} parent=11 // pred_fallthru
          _
      $region12: #{tpu_custom_call.1} parent=5 // pred_fallthru
        _
      %p163 = scmp.lt.s32.totalorder %s18, 2
      // Predicated region
      $region17: #{tpu_custom_call.1} parent=5 // pred_check
        %p164 = pneg %p163
      $region18: #{tpu_custom_call.1} parent=5 // pred_check_branch
        %166 = sbr.rel (%p164) target = $region20
      $region19: #{tpu_custom_call.1} parent=5 // pred_region
        // Predicated region
        $region21: #{tpu_custom_call.1} parent=19 // pred_check
          %p167 = pneg %p50
        $region22: #{tpu_custom_call.1} parent=19 // pred_check_branch
          %169 = sbr.rel (%p167) target = $region24
        $region23: #{tpu_custom_call.1} parent=19 // pred_region
          %s170 = sand.u32 %s40, 1
          %s171 = scalar_lea.sflag [#allocation3], %s170
          %s172 = sand.u32 %s40, 1
          %s173 = smul.addr %s172, 40
          %s174 = scalar_lea.vmem [#allocation2], %s173
          %s176 = ssub.s32 640, 640
          %177 = vsyncadd %s171, %s176
          %s178 = smul.addr %s25, 5
          %s179 = smul.addr %s178, 128
          %s180 = scalar_lea.hbm %s0, %s179
          %s181 = sshll.u32 %s174, 4
          %s182 = int_to_ptr.vmem [resolvable:$true] %s181
          %187 = dma.hbm_to_vmem [thread:$0]  %s180, 640, %s182, %s171, 128, 128, 8
        $region24: #{tpu_custom_call.1} parent=19 // pred_fallthru
          _
        // Predicated region
        $region25: #{tpu_custom_call.1} parent=19 // pred_check
          %p188 = pneg %p76
        $region26: #{tpu_custom_call.1} parent=19 // pred_check_branch
          %190 = sbr.rel (%p188) target = $region28
        $region27: #{tpu_custom_call.1} parent=19 // pred_region
          %s191 = sand.u32 %s18, 1
          %s192 = scalar_lea.sflag [#allocation6], %s191
          %s193 = sand.u32 %s66, 1
          %s194 = smul.addr %s193, 160
          %s195 = scalar_lea.vmem [#allocation5], %s194
          %s197 = ssub.s32 2560, 2560
          %198 = vsyncadd %s192, %s197
          %s199 = smul.addr %s25, 20
          %s200 = smul.addr %s199, 128
          %s201 = scalar_lea.hbm %s1, %s200
          %s202 = sshll.u32 %s195, 4
          %s203 = int_to_ptr.vmem [resolvable:$true] %s202
          %208 = dma.hbm_to_vmem [thread:$0]  %s201, 2560, %s203, %s192, 128, 128, 8
        $region28: #{tpu_custom_call.1} parent=19 // pred_fallthru
          _
      $region20: #{tpu_custom_call.1} parent=5 // pred_fallthru
        _
      %p209 = scmp.le.s32.totalorder 1, %s18
      %p210 = scmp.lt.s32.totalorder %s18, 3
      %p211 = pnand %p209, %p210
      %p212 = pneg %p211
      // Predicated region
      $region29: #{tpu_custom_call.1} parent=5 // pred_check
        _
      $region30: #{tpu_custom_call.1} parent=5 // pred_check_branch
        %214 = sbr.rel (%p211) target = $region32
      $region31: #{tpu_custom_call.1} parent=5 // pred_region
        %s215 = ssub.s32 %s18, 1
        %s216 = sand.u32 %s43, 1
        %s217 = scalar_lea.sflag [#allocation3], %s216
        %s218 = sand.u32 %s43, 1
        %s219 = smul.addr %s218, 40
        %s220 = scalar_lea.vmem [#allocation2], %s219
        // Predicated region
        $region33: #{tpu_custom_call.1} parent=31 // pred_check
          %p221 = pneg %p56
        $region34: #{tpu_custom_call.1} parent=31 // pred_check_branch
          %223 = sbr.rel (%p221) target = $region36
        $region35: #{tpu_custom_call.1} parent=31 // pred_region
          %224 = dma.done %s217, 640
        $region36: #{tpu_custom_call.1} parent=31 // pred_fallthru
          _
        %s225 = sand.u32 %s23, 1
        %s226 = scalar_lea.sflag [#allocation6], %s225
        %s227 = sand.u32 %s69, 1
        %s228 = smul.addr %s227, 160
        %s229 = scalar_lea.vmem [#allocation5], %s228
        // Predicated region
        $region37: #{tpu_custom_call.1} parent=31 // pred_check
          %p230 = pneg %p82
        $region38: #{tpu_custom_call.1} parent=31 // pred_check_branch
          %232 = sbr.rel (%p230) target = $region40
        $region39: #{tpu_custom_call.1} parent=31 // pred_region
          %233 = dma.done %s226, 2560
        $region40: #{tpu_custom_call.1} parent=31 // pred_fallthru
          _
        // Predicated region
        $region41: #{tpu_custom_call.1} parent=31 // pred_check
          %p234 = pneg %p108
        $region42: #{tpu_custom_call.1} parent=31 // pred_check_branch
          %236 = sbr.rel (%p234) target = $region44
        $region43: #{tpu_custom_call.1} parent=31 // pred_region
          %237 = dma.done [#allocation6], 128
        $region44: #{tpu_custom_call.1} parent=31 // pred_fallthru
          _
        %s238 = sand.u32 %s43, 1
        %s239 = scalar_lea.sflag [#allocation3], %s238
        %s240 = sand.u32 %s43, 1
        %s241 = smul.addr %s240, 40
        %s242 = scalar_lea.vmem [#allocation2], %s241
        %p243 = pneg %p56
        %p244 = pneg %p53
        %s245 = sand.u32 %s23, 1
        %s246 = scalar_lea.sflag [#allocation6], %s245
        %s247 = sand.u32 %s69, 1
        %s248 = smul.addr %s247, 160
        %s249 = scalar_lea.vmem [#allocation5], %s248
        %p250 = pneg %p82
        %p251 = pneg %p79
        %p252 = pneg %p108
        %p253 = pneg %p105
        %p254 = pneg %p134
        %p255 = pneg %p131
        %s256 = sand.u32 %s121, 1
        %s257 = scalar_lea.sflag [#allocation4], %s256
        %s258 = sand.u32 %s121, 1
        %s259 = smul.addr %s258, 8
        %s260 = scalar_lea.vmem [#allocation8], %s259
        %s261 = smul.u32 2, %s28
        %v263 = vlaneseq
        %v264 = vshrl.u32 %v263, 7
        %v265 = vadd.s32 %v264, 8
        %v266 = vadd.s32 %v264, 16
        %v267 = vadd.s32 %v264, 24
        %v268 = vadd.s32 %v264, 32
        %v269 = vadd.s32 %v264, 40
        %v270 = vadd.s32 %v264, 48
        %v271 = vadd.s32 %v264, 56
        %v272 = vadd.s32 %v264, 64
        %v273 = vadd.s32 %v264, 72
        %v274 = vadd.s32 %v264, 80
        %v275 = vadd.s32 %v264, 88
        %v276 = vadd.s32 %v264, 96
        %v277 = vadd.s32 %v264, 104
        %v278 = vadd.s32 %v264, 112
        %v279 = vadd.s32 %v264, 120
        %v280 = vadd.s32 %v264, 128
        %v281 = vadd.s32 %v264, 136
        %v282 = vadd.s32 %v264, 144
        %v283 = vadd.s32 %v264, 152
        %v284 = vadd.s32 %v264, 160
        %v285 = vadd.s32 %v264, 168
        %v286 = vadd.s32 %v264, 176
        %v287 = vadd.s32 %v264, 184
        %v288 = vadd.s32 %v264, 192
        %v289 = vadd.s32 %v264, 200
        %v290 = vadd.s32 %v264, 208
        %v291 = vadd.s32 %v264, 216
        %v292 = vadd.s32 %v264, 224
        %v293 = vadd.s32 %v264, 232
        %v294 = vadd.s32 %v264, 240
        %v295 = vadd.s32 %v264, 248
        %s296 = smul.u32 %s28, 256
        %v297 = vstv %s296
        %v298 = vadd.s32 %v264, %v297
        %v299 = vadd.s32 %v265, %v297
        %v300 = vadd.s32 %v266, %v297
        %v301 = vadd.s32 %v267, %v297
        %v302 = vadd.s32 %v268, %v297
        %v303 = vadd.s32 %v269, %v297
        %v304 = vadd.s32 %v270, %v297
        %v305 = vadd.s32 %v271, %v297
        %v306 = vadd.s32 %v272, %v297
        %v307 = vadd.s32 %v273, %v297
        %v308 = vadd.s32 %v274, %v297
        %v309 = vadd.s32 %v275, %v297
        %v310 = vadd.s32 %v276, %v297
        %v311 = vadd.s32 %v277, %v297
        %v312 = vadd.s32 %v278, %v297
        %v313 = vadd.s32 %v279, %v297
        %v314 = vadd.s32 %v280, %v297
        %v315 = vadd.s32 %v281, %v297
        %v316 = vadd.s32 %v282, %v297
        %v317 = vadd.s32 %v283, %v297
        %v318 = vadd.s32 %v284, %v297
        %v319 = vadd.s32 %v285, %v297
        %v320 = vadd.s32 %v286, %v297
        %v321 = vadd.s32 %v287, %v297
        %v322 = vadd.s32 %v288, %v297
        %v323 = vadd.s32 %v289, %v297
        %v324 = vadd.s32 %v290, %v297
        %v325 = vadd.s32 %v291, %v297
        %v326 = vadd.s32 %v292, %v297
        %v327 = vadd.s32 %v293, %v297
        %v328 = vadd.s32 %v294, %v297
        %v329 = vadd.s32 %v295, %v297
        loop: start=0, step=1, limit=5
        $region45: #{tpu_custom_call.1} parent=31 // loop_pre_header
          _
        $region46: #{tpu_custom_call.1} parent=31 // loop_header
          %s331 = sphi 0, %s335
          %p332 = scmp.ge.s32.totalorder %s331, 5
          %v336 = vphi 0.0, %v3676
          %v337 = vphi 0.0, %v3677
          %v338 = vphi 0.0, %v3678
          %v339 = vphi 0.0, %v3679
          %v340 = vphi 0.0, %v3680
          %v341 = vphi 0.0, %v3681
          %v342 = vphi 0.0, %v3682
          %v343 = vphi 0.0, %v3683
          %v344 = vphi 0.0, %v3684
          %v345 = vphi 0.0, %v3685
          %v346 = vphi 0.0, %v3686
          %v347 = vphi 0.0, %v3687
          %v348 = vphi 0.0, %v3688
          %v349 = vphi 0.0, %v3689
          %v350 = vphi 0.0, %v3690
          %v351 = vphi 0.0, %v3691
          %v352 = vphi 0.0, %v3692
          %v353 = vphi 0.0, %v3693
          %v354 = vphi 0.0, %v3694
          %v355 = vphi 0.0, %v3695
          %v356 = vphi 0.0, %v3696
          %v357 = vphi 0.0, %v3697
          %v358 = vphi 0.0, %v3698
          %v359 = vphi 0.0, %v3699
          %v360 = vphi 0.0, %v3700
          %v361 = vphi 0.0, %v3701
          %v362 = vphi 0.0, %v3702
          %v363 = vphi 0.0, %v3703
          %v364 = vphi 0.0, %v3704
          %v365 = vphi 0.0, %v3705
          %v366 = vphi 0.0, %v3706
          %v367 = vphi 0.0, %v3707
        $region47: #{tpu_custom_call.1} parent=31 // loop_header_branch
          %334 = sbr.rel (%p332) target = $region51
        $region48: #{tpu_custom_call.1} parent=31 // loop_body
          %s368 = smul.u32 %s331, 8
          %s369 = scalar_lea.vmem %s220, %s368 [#allocation2]
          %v370 = vld [vmem:[%s369] sm:$0xff]
          %s371 = smul.u32 %s331, 32
          %s372 = scalar_lea.vmem %s229, %s371 [#allocation5]
          %v373 = vld [vmem:[%s372] sm:$0xff]
          %v374 = vld [vmem:[%s372 + $0x8] sm:$0xff]
          %v375 = vld [vmem:[%s372 + $0x10] sm:$0xff]
          %v376 = vld [vmem:[%s372 + $0x18] sm:$0xff]
          %v377 = vlaneseq
          %v378 = vshrl.u32 %v377, 7
          %v379 = vsub.s32 0, %v378
          %v380 = vrot.slane %v370, %v379
          %vm381 = vcmp.eq.s32.totalorder %v298, %v380
          %vm382 = vcmp.eq.s32.totalorder %v299, %v380
          %vm383 = vcmp.eq.s32.totalorder %v300, %v380
          %vm384 = vcmp.eq.s32.totalorder %v301, %v380
          %vm385 = vcmp.eq.s32.totalorder %v302, %v380
          %vm386 = vcmp.eq.s32.totalorder %v303, %v380
          %vm387 = vcmp.eq.s32.totalorder %v304, %v380
          %vm388 = vcmp.eq.s32.totalorder %v305, %v380
          %vm389 = vcmp.eq.s32.totalorder %v306, %v380
          %vm390 = vcmp.eq.s32.totalorder %v307, %v380
          %vm391 = vcmp.eq.s32.totalorder %v308, %v380
          %vm392 = vcmp.eq.s32.totalorder %v309, %v380
          %vm393 = vcmp.eq.s32.totalorder %v310, %v380
          %vm394 = vcmp.eq.s32.totalorder %v311, %v380
          %vm395 = vcmp.eq.s32.totalorder %v312, %v380
          %vm396 = vcmp.eq.s32.totalorder %v313, %v380
          %vm397 = vcmp.eq.s32.totalorder %v314, %v380
          %vm398 = vcmp.eq.s32.totalorder %v315, %v380
          %vm399 = vcmp.eq.s32.totalorder %v316, %v380
          %vm400 = vcmp.eq.s32.totalorder %v317, %v380
          %vm401 = vcmp.eq.s32.totalorder %v318, %v380
          %vm402 = vcmp.eq.s32.totalorder %v319, %v380
          %vm403 = vcmp.eq.s32.totalorder %v320, %v380
          %vm404 = vcmp.eq.s32.totalorder %v321, %v380
          %vm405 = vcmp.eq.s32.totalorder %v322, %v380
          %vm406 = vcmp.eq.s32.totalorder %v323, %v380
          %vm407 = vcmp.eq.s32.totalorder %v324, %v380
          %vm408 = vcmp.eq.s32.totalorder %v325, %v380
          %vm409 = vcmp.eq.s32.totalorder %v326, %v380
          %vm410 = vcmp.eq.s32.totalorder %v327, %v380
          %vm411 = vcmp.eq.s32.totalorder %v328, %v380
          %vm412 = vcmp.eq.s32.totalorder %v329, %v380
          %v413 = vlaneseq
          %v414 = vshrl.u32 %v413, 7
          %v415 = vsub.s32 0, %v414
          %v416 = vrot.slane %v373, %v415
          %v417 = vsel %vm381, %v416, 0.0
          %v418 = vsel %vm382, %v416, 0.0
          %v419 = vsel %vm383, %v416, 0.0
          %v420 = vsel %vm384, %v416, 0.0
          %v421 = vsel %vm385, %v416, 0.0
          %v422 = vsel %vm386, %v416, 0.0
          %v423 = vsel %vm387, %v416, 0.0
          %v424 = vsel %vm388, %v416, 0.0
          %v425 = vsel %vm389, %v416, 0.0
          %v426 = vsel %vm390, %v416, 0.0
          %v427 = vsel %vm391, %v416, 0.0
          %v428 = vsel %vm392, %v416, 0.0
          %v429 = vsel %vm393, %v416, 0.0
          %v430 = vsel %vm394, %v416, 0.0
          %v431 = vsel %vm395, %v416, 0.0
          %v432 = vsel %vm396, %v416, 0.0
          %v433 = vsel %vm397, %v416, 0.0
          %v434 = vsel %vm398, %v416, 0.0
          %v435 = vsel %vm399, %v416, 0.0
          %v436 = vsel %vm400, %v416, 0.0
          %v437 = vsel %vm401, %v416, 0.0
          %v438 = vsel %vm402, %v416, 0.0
          %v439 = vsel %vm403, %v416, 0.0
          %v440 = vsel %vm404, %v416, 0.0
          %v441 = vsel %vm405, %v416, 0.0
          %v442 = vsel %vm406, %v416, 0.0
          %v443 = vsel %vm407, %v416, 0.0
          %v444 = vsel %vm408, %v416, 0.0
          %v445 = vsel %vm409, %v416, 0.0
          %v446 = vsel %vm410, %v416, 0.0
          %v447 = vsel %vm411, %v416, 0.0
          %v448 = vsel %vm412, %v416, 0.0
          %v449 = vadd.s32 %v370, 1
          %v450 = vlaneseq
          %v451 = vshrl.u32 %v450, 7
          %v452 = vsub.s32 0, %v451
          %v453 = vrot.slane %v449, %v452
          %vm454 = vcmp.eq.s32.totalorder %v298, %v453
          %vm455 = vcmp.eq.s32.totalorder %v299, %v453
          %vm456 = vcmp.eq.s32.totalorder %v300, %v453
          %vm457 = vcmp.eq.s32.totalorder %v301, %v453
          %vm458 = vcmp.eq.s32.totalorder %v302, %v453
          %vm459 = vcmp.eq.s32.totalorder %v303, %v453
          %vm460 = vcmp.eq.s32.totalorder %v304, %v453
          %vm461 = vcmp.eq.s32.totalorder %v305, %v453
          %vm462 = vcmp.eq.s32.totalorder %v306, %v453
          %vm463 = vcmp.eq.s32.totalorder %v307, %v453
          %vm464 = vcmp.eq.s32.totalorder %v308, %v453
          %vm465 = vcmp.eq.s32.totalorder %v309, %v453
          %vm466 = vcmp.eq.s32.totalorder %v310, %v453
          %vm467 = vcmp.eq.s32.totalorder %v311, %v453
          %vm468 = vcmp.eq.s32.totalorder %v312, %v453
          %vm469 = vcmp.eq.s32.totalorder %v313, %v453
          %vm470 = vcmp.eq.s32.totalorder %v314, %v453
          %vm471 = vcmp.eq.s32.totalorder %v315, %v453
          %vm472 = vcmp.eq.s32.totalorder %v316, %v453
          %vm473 = vcmp.eq.s32.totalorder %v317, %v453
          %vm474 = vcmp.eq.s32.totalorder %v318, %v453
          %vm475 = vcmp.eq.s32.totalorder %v319, %v453
          %vm476 = vcmp.eq.s32.totalorder %v320, %v453
          %vm477 = vcmp.eq.s32.totalorder %v321, %v453
          %vm478 = vcmp.eq.s32.totalorder %v322, %v453
          %vm479 = vcmp.eq.s32.totalorder %v323, %v453
          %vm480 = vcmp.eq.s32.totalorder %v324, %v453
          %vm481 = vcmp.eq.s32.totalorder %v325, %v453
          %vm482 = vcmp.eq.s32.totalorder %v326, %v453
          %vm483 = vcmp.eq.s32.totalorder %v327, %v453
          %vm484 = vcmp.eq.s32.totalorder %v328, %v453
          %vm485 = vcmp.eq.s32.totalorder %v329, %v453
          %v486 = vlaneseq
          %v487 = vshrl.u32 %v486, 7
          %v488 = vsub.s32 1, %v487
          %v489 = vrot.slane %v373, %v488
          %v490 = vsel %vm454, %v489, 0.0
          %v491 = vsel %vm455, %v489, 0.0
          %v492 = vsel %vm456, %v489, 0.0
          %v493 = vsel %vm457, %v489, 0.0
          %v494 = vsel %vm458, %v489, 0.0
          %v495 = vsel %vm459, %v489, 0.0
          %v496 = vsel %vm460, %v489, 0.0
          %v497 = vsel %vm461, %v489, 0.0
          %v498 = vsel %vm462, %v489, 0.0
          %v499 = vsel %vm463, %v489, 0.0
          %v500 = vsel %vm464, %v489, 0.0
          %v501 = vsel %vm465, %v489, 0.0
          %v502 = vsel %vm466, %v489, 0.0
          %v503 = vsel %vm467, %v489, 0.0
          %v504 = vsel %vm468, %v489, 0.0
          %v505 = vsel %vm469, %v489, 0.0
          %v506 = vsel %vm470, %v489, 0.0
          %v507 = vsel %vm471, %v489, 0.0
          %v508 = vsel %vm472, %v489, 0.0
          %v509 = vsel %vm473, %v489, 0.0
          %v510 = vsel %vm474, %v489, 0.0
          %v511 = vsel %vm475, %v489, 0.0
          %v512 = vsel %vm476, %v489, 0.0
          %v513 = vsel %vm477, %v489, 0.0
          %v514 = vsel %vm478, %v489, 0.0
          %v515 = vsel %vm479, %v489, 0.0
          %v516 = vsel %vm480, %v489, 0.0
          %v517 = vsel %vm481, %v489, 0.0
          %v518 = vsel %vm482, %v489, 0.0
          %v519 = vsel %vm483, %v489, 0.0
          %v520 = vsel %vm484, %v489, 0.0
          %v521 = vsel %vm485, %v489, 0.0
          %v522 = vadd.f32 %v417, %v490
          %v523 = vadd.f32 %v418, %v491
          %v524 = vadd.f32 %v419, %v492
          %v525 = vadd.f32 %v420, %v493
          %v526 = vadd.f32 %v421, %v494
          %v527 = vadd.f32 %v422, %v495
          %v528 = vadd.f32 %v423, %v496
          %v529 = vadd.f32 %v424, %v497
          %v530 = vadd.f32 %v425, %v498
          %v531 = vadd.f32 %v426, %v499
          %v532 = vadd.f32 %v427, %v500
          %v533 = vadd.f32 %v428, %v501
          %v534 = vadd.f32 %v429, %v502
          %v535 = vadd.f32 %v430, %v503
          %v536 = vadd.f32 %v431, %v504
          %v537 = vadd.f32 %v432, %v505
          %v538 = vadd.f32 %v433, %v506
          %v539 = vadd.f32 %v434, %v507
          %v540 = vadd.f32 %v435, %v508
          %v541 = vadd.f32 %v436, %v509
          %v542 = vadd.f32 %v437, %v510
          %v543 = vadd.f32 %v438, %v511
          %v544 = vadd.f32 %v439, %v512
          %v545 = vadd.f32 %v440, %v513
          %v546 = vadd.f32 %v441, %v514
          %v547 = vadd.f32 %v442, %v515
          %v548 = vadd.f32 %v443, %v516
          %v549 = vadd.f32 %v444, %v517
          %v550 = vadd.f32 %v445, %v518
          %v551 = vadd.f32 %v446, %v519
          %v552 = vadd.f32 %v447, %v520
          %v553 = vadd.f32 %v448, %v521
          %v554 = vadd.s32 %v370, 16
          %v555 = vlaneseq
          %v556 = vshrl.u32 %v555, 7
          %v557 = vsub.s32 0, %v556
          %v558 = vrot.slane %v554, %v557
          %vm559 = vcmp.eq.s32.totalorder %v298, %v558
          %vm560 = vcmp.eq.s32.totalorder %v299, %v558
          %vm561 = vcmp.eq.s32.totalorder %v300, %v558
          %vm562 = vcmp.eq.s32.totalorder %v301, %v558
          %vm563 = vcmp.eq.s32.totalorder %v302, %v558
          %vm564 = vcmp.eq.s32.totalorder %v303, %v558
          %vm565 = vcmp.eq.s32.totalorder %v304, %v558
          %vm566 = vcmp.eq.s32.totalorder %v305, %v558
          %vm567 = vcmp.eq.s32.totalorder %v306, %v558
          %vm568 = vcmp.eq.s32.totalorder %v307, %v558
          %vm569 = vcmp.eq.s32.totalorder %v308, %v558
          %vm570 = vcmp.eq.s32.totalorder %v309, %v558
          %vm571 = vcmp.eq.s32.totalorder %v310, %v558
          %vm572 = vcmp.eq.s32.totalorder %v311, %v558
          %vm573 = vcmp.eq.s32.totalorder %v312, %v558
          %vm574 = vcmp.eq.s32.totalorder %v313, %v558
          %vm575 = vcmp.eq.s32.totalorder %v314, %v558
          %vm576 = vcmp.eq.s32.totalorder %v315, %v558
          %vm577 = vcmp.eq.s32.totalorder %v316, %v558
          %vm578 = vcmp.eq.s32.totalorder %v317, %v558
          %vm579 = vcmp.eq.s32.totalorder %v318, %v558
          %vm580 = vcmp.eq.s32.totalorder %v319, %v558
          %vm581 = vcmp.eq.s32.totalorder %v320, %v558
          %vm582 = vcmp.eq.s32.totalorder %v321, %v558
          %vm583 = vcmp.eq.s32.totalorder %v322, %v558
          %vm584 = vcmp.eq.s32.totalorder %v323, %v558
          %vm585 = vcmp.eq.s32.totalorder %v324, %v558
          %vm586 = vcmp.eq.s32.totalorder %v325, %v558
          %vm587 = vcmp.eq.s32.totalorder %v326, %v558
          %vm588 = vcmp.eq.s32.totalorder %v327, %v558
          %vm589 = vcmp.eq.s32.totalorder %v328, %v558
          %vm590 = vcmp.eq.s32.totalorder %v329, %v558
          %v591 = vlaneseq
          %v592 = vshrl.u32 %v591, 7
          %v593 = vsub.s32 2, %v592
          %v594 = vrot.slane %v373, %v593
          %v595 = vsel %vm559, %v594, 0.0
          %v596 = vsel %vm560, %v594, 0.0
          %v597 = vsel %vm561, %v594, 0.0
          %v598 = vsel %vm562, %v594, 0.0
          %v599 = vsel %vm563, %v594, 0.0
          %v600 = vsel %vm564, %v594, 0.0
          %v601 = vsel %vm565, %v594, 0.0
          %v602 = vsel %vm566, %v594, 0.0
          %v603 = vsel %vm567, %v594, 0.0
          %v604 = vsel %vm568, %v594, 0.0
          %v605 = vsel %vm569, %v594, 0.0
          %v606 = vsel %vm570, %v594, 0.0
          %v607 = vsel %vm571, %v594, 0.0
          %v608 = vsel %vm572, %v594, 0.0
          %v609 = vsel %vm573, %v594, 0.0
          %v610 = vsel %vm574, %v594, 0.0
          %v611 = vsel %vm575, %v594, 0.0
          %v612 = vsel %vm576, %v594, 0.0
          %v613 = vsel %vm577, %v594, 0.0
          %v614 = vsel %vm578, %v594, 0.0
          %v615 = vsel %vm579, %v594, 0.0
          %v616 = vsel %vm580, %v594, 0.0
          %v617 = vsel %vm581, %v594, 0.0
          %v618 = vsel %vm582, %v594, 0.0
          %v619 = vsel %vm583, %v594, 0.0
          %v620 = vsel %vm584, %v594, 0.0
          %v621 = vsel %vm585, %v594, 0.0
          %v622 = vsel %vm586, %v594, 0.0
          %v623 = vsel %vm587, %v594, 0.0
          %v624 = vsel %vm588, %v594, 0.0
          %v625 = vsel %vm589, %v594, 0.0
          %v626 = vsel %vm590, %v594, 0.0
          %v627 = vadd.f32 %v522, %v595
          %v628 = vadd.f32 %v523, %v596
          %v629 = vadd.f32 %v524, %v597
          %v630 = vadd.f32 %v525, %v598
          %v631 = vadd.f32 %v526, %v599
          %v632 = vadd.f32 %v527, %v600
          %v633 = vadd.f32 %v528, %v601
          %v634 = vadd.f32 %v529, %v602
          %v635 = vadd.f32 %v530, %v603
          %v636 = vadd.f32 %v531, %v604
          %v637 = vadd.f32 %v532, %v605
          %v638 = vadd.f32 %v533, %v606
          %v639 = vadd.f32 %v534, %v607
          %v640 = vadd.f32 %v535, %v608
          %v641 = vadd.f32 %v536, %v609
          %v642 = vadd.f32 %v537, %v610
          %v643 = vadd.f32 %v538, %v611
          %v644 = vadd.f32 %v539, %v612
          %v645 = vadd.f32 %v540, %v613
          %v646 = vadd.f32 %v541, %v614
          %v647 = vadd.f32 %v542, %v615
          %v648 = vadd.f32 %v543, %v616
          %v649 = vadd.f32 %v544, %v617
          %v650 = vadd.f32 %v545, %v618
          %v651 = vadd.f32 %v546, %v619
          %v652 = vadd.f32 %v547, %v620
          %v653 = vadd.f32 %v548, %v621
          %v654 = vadd.f32 %v549, %v622
          %v655 = vadd.f32 %v550, %v623
          %v656 = vadd.f32 %v551, %v624
          %v657 = vadd.f32 %v552, %v625
          %v658 = vadd.f32 %v553, %v626
          %v659 = vadd.s32 %v370, 17
          %v660 = vlaneseq
          %v661 = vshrl.u32 %v660, 7
          %v662 = vsub.s32 0, %v661
          %v663 = vrot.slane %v659, %v662
          %vm664 = vcmp.eq.s32.totalorder %v298, %v663
          %vm665 = vcmp.eq.s32.totalorder %v299, %v663
          %vm666 = vcmp.eq.s32.totalorder %v300, %v663
          %vm667 = vcmp.eq.s32.totalorder %v301, %v663
          %vm668 = vcmp.eq.s32.totalorder %v302, %v663
          %vm669 = vcmp.eq.s32.totalorder %v303, %v663
          %vm670 = vcmp.eq.s32.totalorder %v304, %v663
          %vm671 = vcmp.eq.s32.totalorder %v305, %v663
          %vm672 = vcmp.eq.s32.totalorder %v306, %v663
          %vm673 = vcmp.eq.s32.totalorder %v307, %v663
          %vm674 = vcmp.eq.s32.totalorder %v308, %v663
          %vm675 = vcmp.eq.s32.totalorder %v309, %v663
          %vm676 = vcmp.eq.s32.totalorder %v310, %v663
          %vm677 = vcmp.eq.s32.totalorder %v311, %v663
          %vm678 = vcmp.eq.s32.totalorder %v312, %v663
          %vm679 = vcmp.eq.s32.totalorder %v313, %v663
          %vm680 = vcmp.eq.s32.totalorder %v314, %v663
          %vm681 = vcmp.eq.s32.totalorder %v315, %v663
          %vm682 = vcmp.eq.s32.totalorder %v316, %v663
          %vm683 = vcmp.eq.s32.totalorder %v317, %v663
          %vm684 = vcmp.eq.s32.totalorder %v318, %v663
          %vm685 = vcmp.eq.s32.totalorder %v319, %v663
          %vm686 = vcmp.eq.s32.totalorder %v320, %v663
          %vm687 = vcmp.eq.s32.totalorder %v321, %v663
          %vm688 = vcmp.eq.s32.totalorder %v322, %v663
          %vm689 = vcmp.eq.s32.totalorder %v323, %v663
          %vm690 = vcmp.eq.s32.totalorder %v324, %v663
          %vm691 = vcmp.eq.s32.totalorder %v325, %v663
          %vm692 = vcmp.eq.s32.totalorder %v326, %v663
          %vm693 = vcmp.eq.s32.totalorder %v327, %v663
          %vm694 = vcmp.eq.s32.totalorder %v328, %v663
          %vm695 = vcmp.eq.s32.totalorder %v329, %v663
          %v696 = vlaneseq
          %v697 = vshrl.u32 %v696, 7
          %v698 = vsub.s32 3, %v697
          %v699 = vrot.slane %v373, %v698
          %v700 = vsel %vm664, %v699, 0.0
          %v701 = vsel %vm665, %v699, 0.0
          %v702 = vsel %vm666, %v699, 0.0
          %v703 = vsel %vm667, %v699, 0.0
          %v704 = vsel %vm668, %v699, 0.0
          %v705 = vsel %vm669, %v699, 0.0
          %v706 = vsel %vm670, %v699, 0.0
          %v707 = vsel %vm671, %v699, 0.0
          %v708 = vsel %vm672, %v699, 0.0
          %v709 = vsel %vm673, %v699, 0.0
          %v710 = vsel %vm674, %v699, 0.0
          %v711 = vsel %vm675, %v699, 0.0
          %v712 = vsel %vm676, %v699, 0.0
          %v713 = vsel %vm677, %v699, 0.0
          %v714 = vsel %vm678, %v699, 0.0
          %v715 = vsel %vm679, %v699, 0.0
          %v716 = vsel %vm680, %v699, 0.0
          %v717 = vsel %vm681, %v699, 0.0
          %v718 = vsel %vm682, %v699, 0.0
          %v719 = vsel %vm683, %v699, 0.0
          %v720 = vsel %vm684, %v699, 0.0
          %v721 = vsel %vm685, %v699, 0.0
          %v722 = vsel %vm686, %v699, 0.0
          %v723 = vsel %vm687, %v699, 0.0
          %v724 = vsel %vm688, %v699, 0.0
          %v725 = vsel %vm689, %v699, 0.0
          %v726 = vsel %vm690, %v699, 0.0
          %v727 = vsel %vm691, %v699, 0.0
          %v728 = vsel %vm692, %v699, 0.0
          %v729 = vsel %vm693, %v699, 0.0
          %v730 = vsel %vm694, %v699, 0.0
          %v731 = vsel %vm695, %v699, 0.0
          %v732 = vadd.f32 %v627, %v700
          %v733 = vadd.f32 %v628, %v701
          %v734 = vadd.f32 %v629, %v702
          %v735 = vadd.f32 %v630, %v703
          %v736 = vadd.f32 %v631, %v704
          %v737 = vadd.f32 %v632, %v705
          %v738 = vadd.f32 %v633, %v706
          %v739 = vadd.f32 %v634, %v707
          %v740 = vadd.f32 %v635, %v708
          %v741 = vadd.f32 %v636, %v709
          %v742 = vadd.f32 %v637, %v710
          %v743 = vadd.f32 %v638, %v711
          %v744 = vadd.f32 %v639, %v712
          %v745 = vadd.f32 %v640, %v713
          %v746 = vadd.f32 %v641, %v714
          %v747 = vadd.f32 %v642, %v715
          %v748 = vadd.f32 %v643, %v716
          %v749 = vadd.f32 %v644, %v717
          %v750 = vadd.f32 %v645, %v718
          %v751 = vadd.f32 %v646, %v719
          %v752 = vadd.f32 %v647, %v720
          %v753 = vadd.f32 %v648, %v721
          %v754 = vadd.f32 %v649, %v722
          %v755 = vadd.f32 %v650, %v723
          %v756 = vadd.f32 %v651, %v724
          %v757 = vadd.f32 %v652, %v725
          %v758 = vadd.f32 %v653, %v726
          %v759 = vadd.f32 %v654, %v727
          %v760 = vadd.f32 %v655, %v728
          %v761 = vadd.f32 %v656, %v729
          %v762 = vadd.f32 %v657, %v730
          %v763 = vadd.f32 %v658, %v731
          %v764 = vadd.f32 %v336, %v732
          %v765 = vadd.f32 %v337, %v733
          %v766 = vadd.f32 %v338, %v734
          %v767 = vadd.f32 %v339, %v735
          %v768 = vadd.f32 %v340, %v736
          %v769 = vadd.f32 %v341, %v737
          %v770 = vadd.f32 %v342, %v738
          %v771 = vadd.f32 %v343, %v739
          %v772 = vadd.f32 %v344, %v740
          %v773 = vadd.f32 %v345, %v741
          %v774 = vadd.f32 %v346, %v742
          %v775 = vadd.f32 %v347, %v743
          %v776 = vadd.f32 %v348, %v744
          %v777 = vadd.f32 %v349, %v745
          %v778 = vadd.f32 %v350, %v746
          %v779 = vadd.f32 %v351, %v747
          %v780 = vadd.f32 %v352, %v748
          %v781 = vadd.f32 %v353, %v749
          %v782 = vadd.f32 %v354, %v750
          %v783 = vadd.f32 %v355, %v751
          %v784 = vadd.f32 %v356, %v752
          %v785 = vadd.f32 %v357, %v753
          %v786 = vadd.f32 %v358, %v754
          %v787 = vadd.f32 %v359, %v755
          %v788 = vadd.f32 %v360, %v756
          %v789 = vadd.f32 %v361, %v757
          %v790 = vadd.f32 %v362, %v758
          %v791 = vadd.f32 %v363, %v759
          %v792 = vadd.f32 %v364, %v760
          %v793 = vadd.f32 %v365, %v761
          %v794 = vadd.f32 %v366, %v762
          %v795 = vadd.f32 %v367, %v763
          %v796 = vlaneseq
          %v797 = vshrl.u32 %v796, 7
          %v798 = vsub.s32 1, %v797
          %v799 = vrot.slane %v370, %v798
          %vm800 = vcmp.eq.s32.totalorder %v298, %v799
          %vm801 = vcmp.eq.s32.totalorder %v299, %v799
          %vm802 = vcmp.eq.s32.totalorder %v300, %v799
          %vm803 = vcmp.eq.s32.totalorder %v301, %v799
          %vm804 = vcmp.eq.s32.totalorder %v302, %v799
          %vm805 = vcmp.eq.s32.totalorder %v303, %v799
          %vm806 = vcmp.eq.s32.totalorder %v304, %v799
          %vm807 = vcmp.eq.s32.totalorder %v305, %v799
          %vm808 = vcmp.eq.s32.totalorder %v306, %v799
          %vm809 = vcmp.eq.s32.totalorder %v307, %v799
          %vm810 = vcmp.eq.s32.totalorder %v308, %v799
          %vm811 = vcmp.eq.s32.totalorder %v309, %v799
          %vm812 = vcmp.eq.s32.totalorder %v310, %v799
          %vm813 = vcmp.eq.s32.totalorder %v311, %v799
          %vm814 = vcmp.eq.s32.totalorder %v312, %v799
          %vm815 = vcmp.eq.s32.totalorder %v313, %v799
          %vm816 = vcmp.eq.s32.totalorder %v314, %v799
          %vm817 = vcmp.eq.s32.totalorder %v315, %v799
          %vm818 = vcmp.eq.s32.totalorder %v316, %v799
          %vm819 = vcmp.eq.s32.totalorder %v317, %v799
          %vm820 = vcmp.eq.s32.totalorder %v318, %v799
          %vm821 = vcmp.eq.s32.totalorder %v319, %v799
          %vm822 = vcmp.eq.s32.totalorder %v320, %v799
          %vm823 = vcmp.eq.s32.totalorder %v321, %v799
          %vm824 = vcmp.eq.s32.totalorder %v322, %v799
          %vm825 = vcmp.eq.s32.totalorder %v323, %v799
          %vm826 = vcmp.eq.s32.totalorder %v324, %v799
          %vm827 = vcmp.eq.s32.totalorder %v325, %v799
          %vm828 = vcmp.eq.s32.totalorder %v326, %v799
          %vm829 = vcmp.eq.s32.totalorder %v327, %v799
          %vm830 = vcmp.eq.s32.totalorder %v328, %v799
          %vm831 = vcmp.eq.s32.totalorder %v329, %v799
          %v832 = vlaneseq
          %v833 = vshrl.u32 %v832, 7
          %v834 = vsub.s32 4, %v833
          %v835 = vrot.slane %v373, %v834
          %v836 = vsel %vm800, %v835, 0.0
          %v837 = vsel %vm801, %v835, 0.0
          %v838 = vsel %vm802, %v835, 0.0
          %v839 = vsel %vm803, %v835, 0.0
          %v840 = vsel %vm804, %v835, 0.0
          %v841 = vsel %vm805, %v835, 0.0
          %v842 = vsel %vm806, %v835, 0.0
          %v843 = vsel %vm807, %v835, 0.0
          %v844 = vsel %vm808, %v835, 0.0
          %v845 = vsel %vm809, %v835, 0.0
          %v846 = vsel %vm810, %v835, 0.0
          %v847 = vsel %vm811, %v835, 0.0
          %v848 = vsel %vm812, %v835, 0.0
          %v849 = vsel %vm813, %v835, 0.0
          %v850 = vsel %vm814, %v835, 0.0
          %v851 = vsel %vm815, %v835, 0.0
          %v852 = vsel %vm816, %v835, 0.0
          %v853 = vsel %vm817, %v835, 0.0
          %v854 = vsel %vm818, %v835, 0.0
          %v855 = vsel %vm819, %v835, 0.0
          %v856 = vsel %vm820, %v835, 0.0
          %v857 = vsel %vm821, %v835, 0.0
          %v858 = vsel %vm822, %v835, 0.0
          %v859 = vsel %vm823, %v835, 0.0
          %v860 = vsel %vm824, %v835, 0.0
          %v861 = vsel %vm825, %v835, 0.0
          %v862 = vsel %vm826, %v835, 0.0
          %v863 = vsel %vm827, %v835, 0.0
          %v864 = vsel %vm828, %v835, 0.0
          %v865 = vsel %vm829, %v835, 0.0
          %v866 = vsel %vm830, %v835, 0.0
          %v867 = vsel %vm831, %v835, 0.0
          %v868 = vlaneseq
          %v869 = vshrl.u32 %v868, 7
          %v870 = vsub.s32 1, %v869
          %v871 = vrot.slane %v449, %v870
          %vm872 = vcmp.eq.s32.totalorder %v298, %v871
          %vm873 = vcmp.eq.s32.totalorder %v299, %v871
          %vm874 = vcmp.eq.s32.totalorder %v300, %v871
          %vm875 = vcmp.eq.s32.totalorder %v301, %v871
          %vm876 = vcmp.eq.s32.totalorder %v302, %v871
          %vm877 = vcmp.eq.s32.totalorder %v303, %v871
          %vm878 = vcmp.eq.s32.totalorder %v304, %v871
          %vm879 = vcmp.eq.s32.totalorder %v305, %v871
          %vm880 = vcmp.eq.s32.totalorder %v306, %v871
          %vm881 = vcmp.eq.s32.totalorder %v307, %v871
          %vm882 = vcmp.eq.s32.totalorder %v308, %v871
          %vm883 = vcmp.eq.s32.totalorder %v309, %v871
          %vm884 = vcmp.eq.s32.totalorder %v310, %v871
          %vm885 = vcmp.eq.s32.totalorder %v311, %v871
          %vm886 = vcmp.eq.s32.totalorder %v312, %v871
          %vm887 = vcmp.eq.s32.totalorder %v313, %v871
          %vm888 = vcmp.eq.s32.totalorder %v314, %v871
          %vm889 = vcmp.eq.s32.totalorder %v315, %v871
          %vm890 = vcmp.eq.s32.totalorder %v316, %v871
          %vm891 = vcmp.eq.s32.totalorder %v317, %v871
          %vm892 = vcmp.eq.s32.totalorder %v318, %v871
          %vm893 = vcmp.eq.s32.totalorder %v319, %v871
          %vm894 = vcmp.eq.s32.totalorder %v320, %v871
          %vm895 = vcmp.eq.s32.totalorder %v321, %v871
          %vm896 = vcmp.eq.s32.totalorder %v322, %v871
          %vm897 = vcmp.eq.s32.totalorder %v323, %v871
          %vm898 = vcmp.eq.s32.totalorder %v324, %v871
          %vm899 = vcmp.eq.s32.totalorder %v325, %v871
          %vm900 = vcmp.eq.s32.totalorder %v326, %v871
          %vm901 = vcmp.eq.s32.totalorder %v327, %v871
          %vm902 = vcmp.eq.s32.totalorder %v328, %v871
          %vm903 = vcmp.eq.s32.totalorder %v329, %v871
          %v904 = vlaneseq
          %v905 = vshrl.u32 %v904, 7
          %v906 = vsub.s32 5, %v905
          %v907 = vrot.slane %v373, %v906
          %v908 = vsel %vm872, %v907, 0.0
          %v909 = vsel %vm873, %v907, 0.0
          %v910 = vsel %vm874, %v907, 0.0
          %v911 = vsel %vm875, %v907, 0.0
          %v912 = vsel %vm876, %v907, 0.0
          %v913 = vsel %vm877, %v907, 0.0
          %v914 = vsel %vm878, %v907, 0.0
          %v915 = vsel %vm879, %v907, 0.0
          %v916 = vsel %vm880, %v907, 0.0
          %v917 = vsel %vm881, %v907, 0.0
          %v918 = vsel %vm882, %v907, 0.0
          %v919 = vsel %vm883, %v907, 0.0
          %v920 = vsel %vm884, %v907, 0.0
          %v921 = vsel %vm885, %v907, 0.0
          %v922 = vsel %vm886, %v907, 0.0
          %v923 = vsel %vm887, %v907, 0.0
          %v924 = vsel %vm888, %v907, 0.0
          %v925 = vsel %vm889, %v907, 0.0
          %v926 = vsel %vm890, %v907, 0.0
          %v927 = vsel %vm891, %v907, 0.0
          %v928 = vsel %vm892, %v907, 0.0
          %v929 = vsel %vm893, %v907, 0.0
          %v930 = vsel %vm894, %v907, 0.0
          %v931 = vsel %vm895, %v907, 0.0
          %v932 = vsel %vm896, %v907, 0.0
          %v933 = vsel %vm897, %v907, 0.0
          %v934 = vsel %vm898, %v907, 0.0
          %v935 = vsel %vm899, %v907, 0.0
          %v936 = vsel %vm900, %v907, 0.0
          %v937 = vsel %vm901, %v907, 0.0
          %v938 = vsel %vm902, %v907, 0.0
          %v939 = vsel %vm903, %v907, 0.0
          %v940 = vadd.f32 %v836, %v908
          %v941 = vadd.f32 %v837, %v909
          %v942 = vadd.f32 %v838, %v910
          %v943 = vadd.f32 %v839, %v911
          %v944 = vadd.f32 %v840, %v912
          %v945 = vadd.f32 %v841, %v913
          %v946 = vadd.f32 %v842, %v914
          %v947 = vadd.f32 %v843, %v915
          %v948 = vadd.f32 %v844, %v916
          %v949 = vadd.f32 %v845, %v917
          %v950 = vadd.f32 %v846, %v918
          %v951 = vadd.f32 %v847, %v919
          %v952 = vadd.f32 %v848, %v920
          %v953 = vadd.f32 %v849, %v921
          %v954 = vadd.f32 %v850, %v922
          %v955 = vadd.f32 %v851, %v923
          %v956 = vadd.f32 %v852, %v924
          %v957 = vadd.f32 %v853, %v925
          %v958 = vadd.f32 %v854, %v926
          %v959 = vadd.f32 %v855, %v927
          %v960 = vadd.f32 %v856, %v928
          %v961 = vadd.f32 %v857, %v929
          %v962 = vadd.f32 %v858, %v930
          %v963 = vadd.f32 %v859, %v931
          %v964 = vadd.f32 %v860, %v932
          %v965 = vadd.f32 %v861, %v933
          %v966 = vadd.f32 %v862, %v934
          %v967 = vadd.f32 %v863, %v935
          %v968 = vadd.f32 %v864, %v936
          %v969 = vadd.f32 %v865, %v937
          %v970 = vadd.f32 %v866, %v938
          %v971 = vadd.f32 %v867, %v939
          %v972 = vlaneseq
          %v973 = vshrl.u32 %v972, 7
          %v974 = vsub.s32 1, %v973
          %v975 = vrot.slane %v554, %v974
          %vm976 = vcmp.eq.s32.totalorder %v298, %v975
          %vm977 = vcmp.eq.s32.totalorder %v299, %v975
          %vm978 = vcmp.eq.s32.totalorder %v300, %v975
          %vm979 = vcmp.eq.s32.totalorder %v301, %v975
          %vm980 = vcmp.eq.s32.totalorder %v302, %v975
          %vm981 = vcmp.eq.s32.totalorder %v303, %v975
          %vm982 = vcmp.eq.s32.totalorder %v304, %v975
          %vm983 = vcmp.eq.s32.totalorder %v305, %v975
          %vm984 = vcmp.eq.s32.totalorder %v306, %v975
          %vm985 = vcmp.eq.s32.totalorder %v307, %v975
          %vm986 = vcmp.eq.s32.totalorder %v308, %v975
          %vm987 = vcmp.eq.s32.totalorder %v309, %v975
          %vm988 = vcmp.eq.s32.totalorder %v310, %v975
          %vm989 = vcmp.eq.s32.totalorder %v311, %v975
          %vm990 = vcmp.eq.s32.totalorder %v312, %v975
          %vm991 = vcmp.eq.s32.totalorder %v313, %v975
          %vm992 = vcmp.eq.s32.totalorder %v314, %v975
          %vm993 = vcmp.eq.s32.totalorder %v315, %v975
          %vm994 = vcmp.eq.s32.totalorder %v316, %v975
          %vm995 = vcmp.eq.s32.totalorder %v317, %v975
          %vm996 = vcmp.eq.s32.totalorder %v318, %v975
          %vm997 = vcmp.eq.s32.totalorder %v319, %v975
          %vm998 = vcmp.eq.s32.totalorder %v320, %v975
          %vm999 = vcmp.eq.s32.totalorder %v321, %v975
          %vm1000 = vcmp.eq.s32.totalorder %v322, %v975
          %vm1001 = vcmp.eq.s32.totalorder %v323, %v975
          %vm1002 = vcmp.eq.s32.totalorder %v324, %v975
          %vm1003 = vcmp.eq.s32.totalorder %v325, %v975
          %vm1004 = vcmp.eq.s32.totalorder %v326, %v975
          %vm1005 = vcmp.eq.s32.totalorder %v327, %v975
          %vm1006 = vcmp.eq.s32.totalorder %v328, %v975
          %vm1007 = vcmp.eq.s32.totalorder %v329, %v975
          %v1008 = vlaneseq
          %v1009 = vshrl.u32 %v1008, 7
          %v1010 = vsub.s32 6, %v1009
          %v1011 = vrot.slane %v373, %v1010
          %v1012 = vsel %vm976, %v1011, 0.0
          %v1013 = vsel %vm977, %v1011, 0.0
          %v1014 = vsel %vm978, %v1011, 0.0
          %v1015 = vsel %vm979, %v1011, 0.0
          %v1016 = vsel %vm980, %v1011, 0.0
          %v1017 = vsel %vm981, %v1011, 0.0
          %v1018 = vsel %vm982, %v1011, 0.0
          %v1019 = vsel %vm983, %v1011, 0.0
          %v1020 = vsel %vm984, %v1011, 0.0
          %v1021 = vsel %vm985, %v1011, 0.0
          %v1022 = vsel %vm986, %v1011, 0.0
          %v1023 = vsel %vm987, %v1011, 0.0
          %v1024 = vsel %vm988, %v1011, 0.0
          %v1025 = vsel %vm989, %v1011, 0.0
          %v1026 = vsel %vm990, %v1011, 0.0
          %v1027 = vsel %vm991, %v1011, 0.0
          %v1028 = vsel %vm992, %v1011, 0.0
          %v1029 = vsel %vm993, %v1011, 0.0
          %v1030 = vsel %vm994, %v1011, 0.0
          %v1031 = vsel %vm995, %v1011, 0.0
          %v1032 = vsel %vm996, %v1011, 0.0
          %v1033 = vsel %vm997, %v1011, 0.0
          %v1034 = vsel %vm998, %v1011, 0.0
          %v1035 = vsel %vm999, %v1011, 0.0
          %v1036 = vsel %vm1000, %v1011, 0.0
          %v1037 = vsel %vm1001, %v1011, 0.0
          %v1038 = vsel %vm1002, %v1011, 0.0
          %v1039 = vsel %vm1003, %v1011, 0.0
          %v1040 = vsel %vm1004, %v1011, 0.0
          %v1041 = vsel %vm1005, %v1011, 0.0
          %v1042 = vsel %vm1006, %v1011, 0.0
          %v1043 = vsel %vm1007, %v1011, 0.0
          %v1044 = vadd.f32 %v940, %v1012
          %v1045 = vadd.f32 %v941, %v1013
          %v1046 = vadd.f32 %v942, %v1014
          %v1047 = vadd.f32 %v943, %v1015
          %v1048 = vadd.f32 %v944, %v1016
          %v1049 = vadd.f32 %v945, %v1017
          %v1050 = vadd.f32 %v946, %v1018
          %v1051 = vadd.f32 %v947, %v1019
          %v1052 = vadd.f32 %v948, %v1020
          %v1053 = vadd.f32 %v949, %v1021
          %v1054 = vadd.f32 %v950, %v1022
          %v1055 = vadd.f32 %v951, %v1023
          %v1056 = vadd.f32 %v952, %v1024
          %v1057 = vadd.f32 %v953, %v1025
          %v1058 = vadd.f32 %v954, %v1026
          %v1059 = vadd.f32 %v955, %v1027
          %v1060 = vadd.f32 %v956, %v1028
          %v1061 = vadd.f32 %v957, %v1029
          %v1062 = vadd.f32 %v958, %v1030
          %v1063 = vadd.f32 %v959, %v1031
          %v1064 = vadd.f32 %v960, %v1032
          %v1065 = vadd.f32 %v961, %v1033
          %v1066 = vadd.f32 %v962, %v1034
          %v1067 = vadd.f32 %v963, %v1035
          %v1068 = vadd.f32 %v964, %v1036
          %v1069 = vadd.f32 %v965, %v1037
          %v1070 = vadd.f32 %v966, %v1038
          %v1071 = vadd.f32 %v967, %v1039
          %v1072 = vadd.f32 %v968, %v1040
          %v1073 = vadd.f32 %v969, %v1041
          %v1074 = vadd.f32 %v970, %v1042
          %v1075 = vadd.f32 %v971, %v1043
          %v1076 = vlaneseq
          %v1077 = vshrl.u32 %v1076, 7
          %v1078 = vsub.s32 1, %v1077
          %v1079 = vrot.slane %v659, %v1078
          %vm1080 = vcmp.eq.s32.totalorder %v298, %v1079
          %vm1081 = vcmp.eq.s32.totalorder %v299, %v1079
          %vm1082 = vcmp.eq.s32.totalorder %v300, %v1079
          %vm1083 = vcmp.eq.s32.totalorder %v301, %v1079
          %vm1084 = vcmp.eq.s32.totalorder %v302, %v1079
          %vm1085 = vcmp.eq.s32.totalorder %v303, %v1079
          %vm1086 = vcmp.eq.s32.totalorder %v304, %v1079
          %vm1087 = vcmp.eq.s32.totalorder %v305, %v1079
          %vm1088 = vcmp.eq.s32.totalorder %v306, %v1079
          %vm1089 = vcmp.eq.s32.totalorder %v307, %v1079
          %vm1090 = vcmp.eq.s32.totalorder %v308, %v1079
          %vm1091 = vcmp.eq.s32.totalorder %v309, %v1079
          %vm1092 = vcmp.eq.s32.totalorder %v310, %v1079
          %vm1093 = vcmp.eq.s32.totalorder %v311, %v1079
          %vm1094 = vcmp.eq.s32.totalorder %v312, %v1079
          %vm1095 = vcmp.eq.s32.totalorder %v313, %v1079
          %vm1096 = vcmp.eq.s32.totalorder %v314, %v1079
          %vm1097 = vcmp.eq.s32.totalorder %v315, %v1079
          %vm1098 = vcmp.eq.s32.totalorder %v316, %v1079
          %vm1099 = vcmp.eq.s32.totalorder %v317, %v1079
          %vm1100 = vcmp.eq.s32.totalorder %v318, %v1079
          %vm1101 = vcmp.eq.s32.totalorder %v319, %v1079
          %vm1102 = vcmp.eq.s32.totalorder %v320, %v1079
          %vm1103 = vcmp.eq.s32.totalorder %v321, %v1079
          %vm1104 = vcmp.eq.s32.totalorder %v322, %v1079
          %vm1105 = vcmp.eq.s32.totalorder %v323, %v1079
          %vm1106 = vcmp.eq.s32.totalorder %v324, %v1079
          %vm1107 = vcmp.eq.s32.totalorder %v325, %v1079
          %vm1108 = vcmp.eq.s32.totalorder %v326, %v1079
          %vm1109 = vcmp.eq.s32.totalorder %v327, %v1079
          %vm1110 = vcmp.eq.s32.totalorder %v328, %v1079
          %vm1111 = vcmp.eq.s32.totalorder %v329, %v1079
          %v1112 = vlaneseq
          %v1113 = vshrl.u32 %v1112, 7
          %v1114 = vsub.s32 7, %v1113
          %v1115 = vrot.slane %v373, %v1114
          %v1116 = vsel %vm1080, %v1115, 0.0
          %v1117 = vsel %vm1081, %v1115, 0.0
          %v1118 = vsel %vm1082, %v1115, 0.0
          %v1119 = vsel %vm1083, %v1115, 0.0
          %v1120 = vsel %vm1084, %v1115, 0.0
          %v1121 = vsel %vm1085, %v1115, 0.0
          %v1122 = vsel %vm1086, %v1115, 0.0
          %v1123 = vsel %vm1087, %v1115, 0.0
          %v1124 = vsel %vm1088, %v1115, 0.0
          %v1125 = vsel %vm1089, %v1115, 0.0
          %v1126 = vsel %vm1090, %v1115, 0.0
          %v1127 = vsel %vm1091, %v1115, 0.0
          %v1128 = vsel %vm1092, %v1115, 0.0
          %v1129 = vsel %vm1093, %v1115, 0.0
          %v1130 = vsel %vm1094, %v1115, 0.0
          %v1131 = vsel %vm1095, %v1115, 0.0
          %v1132 = vsel %vm1096, %v1115, 0.0
          %v1133 = vsel %vm1097, %v1115, 0.0
          %v1134 = vsel %vm1098, %v1115, 0.0
          %v1135 = vsel %vm1099, %v1115, 0.0
          %v1136 = vsel %vm1100, %v1115, 0.0
          %v1137 = vsel %vm1101, %v1115, 0.0
          %v1138 = vsel %vm1102, %v1115, 0.0
          %v1139 = vsel %vm1103, %v1115, 0.0
          %v1140 = vsel %vm1104, %v1115, 0.0
          %v1141 = vsel %vm1105, %v1115, 0.0
          %v1142 = vsel %vm1106, %v1115, 0.0
          %v1143 = vsel %vm1107, %v1115, 0.0
          %v1144 = vsel %vm1108, %v1115, 0.0
          %v1145 = vsel %vm1109, %v1115, 0.0
          %v1146 = vsel %vm1110, %v1115, 0.0
          %v1147 = vsel %vm1111, %v1115, 0.0
          %v1148 = vadd.f32 %v1044, %v1116
          %v1149 = vadd.f32 %v1045, %v1117
          %v1150 = vadd.f32 %v1046, %v1118
          %v1151 = vadd.f32 %v1047, %v1119
          %v1152 = vadd.f32 %v1048, %v1120
          %v1153 = vadd.f32 %v1049, %v1121
          %v1154 = vadd.f32 %v1050, %v1122
          %v1155 = vadd.f32 %v1051, %v1123
          %v1156 = vadd.f32 %v1052, %v1124
          %v1157 = vadd.f32 %v1053, %v1125
          %v1158 = vadd.f32 %v1054, %v1126
          %v1159 = vadd.f32 %v1055, %v1127
          %v1160 = vadd.f32 %v1056, %v1128
          %v1161 = vadd.f32 %v1057, %v1129
          %v1162 = vadd.f32 %v1058, %v1130
          %v1163 = vadd.f32 %v1059, %v1131
          %v1164 = vadd.f32 %v1060, %v1132
          %v1165 = vadd.f32 %v1061, %v1133
          %v1166 = vadd.f32 %v1062, %v1134
          %v1167 = vadd.f32 %v1063, %v1135
          %v1168 = vadd.f32 %v1064, %v1136
          %v1169 = vadd.f32 %v1065, %v1137
          %v1170 = vadd.f32 %v1066, %v1138
          %v1171 = vadd.f32 %v1067, %v1139
          %v1172 = vadd.f32 %v1068, %v1140
          %v1173 = vadd.f32 %v1069, %v1141
          %v1174 = vadd.f32 %v1070, %v1142
          %v1175 = vadd.f32 %v1071, %v1143
          %v1176 = vadd.f32 %v1072, %v1144
          %v1177 = vadd.f32 %v1073, %v1145
          %v1178 = vadd.f32 %v1074, %v1146
          %v1179 = vadd.f32 %v1075, %v1147
          %v1180 = vadd.f32 %v764, %v1148
          %v1181 = vadd.f32 %v765, %v1149
          %v1182 = vadd.f32 %v766, %v1150
          %v1183 = vadd.f32 %v767, %v1151
          %v1184 = vadd.f32 %v768, %v1152
          %v1185 = vadd.f32 %v769, %v1153
          %v1186 = vadd.f32 %v770, %v1154
          %v1187 = vadd.f32 %v771, %v1155
          %v1188 = vadd.f32 %v772, %v1156
          %v1189 = vadd.f32 %v773, %v1157
          %v1190 = vadd.f32 %v774, %v1158
          %v1191 = vadd.f32 %v775, %v1159
          %v1192 = vadd.f32 %v776, %v1160
          %v1193 = vadd.f32 %v777, %v1161
          %v1194 = vadd.f32 %v778, %v1162
          %v1195 = vadd.f32 %v779, %v1163
          %v1196 = vadd.f32 %v780, %v1164
          %v1197 = vadd.f32 %v781, %v1165
          %v1198 = vadd.f32 %v782, %v1166
          %v1199 = vadd.f32 %v783, %v1167
          %v1200 = vadd.f32 %v784, %v1168
          %v1201 = vadd.f32 %v785, %v1169
          %v1202 = vadd.f32 %v786, %v1170
          %v1203 = vadd.f32 %v787, %v1171
          %v1204 = vadd.f32 %v788, %v1172
          %v1205 = vadd.f32 %v789, %v1173
          %v1206 = vadd.f32 %v790, %v1174
          %v1207 = vadd.f32 %v791, %v1175
          %v1208 = vadd.f32 %v792, %v1176
          %v1209 = vadd.f32 %v793, %v1177
          %v1210 = vadd.f32 %v794, %v1178
          %v1211 = vadd.f32 %v795, %v1179
          %v1212 = vlaneseq
          %v1213 = vshrl.u32 %v1212, 7
          %v1214 = vsub.s32 2, %v1213
          %v1215 = vrot.slane %v370, %v1214
          %vm1216 = vcmp.eq.s32.totalorder %v298, %v1215
          %vm1217 = vcmp.eq.s32.totalorder %v299, %v1215
          %vm1218 = vcmp.eq.s32.totalorder %v300, %v1215
          %vm1219 = vcmp.eq.s32.totalorder %v301, %v1215
          %vm1220 = vcmp.eq.s32.totalorder %v302, %v1215
          %vm1221 = vcmp.eq.s32.totalorder %v303, %v1215
          %vm1222 = vcmp.eq.s32.totalorder %v304, %v1215
          %vm1223 = vcmp.eq.s32.totalorder %v305, %v1215
          %vm1224 = vcmp.eq.s32.totalorder %v306, %v1215
          %vm1225 = vcmp.eq.s32.totalorder %v307, %v1215
          %vm1226 = vcmp.eq.s32.totalorder %v308, %v1215
          %vm1227 = vcmp.eq.s32.totalorder %v309, %v1215
          %vm1228 = vcmp.eq.s32.totalorder %v310, %v1215
          %vm1229 = vcmp.eq.s32.totalorder %v311, %v1215
          %vm1230 = vcmp.eq.s32.totalorder %v312, %v1215
          %vm1231 = vcmp.eq.s32.totalorder %v313, %v1215
          %vm1232 = vcmp.eq.s32.totalorder %v314, %v1215
          %vm1233 = vcmp.eq.s32.totalorder %v315, %v1215
          %vm1234 = vcmp.eq.s32.totalorder %v316, %v1215
          %vm1235 = vcmp.eq.s32.totalorder %v317, %v1215
          %vm1236 = vcmp.eq.s32.totalorder %v318, %v1215
          %vm1237 = vcmp.eq.s32.totalorder %v319, %v1215
          %vm1238 = vcmp.eq.s32.totalorder %v320, %v1215
          %vm1239 = vcmp.eq.s32.totalorder %v321, %v1215
          %vm1240 = vcmp.eq.s32.totalorder %v322, %v1215
          %vm1241 = vcmp.eq.s32.totalorder %v323, %v1215
          %vm1242 = vcmp.eq.s32.totalorder %v324, %v1215
          %vm1243 = vcmp.eq.s32.totalorder %v325, %v1215
          %vm1244 = vcmp.eq.s32.totalorder %v326, %v1215
          %vm1245 = vcmp.eq.s32.totalorder %v327, %v1215
          %vm1246 = vcmp.eq.s32.totalorder %v328, %v1215
          %vm1247 = vcmp.eq.s32.totalorder %v329, %v1215
          %v1248 = vlaneseq
          %v1249 = vshrl.u32 %v1248, 7
          %v1250 = vsub.s32 0, %v1249
          %v1251 = vrot.slane %v374, %v1250
          %v1252 = vsel %vm1216, %v1251, 0.0
          %v1253 = vsel %vm1217, %v1251, 0.0
          %v1254 = vsel %vm1218, %v1251, 0.0
          %v1255 = vsel %vm1219, %v1251, 0.0
          %v1256 = vsel %vm1220, %v1251, 0.0
          %v1257 = vsel %vm1221, %v1251, 0.0
          %v1258 = vsel %vm1222, %v1251, 0.0
          %v1259 = vsel %vm1223, %v1251, 0.0
          %v1260 = vsel %vm1224, %v1251, 0.0
          %v1261 = vsel %vm1225, %v1251, 0.0
          %v1262 = vsel %vm1226, %v1251, 0.0
          %v1263 = vsel %vm1227, %v1251, 0.0
          %v1264 = vsel %vm1228, %v1251, 0.0
          %v1265 = vsel %vm1229, %v1251, 0.0
          %v1266 = vsel %vm1230, %v1251, 0.0
          %v1267 = vsel %vm1231, %v1251, 0.0
          %v1268 = vsel %vm1232, %v1251, 0.0
          %v1269 = vsel %vm1233, %v1251, 0.0
          %v1270 = vsel %vm1234, %v1251, 0.0
          %v1271 = vsel %vm1235, %v1251, 0.0
          %v1272 = vsel %vm1236, %v1251, 0.0
          %v1273 = vsel %vm1237, %v1251, 0.0
          %v1274 = vsel %vm1238, %v1251, 0.0
          %v1275 = vsel %vm1239, %v1251, 0.0
          %v1276 = vsel %vm1240, %v1251, 0.0
          %v1277 = vsel %vm1241, %v1251, 0.0
          %v1278 = vsel %vm1242, %v1251, 0.0
          %v1279 = vsel %vm1243, %v1251, 0.0
          %v1280 = vsel %vm1244, %v1251, 0.0
          %v1281 = vsel %vm1245, %v1251, 0.0
          %v1282 = vsel %vm1246, %v1251, 0.0
          %v1283 = vsel %vm1247, %v1251, 0.0
          %v1284 = vlaneseq
          %v1285 = vshrl.u32 %v1284, 7
          %v1286 = vsub.s32 2, %v1285
          %v1287 = vrot.slane %v449, %v1286
          %vm1288 = vcmp.eq.s32.totalorder %v298, %v1287
          %vm1289 = vcmp.eq.s32.totalorder %v299, %v1287
          %vm1290 = vcmp.eq.s32.totalorder %v300, %v1287
          %vm1291 = vcmp.eq.s32.totalorder %v301, %v1287
          %vm1292 = vcmp.eq.s32.totalorder %v302, %v1287
          %vm1293 = vcmp.eq.s32.totalorder %v303, %v1287
          %vm1294 = vcmp.eq.s32.totalorder %v304, %v1287
          %vm1295 = vcmp.eq.s32.totalorder %v305, %v1287
          %vm1296 = vcmp.eq.s32.totalorder %v306, %v1287
          %vm1297 = vcmp.eq.s32.totalorder %v307, %v1287
          %vm1298 = vcmp.eq.s32.totalorder %v308, %v1287
          %vm1299 = vcmp.eq.s32.totalorder %v309, %v1287
          %vm1300 = vcmp.eq.s32.totalorder %v310, %v1287
          %vm1301 = vcmp.eq.s32.totalorder %v311, %v1287
          %vm1302 = vcmp.eq.s32.totalorder %v312, %v1287
          %vm1303 = vcmp.eq.s32.totalorder %v313, %v1287
          %vm1304 = vcmp.eq.s32.totalorder %v314, %v1287
          %vm1305 = vcmp.eq.s32.totalorder %v315, %v1287
          %vm1306 = vcmp.eq.s32.totalorder %v316, %v1287
          %vm1307 = vcmp.eq.s32.totalorder %v317, %v1287
          %vm1308 = vcmp.eq.s32.totalorder %v318, %v1287
          %vm1309 = vcmp.eq.s32.totalorder %v319, %v1287
          %vm1310 = vcmp.eq.s32.totalorder %v320, %v1287
          %vm1311 = vcmp.eq.s32.totalorder %v321, %v1287
          %vm1312 = vcmp.eq.s32.totalorder %v322, %v1287
          %vm1313 = vcmp.eq.s32.totalorder %v323, %v1287
          %vm1314 = vcmp.eq.s32.totalorder %v324, %v1287
          %vm1315 = vcmp.eq.s32.totalorder %v325, %v1287
          %vm1316 = vcmp.eq.s32.totalorder %v326, %v1287
          %vm1317 = vcmp.eq.s32.totalorder %v327, %v1287
          %vm1318 = vcmp.eq.s32.totalorder %v328, %v1287
          %vm1319 = vcmp.eq.s32.totalorder %v329, %v1287
          %v1320 = vlaneseq
          %v1321 = vshrl.u32 %v1320, 7
          %v1322 = vsub.s32 1, %v1321
          %v1323 = vrot.slane %v374, %v1322
          %v1324 = vsel %vm1288, %v1323, 0.0
          %v1325 = vsel %vm1289, %v1323, 0.0
          %v1326 = vsel %vm1290, %v1323, 0.0
          %v1327 = vsel %vm1291, %v1323, 0.0
          %v1328 = vsel %vm1292, %v1323, 0.0
          %v1329 = vsel %vm1293, %v1323, 0.0
          %v1330 = vsel %vm1294, %v1323, 0.0
          %v1331 = vsel %vm1295, %v1323, 0.0
          %v1332 = vsel %vm1296, %v1323, 0.0
          %v1333 = vsel %vm1297, %v1323, 0.0
          %v1334 = vsel %vm1298, %v1323, 0.0
          %v1335 = vsel %vm1299, %v1323, 0.0
          %v1336 = vsel %vm1300, %v1323, 0.0
          %v1337 = vsel %vm1301, %v1323, 0.0
          %v1338 = vsel %vm1302, %v1323, 0.0
          %v1339 = vsel %vm1303, %v1323, 0.0
          %v1340 = vsel %vm1304, %v1323, 0.0
          %v1341 = vsel %vm1305, %v1323, 0.0
          %v1342 = vsel %vm1306, %v1323, 0.0
          %v1343 = vsel %vm1307, %v1323, 0.0
          %v1344 = vsel %vm1308, %v1323, 0.0
          %v1345 = vsel %vm1309, %v1323, 0.0
          %v1346 = vsel %vm1310, %v1323, 0.0
          %v1347 = vsel %vm1311, %v1323, 0.0
          %v1348 = vsel %vm1312, %v1323, 0.0
          %v1349 = vsel %vm1313, %v1323, 0.0
          %v1350 = vsel %vm1314, %v1323, 0.0
          %v1351 = vsel %vm1315, %v1323, 0.0
          %v1352 = vsel %vm1316, %v1323, 0.0
          %v1353 = vsel %vm1317, %v1323, 0.0
          %v1354 = vsel %vm1318, %v1323, 0.0
          %v1355 = vsel %vm1319, %v1323, 0.0
          %v1356 = vadd.f32 %v1252, %v1324
          %v1357 = vadd.f32 %v1253, %v1325
          %v1358 = vadd.f32 %v1254, %v1326
          %v1359 = vadd.f32 %v1255, %v1327
          %v1360 = vadd.f32 %v1256, %v1328
          %v1361 = vadd.f32 %v1257, %v1329
          %v1362 = vadd.f32 %v1258, %v1330
          %v1363 = vadd.f32 %v1259, %v1331
          %v1364 = vadd.f32 %v1260, %v1332
          %v1365 = vadd.f32 %v1261, %v1333
          %v1366 = vadd.f32 %v1262, %v1334
          %v1367 = vadd.f32 %v1263, %v1335
          %v1368 = vadd.f32 %v1264, %v1336
          %v1369 = vadd.f32 %v1265, %v1337
          %v1370 = vadd.f32 %v1266, %v1338
          %v1371 = vadd.f32 %v1267, %v1339
          %v1372 = vadd.f32 %v1268, %v1340
          %v1373 = vadd.f32 %v1269, %v1341
          %v1374 = vadd.f32 %v1270, %v1342
          %v1375 = vadd.f32 %v1271, %v1343
          %v1376 = vadd.f32 %v1272, %v1344
          %v1377 = vadd.f32 %v1273, %v1345
          %v1378 = vadd.f32 %v1274, %v1346
          %v1379 = vadd.f32 %v1275, %v1347
          %v1380 = vadd.f32 %v1276, %v1348
          %v1381 = vadd.f32 %v1277, %v1349
          %v1382 = vadd.f32 %v1278, %v1350
          %v1383 = vadd.f32 %v1279, %v1351
          %v1384 = vadd.f32 %v1280, %v1352
          %v1385 = vadd.f32 %v1281, %v1353
          %v1386 = vadd.f32 %v1282, %v1354
          %v1387 = vadd.f32 %v1283, %v1355
          %v1388 = vlaneseq
          %v1389 = vshrl.u32 %v1388, 7
          %v1390 = vsub.s32 2, %v1389
          %v1391 = vrot.slane %v554, %v1390
          %vm1392 = vcmp.eq.s32.totalorder %v298, %v1391
          %vm1393 = vcmp.eq.s32.totalorder %v299, %v1391
          %vm1394 = vcmp.eq.s32.totalorder %v300, %v1391
          %vm1395 = vcmp.eq.s32.totalorder %v301, %v1391
          %vm1396 = vcmp.eq.s32.totalorder %v302, %v1391
          %vm1397 = vcmp.eq.s32.totalorder %v303, %v1391
          %vm1398 = vcmp.eq.s32.totalorder %v304, %v1391
          %vm1399 = vcmp.eq.s32.totalorder %v305, %v1391
          %vm1400 = vcmp.eq.s32.totalorder %v306, %v1391
          %vm1401 = vcmp.eq.s32.totalorder %v307, %v1391
          %vm1402 = vcmp.eq.s32.totalorder %v308, %v1391
          %vm1403 = vcmp.eq.s32.totalorder %v309, %v1391
          %vm1404 = vcmp.eq.s32.totalorder %v310, %v1391
          %vm1405 = vcmp.eq.s32.totalorder %v311, %v1391
          %vm1406 = vcmp.eq.s32.totalorder %v312, %v1391
          %vm1407 = vcmp.eq.s32.totalorder %v313, %v1391
          %vm1408 = vcmp.eq.s32.totalorder %v314, %v1391
          %vm1409 = vcmp.eq.s32.totalorder %v315, %v1391
          %vm1410 = vcmp.eq.s32.totalorder %v316, %v1391
          %vm1411 = vcmp.eq.s32.totalorder %v317, %v1391
          %vm1412 = vcmp.eq.s32.totalorder %v318, %v1391
          %vm1413 = vcmp.eq.s32.totalorder %v319, %v1391
          %vm1414 = vcmp.eq.s32.totalorder %v320, %v1391
          %vm1415 = vcmp.eq.s32.totalorder %v321, %v1391
          %vm1416 = vcmp.eq.s32.totalorder %v322, %v1391
          %vm1417 = vcmp.eq.s32.totalorder %v323, %v1391
          %vm1418 = vcmp.eq.s32.totalorder %v324, %v1391
          %vm1419 = vcmp.eq.s32.totalorder %v325, %v1391
          %vm1420 = vcmp.eq.s32.totalorder %v326, %v1391
          %vm1421 = vcmp.eq.s32.totalorder %v327, %v1391
          %vm1422 = vcmp.eq.s32.totalorder %v328, %v1391
          %vm1423 = vcmp.eq.s32.totalorder %v329, %v1391
          %v1424 = vlaneseq
          %v1425 = vshrl.u32 %v1424, 7
          %v1426 = vsub.s32 2, %v1425
          %v1427 = vrot.slane %v374, %v1426
          %v1428 = vsel %vm1392, %v1427, 0.0
          %v1429 = vsel %vm1393, %v1427, 0.0
          %v1430 = vsel %vm1394, %v1427, 0.0
          %v1431 = vsel %vm1395, %v1427, 0.0
          %v1432 = vsel %vm1396, %v1427, 0.0
          %v1433 = vsel %vm1397, %v1427, 0.0
          %v1434 = vsel %vm1398, %v1427, 0.0
          %v1435 = vsel %vm1399, %v1427, 0.0
          %v1436 = vsel %vm1400, %v1427, 0.0
          %v1437 = vsel %vm1401, %v1427, 0.0
          %v1438 = vsel %vm1402, %v1427, 0.0
          %v1439 = vsel %vm1403, %v1427, 0.0
          %v1440 = vsel %vm1404, %v1427, 0.0
          %v1441 = vsel %vm1405, %v1427, 0.0
          %v1442 = vsel %vm1406, %v1427, 0.0
          %v1443 = vsel %vm1407, %v1427, 0.0
          %v1444 = vsel %vm1408, %v1427, 0.0
          %v1445 = vsel %vm1409, %v1427, 0.0
          %v1446 = vsel %vm1410, %v1427, 0.0
          %v1447 = vsel %vm1411, %v1427, 0.0
          %v1448 = vsel %vm1412, %v1427, 0.0
          %v1449 = vsel %vm1413, %v1427, 0.0
          %v1450 = vsel %vm1414, %v1427, 0.0
          %v1451 = vsel %vm1415, %v1427, 0.0
          %v1452 = vsel %vm1416, %v1427, 0.0
          %v1453 = vsel %vm1417, %v1427, 0.0
          %v1454 = vsel %vm1418, %v1427, 0.0
          %v1455 = vsel %vm1419, %v1427, 0.0
          %v1456 = vsel %vm1420, %v1427, 0.0
          %v1457 = vsel %vm1421, %v1427, 0.0
          %v1458 = vsel %vm1422, %v1427, 0.0
          %v1459 = vsel %vm1423, %v1427, 0.0
          %v1460 = vadd.f32 %v1356, %v1428
          %v1461 = vadd.f32 %v1357, %v1429
          %v1462 = vadd.f32 %v1358, %v1430
          %v1463 = vadd.f32 %v1359, %v1431
          %v1464 = vadd.f32 %v1360, %v1432
          %v1465 = vadd.f32 %v1361, %v1433
          %v1466 = vadd.f32 %v1362, %v1434
          %v1467 = vadd.f32 %v1363, %v1435
          %v1468 = vadd.f32 %v1364, %v1436
          %v1469 = vadd.f32 %v1365, %v1437
          %v1470 = vadd.f32 %v1366, %v1438
          %v1471 = vadd.f32 %v1367, %v1439
          %v1472 = vadd.f32 %v1368, %v1440
          %v1473 = vadd.f32 %v1369, %v1441
          %v1474 = vadd.f32 %v1370, %v1442
          %v1475 = vadd.f32 %v1371, %v1443
          %v1476 = vadd.f32 %v1372, %v1444
          %v1477 = vadd.f32 %v1373, %v1445
          %v1478 = vadd.f32 %v1374, %v1446
          %v1479 = vadd.f32 %v1375, %v1447
          %v1480 = vadd.f32 %v1376, %v1448
          %v1481 = vadd.f32 %v1377, %v1449
          %v1482 = vadd.f32 %v1378, %v1450
          %v1483 = vadd.f32 %v1379, %v1451
          %v1484 = vadd.f32 %v1380, %v1452
          %v1485 = vadd.f32 %v1381, %v1453
          %v1486 = vadd.f32 %v1382, %v1454
          %v1487 = vadd.f32 %v1383, %v1455
          %v1488 = vadd.f32 %v1384, %v1456
          %v1489 = vadd.f32 %v1385, %v1457
          %v1490 = vadd.f32 %v1386, %v1458
          %v1491 = vadd.f32 %v1387, %v1459
          %v1492 = vlaneseq
          %v1493 = vshrl.u32 %v1492, 7
          %v1494 = vsub.s32 2, %v1493
          %v1495 = vrot.slane %v659, %v1494
          %vm1496 = vcmp.eq.s32.totalorder %v298, %v1495
          %vm1497 = vcmp.eq.s32.totalorder %v299, %v1495
          %vm1498 = vcmp.eq.s32.totalorder %v300, %v1495
          %vm1499 = vcmp.eq.s32.totalorder %v301, %v1495
          %vm1500 = vcmp.eq.s32.totalorder %v302, %v1495
          %vm1501 = vcmp.eq.s32.totalorder %v303, %v1495
          %vm1502 = vcmp.eq.s32.totalorder %v304, %v1495
          %vm1503 = vcmp.eq.s32.totalorder %v305, %v1495
          %vm1504 = vcmp.eq.s32.totalorder %v306, %v1495
          %vm1505 = vcmp.eq.s32.totalorder %v307, %v1495
          %vm1506 = vcmp.eq.s32.totalorder %v308, %v1495
          %vm1507 = vcmp.eq.s32.totalorder %v309, %v1495
          %vm1508 = vcmp.eq.s32.totalorder %v310, %v1495
          %vm1509 = vcmp.eq.s32.totalorder %v311, %v1495
          %vm1510 = vcmp.eq.s32.totalorder %v312, %v1495
          %vm1511 = vcmp.eq.s32.totalorder %v313, %v1495
          %vm1512 = vcmp.eq.s32.totalorder %v314, %v1495
          %vm1513 = vcmp.eq.s32.totalorder %v315, %v1495
          %vm1514 = vcmp.eq.s32.totalorder %v316, %v1495
          %vm1515 = vcmp.eq.s32.totalorder %v317, %v1495
          %vm1516 = vcmp.eq.s32.totalorder %v318, %v1495
          %vm1517 = vcmp.eq.s32.totalorder %v319, %v1495
          %vm1518 = vcmp.eq.s32.totalorder %v320, %v1495
          %vm1519 = vcmp.eq.s32.totalorder %v321, %v1495
          %vm1520 = vcmp.eq.s32.totalorder %v322, %v1495
          %vm1521 = vcmp.eq.s32.totalorder %v323, %v1495
          %vm1522 = vcmp.eq.s32.totalorder %v324, %v1495
          %vm1523 = vcmp.eq.s32.totalorder %v325, %v1495
          %vm1524 = vcmp.eq.s32.totalorder %v326, %v1495
          %vm1525 = vcmp.eq.s32.totalorder %v327, %v1495
          %vm1526 = vcmp.eq.s32.totalorder %v328, %v1495
          %vm1527 = vcmp.eq.s32.totalorder %v329, %v1495
          %v1528 = vlaneseq
          %v1529 = vshrl.u32 %v1528, 7
          %v1530 = vsub.s32 3, %v1529
          %v1531 = vrot.slane %v374, %v1530
          %v1532 = vsel %vm1496, %v1531, 0.0
          %v1533 = vsel %vm1497, %v1531, 0.0
          %v1534 = vsel %vm1498, %v1531, 0.0
          %v1535 = vsel %vm1499, %v1531, 0.0
          %v1536 = vsel %vm1500, %v1531, 0.0
          %v1537 = vsel %vm1501, %v1531, 0.0
          %v1538 = vsel %vm1502, %v1531, 0.0
          %v1539 = vsel %vm1503, %v1531, 0.0
          %v1540 = vsel %vm1504, %v1531, 0.0
          %v1541 = vsel %vm1505, %v1531, 0.0
          %v1542 = vsel %vm1506, %v1531, 0.0
          %v1543 = vsel %vm1507, %v1531, 0.0
          %v1544 = vsel %vm1508, %v1531, 0.0
          %v1545 = vsel %vm1509, %v1531, 0.0
          %v1546 = vsel %vm1510, %v1531, 0.0
          %v1547 = vsel %vm1511, %v1531, 0.0
          %v1548 = vsel %vm1512, %v1531, 0.0
          %v1549 = vsel %vm1513, %v1531, 0.0
          %v1550 = vsel %vm1514, %v1531, 0.0
          %v1551 = vsel %vm1515, %v1531, 0.0
          %v1552 = vsel %vm1516, %v1531, 0.0
          %v1553 = vsel %vm1517, %v1531, 0.0
          %v1554 = vsel %vm1518, %v1531, 0.0
          %v1555 = vsel %vm1519, %v1531, 0.0
          %v1556 = vsel %vm1520, %v1531, 0.0
          %v1557 = vsel %vm1521, %v1531, 0.0
          %v1558 = vsel %vm1522, %v1531, 0.0
          %v1559 = vsel %vm1523, %v1531, 0.0
          %v1560 = vsel %vm1524, %v1531, 0.0
          %v1561 = vsel %vm1525, %v1531, 0.0
          %v1562 = vsel %vm1526, %v1531, 0.0
          %v1563 = vsel %vm1527, %v1531, 0.0
          %v1564 = vadd.f32 %v1460, %v1532
          %v1565 = vadd.f32 %v1461, %v1533
          %v1566 = vadd.f32 %v1462, %v1534
          %v1567 = vadd.f32 %v1463, %v1535
          %v1568 = vadd.f32 %v1464, %v1536
          %v1569 = vadd.f32 %v1465, %v1537
          %v1570 = vadd.f32 %v1466, %v1538
          %v1571 = vadd.f32 %v1467, %v1539
          %v1572 = vadd.f32 %v1468, %v1540
          %v1573 = vadd.f32 %v1469, %v1541
          %v1574 = vadd.f32 %v1470, %v1542
          %v1575 = vadd.f32 %v1471, %v1543
          %v1576 = vadd.f32 %v1472, %v1544
          %v1577 = vadd.f32 %v1473, %v1545
          %v1578 = vadd.f32 %v1474, %v1546
          %v1579 = vadd.f32 %v1475, %v1547
          %v1580 = vadd.f32 %v1476, %v1548
          %v1581 = vadd.f32 %v1477, %v1549
          %v1582 = vadd.f32 %v1478, %v1550
          %v1583 = vadd.f32 %v1479, %v1551
          %v1584 = vadd.f32 %v1480, %v1552
          %v1585 = vadd.f32 %v1481, %v1553
          %v1586 = vadd.f32 %v1482, %v1554
          %v1587 = vadd.f32 %v1483, %v1555
          %v1588 = vadd.f32 %v1484, %v1556
          %v1589 = vadd.f32 %v1485, %v1557
          %v1590 = vadd.f32 %v1486, %v1558
          %v1591 = vadd.f32 %v1487, %v1559
          %v1592 = vadd.f32 %v1488, %v1560
          %v1593 = vadd.f32 %v1489, %v1561
          %v1594 = vadd.f32 %v1490, %v1562
          %v1595 = vadd.f32 %v1491, %v1563
          %v1596 = vadd.f32 %v1180, %v1564
          %v1597 = vadd.f32 %v1181, %v1565
          %v1598 = vadd.f32 %v1182, %v1566
          %v1599 = vadd.f32 %v1183, %v1567
          %v1600 = vadd.f32 %v1184, %v1568
          %v1601 = vadd.f32 %v1185, %v1569
          %v1602 = vadd.f32 %v1186, %v1570
          %v1603 = vadd.f32 %v1187, %v1571
          %v1604 = vadd.f32 %v1188, %v1572
          %v1605 = vadd.f32 %v1189, %v1573
          %v1606 = vadd.f32 %v1190, %v1574
          %v1607 = vadd.f32 %v1191, %v1575
          %v1608 = vadd.f32 %v1192, %v1576
          %v1609 = vadd.f32 %v1193, %v1577
          %v1610 = vadd.f32 %v1194, %v1578
          %v1611 = vadd.f32 %v1195, %v1579
          %v1612 = vadd.f32 %v1196, %v1580
          %v1613 = vadd.f32 %v1197, %v1581
          %v1614 = vadd.f32 %v1198, %v1582
          %v1615 = vadd.f32 %v1199, %v1583
          %v1616 = vadd.f32 %v1200, %v1584
          %v1617 = vadd.f32 %v1201, %v1585
          %v1618 = vadd.f32 %v1202, %v1586
          %v1619 = vadd.f32 %v1203, %v1587
          %v1620 = vadd.f32 %v1204, %v1588
          %v1621 = vadd.f32 %v1205, %v1589
          %v1622 = vadd.f32 %v1206, %v1590
          %v1623 = vadd.f32 %v1207, %v1591
          %v1624 = vadd.f32 %v1208, %v1592
          %v1625 = vadd.f32 %v1209, %v1593
          %v1626 = vadd.f32 %v1210, %v1594
          %v1627 = vadd.f32 %v1211, %v1595
          %v1628 = vlaneseq
          %v1629 = vshrl.u32 %v1628, 7
          %v1630 = vsub.s32 3, %v1629
          %v1631 = vrot.slane %v370, %v1630
          %vm1632 = vcmp.eq.s32.totalorder %v298, %v1631
          %vm1633 = vcmp.eq.s32.totalorder %v299, %v1631
          %vm1634 = vcmp.eq.s32.totalorder %v300, %v1631
          %vm1635 = vcmp.eq.s32.totalorder %v301, %v1631
          %vm1636 = vcmp.eq.s32.totalorder %v302, %v1631
          %vm1637 = vcmp.eq.s32.totalorder %v303, %v1631
          %vm1638 = vcmp.eq.s32.totalorder %v304, %v1631
          %vm1639 = vcmp.eq.s32.totalorder %v305, %v1631
          %vm1640 = vcmp.eq.s32.totalorder %v306, %v1631
          %vm1641 = vcmp.eq.s32.totalorder %v307, %v1631
          %vm1642 = vcmp.eq.s32.totalorder %v308, %v1631
          %vm1643 = vcmp.eq.s32.totalorder %v309, %v1631
          %vm1644 = vcmp.eq.s32.totalorder %v310, %v1631
          %vm1645 = vcmp.eq.s32.totalorder %v311, %v1631
          %vm1646 = vcmp.eq.s32.totalorder %v312, %v1631
          %vm1647 = vcmp.eq.s32.totalorder %v313, %v1631
          %vm1648 = vcmp.eq.s32.totalorder %v314, %v1631
          %vm1649 = vcmp.eq.s32.totalorder %v315, %v1631
          %vm1650 = vcmp.eq.s32.totalorder %v316, %v1631
          %vm1651 = vcmp.eq.s32.totalorder %v317, %v1631
          %vm1652 = vcmp.eq.s32.totalorder %v318, %v1631
          %vm1653 = vcmp.eq.s32.totalorder %v319, %v1631
          %vm1654 = vcmp.eq.s32.totalorder %v320, %v1631
          %vm1655 = vcmp.eq.s32.totalorder %v321, %v1631
          %vm1656 = vcmp.eq.s32.totalorder %v322, %v1631
          %vm1657 = vcmp.eq.s32.totalorder %v323, %v1631
          %vm1658 = vcmp.eq.s32.totalorder %v324, %v1631
          %vm1659 = vcmp.eq.s32.totalorder %v325, %v1631
          %vm1660 = vcmp.eq.s32.totalorder %v326, %v1631
          %vm1661 = vcmp.eq.s32.totalorder %v327, %v1631
          %vm1662 = vcmp.eq.s32.totalorder %v328, %v1631
          %vm1663 = vcmp.eq.s32.totalorder %v329, %v1631
          %v1664 = vlaneseq
          %v1665 = vshrl.u32 %v1664, 7
          %v1666 = vsub.s32 4, %v1665
          %v1667 = vrot.slane %v374, %v1666
          %v1668 = vsel %vm1632, %v1667, 0.0
          %v1669 = vsel %vm1633, %v1667, 0.0
          %v1670 = vsel %vm1634, %v1667, 0.0
          %v1671 = vsel %vm1635, %v1667, 0.0
          %v1672 = vsel %vm1636, %v1667, 0.0
          %v1673 = vsel %vm1637, %v1667, 0.0
          %v1674 = vsel %vm1638, %v1667, 0.0
          %v1675 = vsel %vm1639, %v1667, 0.0
          %v1676 = vsel %vm1640, %v1667, 0.0
          %v1677 = vsel %vm1641, %v1667, 0.0
          %v1678 = vsel %vm1642, %v1667, 0.0
          %v1679 = vsel %vm1643, %v1667, 0.0
          %v1680 = vsel %vm1644, %v1667, 0.0
          %v1681 = vsel %vm1645, %v1667, 0.0
          %v1682 = vsel %vm1646, %v1667, 0.0
          %v1683 = vsel %vm1647, %v1667, 0.0
          %v1684 = vsel %vm1648, %v1667, 0.0
          %v1685 = vsel %vm1649, %v1667, 0.0
          %v1686 = vsel %vm1650, %v1667, 0.0
          %v1687 = vsel %vm1651, %v1667, 0.0
          %v1688 = vsel %vm1652, %v1667, 0.0
          %v1689 = vsel %vm1653, %v1667, 0.0
          %v1690 = vsel %vm1654, %v1667, 0.0
          %v1691 = vsel %vm1655, %v1667, 0.0
          %v1692 = vsel %vm1656, %v1667, 0.0
          %v1693 = vsel %vm1657, %v1667, 0.0
          %v1694 = vsel %vm1658, %v1667, 0.0
          %v1695 = vsel %vm1659, %v1667, 0.0
          %v1696 = vsel %vm1660, %v1667, 0.0
          %v1697 = vsel %vm1661, %v1667, 0.0
          %v1698 = vsel %vm1662, %v1667, 0.0
          %v1699 = vsel %vm1663, %v1667, 0.0
          %v1700 = vlaneseq
          %v1701 = vshrl.u32 %v1700, 7
          %v1702 = vsub.s32 3, %v1701
          %v1703 = vrot.slane %v449, %v1702
          %vm1704 = vcmp.eq.s32.totalorder %v298, %v1703
          %vm1705 = vcmp.eq.s32.totalorder %v299, %v1703
          %vm1706 = vcmp.eq.s32.totalorder %v300, %v1703
          %vm1707 = vcmp.eq.s32.totalorder %v301, %v1703
          %vm1708 = vcmp.eq.s32.totalorder %v302, %v1703
          %vm1709 = vcmp.eq.s32.totalorder %v303, %v1703
          %vm1710 = vcmp.eq.s32.totalorder %v304, %v1703
          %vm1711 = vcmp.eq.s32.totalorder %v305, %v1703
          %vm1712 = vcmp.eq.s32.totalorder %v306, %v1703
          %vm1713 = vcmp.eq.s32.totalorder %v307, %v1703
          %vm1714 = vcmp.eq.s32.totalorder %v308, %v1703
          %vm1715 = vcmp.eq.s32.totalorder %v309, %v1703
          %vm1716 = vcmp.eq.s32.totalorder %v310, %v1703
          %vm1717 = vcmp.eq.s32.totalorder %v311, %v1703
          %vm1718 = vcmp.eq.s32.totalorder %v312, %v1703
          %vm1719 = vcmp.eq.s32.totalorder %v313, %v1703
          %vm1720 = vcmp.eq.s32.totalorder %v314, %v1703
          %vm1721 = vcmp.eq.s32.totalorder %v315, %v1703
          %vm1722 = vcmp.eq.s32.totalorder %v316, %v1703
          %vm1723 = vcmp.eq.s32.totalorder %v317, %v1703
          %vm1724 = vcmp.eq.s32.totalorder %v318, %v1703
          %vm1725 = vcmp.eq.s32.totalorder %v319, %v1703
          %vm1726 = vcmp.eq.s32.totalorder %v320, %v1703
          %vm1727 = vcmp.eq.s32.totalorder %v321, %v1703
          %vm1728 = vcmp.eq.s32.totalorder %v322, %v1703
          %vm1729 = vcmp.eq.s32.totalorder %v323, %v1703
          %vm1730 = vcmp.eq.s32.totalorder %v324, %v1703
          %vm1731 = vcmp.eq.s32.totalorder %v325, %v1703
          %vm1732 = vcmp.eq.s32.totalorder %v326, %v1703
          %vm1733 = vcmp.eq.s32.totalorder %v327, %v1703
          %vm1734 = vcmp.eq.s32.totalorder %v328, %v1703
          %vm1735 = vcmp.eq.s32.totalorder %v329, %v1703
          %v1736 = vlaneseq
          %v1737 = vshrl.u32 %v1736, 7
          %v1738 = vsub.s32 5, %v1737
          %v1739 = vrot.slane %v374, %v1738
          %v1740 = vsel %vm1704, %v1739, 0.0
          %v1741 = vsel %vm1705, %v1739, 0.0
          %v1742 = vsel %vm1706, %v1739, 0.0
          %v1743 = vsel %vm1707, %v1739, 0.0
          %v1744 = vsel %vm1708, %v1739, 0.0
          %v1745 = vsel %vm1709, %v1739, 0.0
          %v1746 = vsel %vm1710, %v1739, 0.0
          %v1747 = vsel %vm1711, %v1739, 0.0
          %v1748 = vsel %vm1712, %v1739, 0.0
          %v1749 = vsel %vm1713, %v1739, 0.0
          %v1750 = vsel %vm1714, %v1739, 0.0
          %v1751 = vsel %vm1715, %v1739, 0.0
          %v1752 = vsel %vm1716, %v1739, 0.0
          %v1753 = vsel %vm1717, %v1739, 0.0
          %v1754 = vsel %vm1718, %v1739, 0.0
          %v1755 = vsel %vm1719, %v1739, 0.0
          %v1756 = vsel %vm1720, %v1739, 0.0
          %v1757 = vsel %vm1721, %v1739, 0.0
          %v1758 = vsel %vm1722, %v1739, 0.0
          %v1759 = vsel %vm1723, %v1739, 0.0
          %v1760 = vsel %vm1724, %v1739, 0.0
          %v1761 = vsel %vm1725, %v1739, 0.0
          %v1762 = vsel %vm1726, %v1739, 0.0
          %v1763 = vsel %vm1727, %v1739, 0.0
          %v1764 = vsel %vm1728, %v1739, 0.0
          %v1765 = vsel %vm1729, %v1739, 0.0
          %v1766 = vsel %vm1730, %v1739, 0.0
          %v1767 = vsel %vm1731, %v1739, 0.0
          %v1768 = vsel %vm1732, %v1739, 0.0
          %v1769 = vsel %vm1733, %v1739, 0.0
          %v1770 = vsel %vm1734, %v1739, 0.0
          %v1771 = vsel %vm1735, %v1739, 0.0
          %v1772 = vadd.f32 %v1668, %v1740
          %v1773 = vadd.f32 %v1669, %v1741
          %v1774 = vadd.f32 %v1670, %v1742
          %v1775 = vadd.f32 %v1671, %v1743
          %v1776 = vadd.f32 %v1672, %v1744
          %v1777 = vadd.f32 %v1673, %v1745
          %v1778 = vadd.f32 %v1674, %v1746
          %v1779 = vadd.f32 %v1675, %v1747
          %v1780 = vadd.f32 %v1676, %v1748
          %v1781 = vadd.f32 %v1677, %v1749
          %v1782 = vadd.f32 %v1678, %v1750
          %v1783 = vadd.f32 %v1679, %v1751
          %v1784 = vadd.f32 %v1680, %v1752
          %v1785 = vadd.f32 %v1681, %v1753
          %v1786 = vadd.f32 %v1682, %v1754
          %v1787 = vadd.f32 %v1683, %v1755
          %v1788 = vadd.f32 %v1684, %v1756
          %v1789 = vadd.f32 %v1685, %v1757
          %v1790 = vadd.f32 %v1686, %v1758
          %v1791 = vadd.f32 %v1687, %v1759
          %v1792 = vadd.f32 %v1688, %v1760
          %v1793 = vadd.f32 %v1689, %v1761
          %v1794 = vadd.f32 %v1690, %v1762
          %v1795 = vadd.f32 %v1691, %v1763
          %v1796 = vadd.f32 %v1692, %v1764
          %v1797 = vadd.f32 %v1693, %v1765
          %v1798 = vadd.f32 %v1694, %v1766
          %v1799 = vadd.f32 %v1695, %v1767
          %v1800 = vadd.f32 %v1696, %v1768
          %v1801 = vadd.f32 %v1697, %v1769
          %v1802 = vadd.f32 %v1698, %v1770
          %v1803 = vadd.f32 %v1699, %v1771
          %v1804 = vlaneseq
          %v1805 = vshrl.u32 %v1804, 7
          %v1806 = vsub.s32 3, %v1805
          %v1807 = vrot.slane %v554, %v1806
          %vm1808 = vcmp.eq.s32.totalorder %v298, %v1807
          %vm1809 = vcmp.eq.s32.totalorder %v299, %v1807
          %vm1810 = vcmp.eq.s32.totalorder %v300, %v1807
          %vm1811 = vcmp.eq.s32.totalorder %v301, %v1807
          %vm1812 = vcmp.eq.s32.totalorder %v302, %v1807
          %vm1813 = vcmp.eq.s32.totalorder %v303, %v1807
          %vm1814 = vcmp.eq.s32.totalorder %v304, %v1807
          %vm1815 = vcmp.eq.s32.totalorder %v305, %v1807
          %vm1816 = vcmp.eq.s32.totalorder %v306, %v1807
          %vm1817 = vcmp.eq.s32.totalorder %v307, %v1807
          %vm1818 = vcmp.eq.s32.totalorder %v308, %v1807
          %vm1819 = vcmp.eq.s32.totalorder %v309, %v1807
          %vm1820 = vcmp.eq.s32.totalorder %v310, %v1807
          %vm1821 = vcmp.eq.s32.totalorder %v311, %v1807
          %vm1822 = vcmp.eq.s32.totalorder %v312, %v1807
          %vm1823 = vcmp.eq.s32.totalorder %v313, %v1807
          %vm1824 = vcmp.eq.s32.totalorder %v314, %v1807
          %vm1825 = vcmp.eq.s32.totalorder %v315, %v1807
          %vm1826 = vcmp.eq.s32.totalorder %v316, %v1807
          %vm1827 = vcmp.eq.s32.totalorder %v317, %v1807
          %vm1828 = vcmp.eq.s32.totalorder %v318, %v1807
          %vm1829 = vcmp.eq.s32.totalorder %v319, %v1807
          %vm1830 = vcmp.eq.s32.totalorder %v320, %v1807
          %vm1831 = vcmp.eq.s32.totalorder %v321, %v1807
          %vm1832 = vcmp.eq.s32.totalorder %v322, %v1807
          %vm1833 = vcmp.eq.s32.totalorder %v323, %v1807
          %vm1834 = vcmp.eq.s32.totalorder %v324, %v1807
          %vm1835 = vcmp.eq.s32.totalorder %v325, %v1807
          %vm1836 = vcmp.eq.s32.totalorder %v326, %v1807
          %vm1837 = vcmp.eq.s32.totalorder %v327, %v1807
          %vm1838 = vcmp.eq.s32.totalorder %v328, %v1807
          %vm1839 = vcmp.eq.s32.totalorder %v329, %v1807
          %v1840 = vlaneseq
          %v1841 = vshrl.u32 %v1840, 7
          %v1842 = vsub.s32 6, %v1841
          %v1843 = vrot.slane %v374, %v1842
          %v1844 = vsel %vm1808, %v1843, 0.0
          %v1845 = vsel %vm1809, %v1843, 0.0
          %v1846 = vsel %vm1810, %v1843, 0.0
          %v1847 = vsel %vm1811, %v1843, 0.0
          %v1848 = vsel %vm1812, %v1843, 0.0
          %v1849 = vsel %vm1813, %v1843, 0.0
          %v1850 = vsel %vm1814, %v1843, 0.0
          %v1851 = vsel %vm1815, %v1843, 0.0
          %v1852 = vsel %vm1816, %v1843, 0.0
          %v1853 = vsel %vm1817, %v1843, 0.0
          %v1854 = vsel %vm1818, %v1843, 0.0
          %v1855 = vsel %vm1819, %v1843, 0.0
          %v1856 = vsel %vm1820, %v1843, 0.0
          %v1857 = vsel %vm1821, %v1843, 0.0
          %v1858 = vsel %vm1822, %v1843, 0.0
          %v1859 = vsel %vm1823, %v1843, 0.0
          %v1860 = vsel %vm1824, %v1843, 0.0
          %v1861 = vsel %vm1825, %v1843, 0.0
          %v1862 = vsel %vm1826, %v1843, 0.0
          %v1863 = vsel %vm1827, %v1843, 0.0
          %v1864 = vsel %vm1828, %v1843, 0.0
          %v1865 = vsel %vm1829, %v1843, 0.0
          %v1866 = vsel %vm1830, %v1843, 0.0
          %v1867 = vsel %vm1831, %v1843, 0.0
          %v1868 = vsel %vm1832, %v1843, 0.0
          %v1869 = vsel %vm1833, %v1843, 0.0
          %v1870 = vsel %vm1834, %v1843, 0.0
          %v1871 = vsel %vm1835, %v1843, 0.0
          %v1872 = vsel %vm1836, %v1843, 0.0
          %v1873 = vsel %vm1837, %v1843, 0.0
          %v1874 = vsel %vm1838, %v1843, 0.0
          %v1875 = vsel %vm1839, %v1843, 0.0
          %v1876 = vadd.f32 %v1772, %v1844
          %v1877 = vadd.f32 %v1773, %v1845
          %v1878 = vadd.f32 %v1774, %v1846
          %v1879 = vadd.f32 %v1775, %v1847
          %v1880 = vadd.f32 %v1776, %v1848
          %v1881 = vadd.f32 %v1777, %v1849
          %v1882 = vadd.f32 %v1778, %v1850
          %v1883 = vadd.f32 %v1779, %v1851
          %v1884 = vadd.f32 %v1780, %v1852
          %v1885 = vadd.f32 %v1781, %v1853
          %v1886 = vadd.f32 %v1782, %v1854
          %v1887 = vadd.f32 %v1783, %v1855
          %v1888 = vadd.f32 %v1784, %v1856
          %v1889 = vadd.f32 %v1785, %v1857
          %v1890 = vadd.f32 %v1786, %v1858
          %v1891 = vadd.f32 %v1787, %v1859
          %v1892 = vadd.f32 %v1788, %v1860
          %v1893 = vadd.f32 %v1789, %v1861
          %v1894 = vadd.f32 %v1790, %v1862
          %v1895 = vadd.f32 %v1791, %v1863
          %v1896 = vadd.f32 %v1792, %v1864
          %v1897 = vadd.f32 %v1793, %v1865
          %v1898 = vadd.f32 %v1794, %v1866
          %v1899 = vadd.f32 %v1795, %v1867
          %v1900 = vadd.f32 %v1796, %v1868
          %v1901 = vadd.f32 %v1797, %v1869
          %v1902 = vadd.f32 %v1798, %v1870
          %v1903 = vadd.f32 %v1799, %v1871
          %v1904 = vadd.f32 %v1800, %v1872
          %v1905 = vadd.f32 %v1801, %v1873
          %v1906 = vadd.f32 %v1802, %v1874
          %v1907 = vadd.f32 %v1803, %v1875
          %v1908 = vlaneseq
          %v1909 = vshrl.u32 %v1908, 7
          %v1910 = vsub.s32 3, %v1909
          %v1911 = vrot.slane %v659, %v1910
          %vm1912 = vcmp.eq.s32.totalorder %v298, %v1911
          %vm1913 = vcmp.eq.s32.totalorder %v299, %v1911
          %vm1914 = vcmp.eq.s32.totalorder %v300, %v1911
          %vm1915 = vcmp.eq.s32.totalorder %v301, %v1911
          %vm1916 = vcmp.eq.s32.totalorder %v302, %v1911
          %vm1917 = vcmp.eq.s32.totalorder %v303, %v1911
          %vm1918 = vcmp.eq.s32.totalorder %v304, %v1911
          %vm1919 = vcmp.eq.s32.totalorder %v305, %v1911
          %vm1920 = vcmp.eq.s32.totalorder %v306, %v1911
          %vm1921 = vcmp.eq.s32.totalorder %v307, %v1911
          %vm1922 = vcmp.eq.s32.totalorder %v308, %v1911
          %vm1923 = vcmp.eq.s32.totalorder %v309, %v1911
          %vm1924 = vcmp.eq.s32.totalorder %v310, %v1911
          %vm1925 = vcmp.eq.s32.totalorder %v311, %v1911
          %vm1926 = vcmp.eq.s32.totalorder %v312, %v1911
          %vm1927 = vcmp.eq.s32.totalorder %v313, %v1911
          %vm1928 = vcmp.eq.s32.totalorder %v314, %v1911
          %vm1929 = vcmp.eq.s32.totalorder %v315, %v1911
          %vm1930 = vcmp.eq.s32.totalorder %v316, %v1911
          %vm1931 = vcmp.eq.s32.totalorder %v317, %v1911
          %vm1932 = vcmp.eq.s32.totalorder %v318, %v1911
          %vm1933 = vcmp.eq.s32.totalorder %v319, %v1911
          %vm1934 = vcmp.eq.s32.totalorder %v320, %v1911
          %vm1935 = vcmp.eq.s32.totalorder %v321, %v1911
          %vm1936 = vcmp.eq.s32.totalorder %v322, %v1911
          %vm1937 = vcmp.eq.s32.totalorder %v323, %v1911
          %vm1938 = vcmp.eq.s32.totalorder %v324, %v1911
          %vm1939 = vcmp.eq.s32.totalorder %v325, %v1911
          %vm1940 = vcmp.eq.s32.totalorder %v326, %v1911
          %vm1941 = vcmp.eq.s32.totalorder %v327, %v1911
          %vm1942 = vcmp.eq.s32.totalorder %v328, %v1911
          %vm1943 = vcmp.eq.s32.totalorder %v329, %v1911
          %v1944 = vlaneseq
          %v1945 = vshrl.u32 %v1944, 7
          %v1946 = vsub.s32 7, %v1945
          %v1947 = vrot.slane %v374, %v1946
          %v1948 = vsel %vm1912, %v1947, 0.0
          %v1949 = vsel %vm1913, %v1947, 0.0
          %v1950 = vsel %vm1914, %v1947, 0.0
          %v1951 = vsel %vm1915, %v1947, 0.0
          %v1952 = vsel %vm1916, %v1947, 0.0
          %v1953 = vsel %vm1917, %v1947, 0.0
          %v1954 = vsel %vm1918, %v1947, 0.0
          %v1955 = vsel %vm1919, %v1947, 0.0
          %v1956 = vsel %vm1920, %v1947, 0.0
          %v1957 = vsel %vm1921, %v1947, 0.0
          %v1958 = vsel %vm1922, %v1947, 0.0
          %v1959 = vsel %vm1923, %v1947, 0.0
          %v1960 = vsel %vm1924, %v1947, 0.0
          %v1961 = vsel %vm1925, %v1947, 0.0
          %v1962 = vsel %vm1926, %v1947, 0.0
          %v1963 = vsel %vm1927, %v1947, 0.0
          %v1964 = vsel %vm1928, %v1947, 0.0
          %v1965 = vsel %vm1929, %v1947, 0.0
          %v1966 = vsel %vm1930, %v1947, 0.0
          %v1967 = vsel %vm1931, %v1947, 0.0
          %v1968 = vsel %vm1932, %v1947, 0.0
          %v1969 = vsel %vm1933, %v1947, 0.0
          %v1970 = vsel %vm1934, %v1947, 0.0
          %v1971 = vsel %vm1935, %v1947, 0.0
          %v1972 = vsel %vm1936, %v1947, 0.0
          %v1973 = vsel %vm1937, %v1947, 0.0
          %v1974 = vsel %vm1938, %v1947, 0.0
          %v1975 = vsel %vm1939, %v1947, 0.0
          %v1976 = vsel %vm1940, %v1947, 0.0
          %v1977 = vsel %vm1941, %v1947, 0.0
          %v1978 = vsel %vm1942, %v1947, 0.0
          %v1979 = vsel %vm1943, %v1947, 0.0
          %v1980 = vadd.f32 %v1876, %v1948
          %v1981 = vadd.f32 %v1877, %v1949
          %v1982 = vadd.f32 %v1878, %v1950
          %v1983 = vadd.f32 %v1879, %v1951
          %v1984 = vadd.f32 %v1880, %v1952
          %v1985 = vadd.f32 %v1881, %v1953
          %v1986 = vadd.f32 %v1882, %v1954
          %v1987 = vadd.f32 %v1883, %v1955
          %v1988 = vadd.f32 %v1884, %v1956
          %v1989 = vadd.f32 %v1885, %v1957
          %v1990 = vadd.f32 %v1886, %v1958
          %v1991 = vadd.f32 %v1887, %v1959
          %v1992 = vadd.f32 %v1888, %v1960
          %v1993 = vadd.f32 %v1889, %v1961
          %v1994 = vadd.f32 %v1890, %v1962
          %v1995 = vadd.f32 %v1891, %v1963
          %v1996 = vadd.f32 %v1892, %v1964
          %v1997 = vadd.f32 %v1893, %v1965
          %v1998 = vadd.f32 %v1894, %v1966
          %v1999 = vadd.f32 %v1895, %v1967
          %v2000 = vadd.f32 %v1896, %v1968
          %v2001 = vadd.f32 %v1897, %v1969
          %v2002 = vadd.f32 %v1898, %v1970
          %v2003 = vadd.f32 %v1899, %v1971
          %v2004 = vadd.f32 %v1900, %v1972
          %v2005 = vadd.f32 %v1901, %v1973
          %v2006 = vadd.f32 %v1902, %v1974
          %v2007 = vadd.f32 %v1903, %v1975
          %v2008 = vadd.f32 %v1904, %v1976
          %v2009 = vadd.f32 %v1905, %v1977
          %v2010 = vadd.f32 %v1906, %v1978
          %v2011 = vadd.f32 %v1907, %v1979
          %v2012 = vadd.f32 %v1596, %v1980
          %v2013 = vadd.f32 %v1597, %v1981
          %v2014 = vadd.f32 %v1598, %v1982
          %v2015 = vadd.f32 %v1599, %v1983
          %v2016 = vadd.f32 %v1600, %v1984
          %v2017 = vadd.f32 %v1601, %v1985
          %v2018 = vadd.f32 %v1602, %v1986
          %v2019 = vadd.f32 %v1603, %v1987
          %v2020 = vadd.f32 %v1604, %v1988
          %v2021 = vadd.f32 %v1605, %v1989
          %v2022 = vadd.f32 %v1606, %v1990
          %v2023 = vadd.f32 %v1607, %v1991
          %v2024 = vadd.f32 %v1608, %v1992
          %v2025 = vadd.f32 %v1609, %v1993
          %v2026 = vadd.f32 %v1610, %v1994
          %v2027 = vadd.f32 %v1611, %v1995
          %v2028 = vadd.f32 %v1612, %v1996
          %v2029 = vadd.f32 %v1613, %v1997
          %v2030 = vadd.f32 %v1614, %v1998
          %v2031 = vadd.f32 %v1615, %v1999
          %v2032 = vadd.f32 %v1616, %v2000
          %v2033 = vadd.f32 %v1617, %v2001
          %v2034 = vadd.f32 %v1618, %v2002
          %v2035 = vadd.f32 %v1619, %v2003
          %v2036 = vadd.f32 %v1620, %v2004
          %v2037 = vadd.f32 %v1621, %v2005
          %v2038 = vadd.f32 %v1622, %v2006
          %v2039 = vadd.f32 %v1623, %v2007
          %v2040 = vadd.f32 %v1624, %v2008
          %v2041 = vadd.f32 %v1625, %v2009
          %v2042 = vadd.f32 %v1626, %v2010
          %v2043 = vadd.f32 %v1627, %v2011
          %v2044 = vlaneseq
          %v2045 = vshrl.u32 %v2044, 7
          %v2046 = vsub.s32 4, %v2045
          %v2047 = vrot.slane %v370, %v2046
          %vm2048 = vcmp.eq.s32.totalorder %v298, %v2047
          %vm2049 = vcmp.eq.s32.totalorder %v299, %v2047
          %vm2050 = vcmp.eq.s32.totalorder %v300, %v2047
          %vm2051 = vcmp.eq.s32.totalorder %v301, %v2047
          %vm2052 = vcmp.eq.s32.totalorder %v302, %v2047
          %vm2053 = vcmp.eq.s32.totalorder %v303, %v2047
          %vm2054 = vcmp.eq.s32.totalorder %v304, %v2047
          %vm2055 = vcmp.eq.s32.totalorder %v305, %v2047
          %vm2056 = vcmp.eq.s32.totalorder %v306, %v2047
          %vm2057 = vcmp.eq.s32.totalorder %v307, %v2047
          %vm2058 = vcmp.eq.s32.totalorder %v308, %v2047
          %vm2059 = vcmp.eq.s32.totalorder %v309, %v2047
          %vm2060 = vcmp.eq.s32.totalorder %v310, %v2047
          %vm2061 = vcmp.eq.s32.totalorder %v311, %v2047
          %vm2062 = vcmp.eq.s32.totalorder %v312, %v2047
          %vm2063 = vcmp.eq.s32.totalorder %v313, %v2047
          %vm2064 = vcmp.eq.s32.totalorder %v314, %v2047
          %vm2065 = vcmp.eq.s32.totalorder %v315, %v2047
          %vm2066 = vcmp.eq.s32.totalorder %v316, %v2047
          %vm2067 = vcmp.eq.s32.totalorder %v317, %v2047
          %vm2068 = vcmp.eq.s32.totalorder %v318, %v2047
          %vm2069 = vcmp.eq.s32.totalorder %v319, %v2047
          %vm2070 = vcmp.eq.s32.totalorder %v320, %v2047
          %vm2071 = vcmp.eq.s32.totalorder %v321, %v2047
          %vm2072 = vcmp.eq.s32.totalorder %v322, %v2047
          %vm2073 = vcmp.eq.s32.totalorder %v323, %v2047
          %vm2074 = vcmp.eq.s32.totalorder %v324, %v2047
          %vm2075 = vcmp.eq.s32.totalorder %v325, %v2047
          %vm2076 = vcmp.eq.s32.totalorder %v326, %v2047
          %vm2077 = vcmp.eq.s32.totalorder %v327, %v2047
          %vm2078 = vcmp.eq.s32.totalorder %v328, %v2047
          %vm2079 = vcmp.eq.s32.totalorder %v329, %v2047
          %v2080 = vlaneseq
          %v2081 = vshrl.u32 %v2080, 7
          %v2082 = vsub.s32 0, %v2081
          %v2083 = vrot.slane %v375, %v2082
          %v2084 = vsel %vm2048, %v2083, 0.0
          %v2085 = vsel %vm2049, %v2083, 0.0
          %v2086 = vsel %vm2050, %v2083, 0.0
          %v2087 = vsel %vm2051, %v2083, 0.0
          %v2088 = vsel %vm2052, %v2083, 0.0
          %v2089 = vsel %vm2053, %v2083, 0.0
          %v2090 = vsel %vm2054, %v2083, 0.0
          %v2091 = vsel %vm2055, %v2083, 0.0
          %v2092 = vsel %vm2056, %v2083, 0.0
          %v2093 = vsel %vm2057, %v2083, 0.0
          %v2094 = vsel %vm2058, %v2083, 0.0
          %v2095 = vsel %vm2059, %v2083, 0.0
          %v2096 = vsel %vm2060, %v2083, 0.0
          %v2097 = vsel %vm2061, %v2083, 0.0
          %v2098 = vsel %vm2062, %v2083, 0.0
          %v2099 = vsel %vm2063, %v2083, 0.0
          %v2100 = vsel %vm2064, %v2083, 0.0
          %v2101 = vsel %vm2065, %v2083, 0.0
          %v2102 = vsel %vm2066, %v2083, 0.0
          %v2103 = vsel %vm2067, %v2083, 0.0
          %v2104 = vsel %vm2068, %v2083, 0.0
          %v2105 = vsel %vm2069, %v2083, 0.0
          %v2106 = vsel %vm2070, %v2083, 0.0
          %v2107 = vsel %vm2071, %v2083, 0.0
          %v2108 = vsel %vm2072, %v2083, 0.0
          %v2109 = vsel %vm2073, %v2083, 0.0
          %v2110 = vsel %vm2074, %v2083, 0.0
          %v2111 = vsel %vm2075, %v2083, 0.0
          %v2112 = vsel %vm2076, %v2083, 0.0
          %v2113 = vsel %vm2077, %v2083, 0.0
          %v2114 = vsel %vm2078, %v2083, 0.0
          %v2115 = vsel %vm2079, %v2083, 0.0
          %v2116 = vlaneseq
          %v2117 = vshrl.u32 %v2116, 7
          %v2118 = vsub.s32 4, %v2117
          %v2119 = vrot.slane %v449, %v2118
          %vm2120 = vcmp.eq.s32.totalorder %v298, %v2119
          %vm2121 = vcmp.eq.s32.totalorder %v299, %v2119
          %vm2122 = vcmp.eq.s32.totalorder %v300, %v2119
          %vm2123 = vcmp.eq.s32.totalorder %v301, %v2119
          %vm2124 = vcmp.eq.s32.totalorder %v302, %v2119
          %vm2125 = vcmp.eq.s32.totalorder %v303, %v2119
          %vm2126 = vcmp.eq.s32.totalorder %v304, %v2119
          %vm2127 = vcmp.eq.s32.totalorder %v305, %v2119
          %vm2128 = vcmp.eq.s32.totalorder %v306, %v2119
          %vm2129 = vcmp.eq.s32.totalorder %v307, %v2119
          %vm2130 = vcmp.eq.s32.totalorder %v308, %v2119
          %vm2131 = vcmp.eq.s32.totalorder %v309, %v2119
          %vm2132 = vcmp.eq.s32.totalorder %v310, %v2119
          %vm2133 = vcmp.eq.s32.totalorder %v311, %v2119
          %vm2134 = vcmp.eq.s32.totalorder %v312, %v2119
          %vm2135 = vcmp.eq.s32.totalorder %v313, %v2119
          %vm2136 = vcmp.eq.s32.totalorder %v314, %v2119
          %vm2137 = vcmp.eq.s32.totalorder %v315, %v2119
          %vm2138 = vcmp.eq.s32.totalorder %v316, %v2119
          %vm2139 = vcmp.eq.s32.totalorder %v317, %v2119
          %vm2140 = vcmp.eq.s32.totalorder %v318, %v2119
          %vm2141 = vcmp.eq.s32.totalorder %v319, %v2119
          %vm2142 = vcmp.eq.s32.totalorder %v320, %v2119
          %vm2143 = vcmp.eq.s32.totalorder %v321, %v2119
          %vm2144 = vcmp.eq.s32.totalorder %v322, %v2119
          %vm2145 = vcmp.eq.s32.totalorder %v323, %v2119
          %vm2146 = vcmp.eq.s32.totalorder %v324, %v2119
          %vm2147 = vcmp.eq.s32.totalorder %v325, %v2119
          %vm2148 = vcmp.eq.s32.totalorder %v326, %v2119
          %vm2149 = vcmp.eq.s32.totalorder %v327, %v2119
          %vm2150 = vcmp.eq.s32.totalorder %v328, %v2119
          %vm2151 = vcmp.eq.s32.totalorder %v329, %v2119
          %v2152 = vlaneseq
          %v2153 = vshrl.u32 %v2152, 7
          %v2154 = vsub.s32 1, %v2153
          %v2155 = vrot.slane %v375, %v2154
          %v2156 = vsel %vm2120, %v2155, 0.0
          %v2157 = vsel %vm2121, %v2155, 0.0
          %v2158 = vsel %vm2122, %v2155, 0.0
          %v2159 = vsel %vm2123, %v2155, 0.0
          %v2160 = vsel %vm2124, %v2155, 0.0
          %v2161 = vsel %vm2125, %v2155, 0.0
          %v2162 = vsel %vm2126, %v2155, 0.0
          %v2163 = vsel %vm2127, %v2155, 0.0
          %v2164 = vsel %vm2128, %v2155, 0.0
          %v2165 = vsel %vm2129, %v2155, 0.0
          %v2166 = vsel %vm2130, %v2155, 0.0
          %v2167 = vsel %vm2131, %v2155, 0.0
          %v2168 = vsel %vm2132, %v2155, 0.0
          %v2169 = vsel %vm2133, %v2155, 0.0
          %v2170 = vsel %vm2134, %v2155, 0.0
          %v2171 = vsel %vm2135, %v2155, 0.0
          %v2172 = vsel %vm2136, %v2155, 0.0
          %v2173 = vsel %vm2137, %v2155, 0.0
          %v2174 = vsel %vm2138, %v2155, 0.0
          %v2175 = vsel %vm2139, %v2155, 0.0
          %v2176 = vsel %vm2140, %v2155, 0.0
          %v2177 = vsel %vm2141, %v2155, 0.0
          %v2178 = vsel %vm2142, %v2155, 0.0
          %v2179 = vsel %vm2143, %v2155, 0.0
          %v2180 = vsel %vm2144, %v2155, 0.0
          %v2181 = vsel %vm2145, %v2155, 0.0
          %v2182 = vsel %vm2146, %v2155, 0.0
          %v2183 = vsel %vm2147, %v2155, 0.0
          %v2184 = vsel %vm2148, %v2155, 0.0
          %v2185 = vsel %vm2149, %v2155, 0.0
          %v2186 = vsel %vm2150, %v2155, 0.0
          %v2187 = vsel %vm2151, %v2155, 0.0
          %v2188 = vadd.f32 %v2084, %v2156
          %v2189 = vadd.f32 %v2085, %v2157
          %v2190 = vadd.f32 %v2086, %v2158
          %v2191 = vadd.f32 %v2087, %v2159
          %v2192 = vadd.f32 %v2088, %v2160
          %v2193 = vadd.f32 %v2089, %v2161
          %v2194 = vadd.f32 %v2090, %v2162
          %v2195 = vadd.f32 %v2091, %v2163
          %v2196 = vadd.f32 %v2092, %v2164
          %v2197 = vadd.f32 %v2093, %v2165
          %v2198 = vadd.f32 %v2094, %v2166
          %v2199 = vadd.f32 %v2095, %v2167
          %v2200 = vadd.f32 %v2096, %v2168
          %v2201 = vadd.f32 %v2097, %v2169
          %v2202 = vadd.f32 %v2098, %v2170
          %v2203 = vadd.f32 %v2099, %v2171
          %v2204 = vadd.f32 %v2100, %v2172
          %v2205 = vadd.f32 %v2101, %v2173
          %v2206 = vadd.f32 %v2102, %v2174
          %v2207 = vadd.f32 %v2103, %v2175
          %v2208 = vadd.f32 %v2104, %v2176
          %v2209 = vadd.f32 %v2105, %v2177
          %v2210 = vadd.f32 %v2106, %v2178
          %v2211 = vadd.f32 %v2107, %v2179
          %v2212 = vadd.f32 %v2108, %v2180
          %v2213 = vadd.f32 %v2109, %v2181
          %v2214 = vadd.f32 %v2110, %v2182
          %v2215 = vadd.f32 %v2111, %v2183
          %v2216 = vadd.f32 %v2112, %v2184
          %v2217 = vadd.f32 %v2113, %v2185
          %v2218 = vadd.f32 %v2114, %v2186
          %v2219 = vadd.f32 %v2115, %v2187
          %v2220 = vlaneseq
          %v2221 = vshrl.u32 %v2220, 7
          %v2222 = vsub.s32 4, %v2221
          %v2223 = vrot.slane %v554, %v2222
          %vm2224 = vcmp.eq.s32.totalorder %v298, %v2223
          %vm2225 = vcmp.eq.s32.totalorder %v299, %v2223
          %vm2226 = vcmp.eq.s32.totalorder %v300, %v2223
          %vm2227 = vcmp.eq.s32.totalorder %v301, %v2223
          %vm2228 = vcmp.eq.s32.totalorder %v302, %v2223
          %vm2229 = vcmp.eq.s32.totalorder %v303, %v2223
          %vm2230 = vcmp.eq.s32.totalorder %v304, %v2223
          %vm2231 = vcmp.eq.s32.totalorder %v305, %v2223
          %vm2232 = vcmp.eq.s32.totalorder %v306, %v2223
          %vm2233 = vcmp.eq.s32.totalorder %v307, %v2223
          %vm2234 = vcmp.eq.s32.totalorder %v308, %v2223
          %vm2235 = vcmp.eq.s32.totalorder %v309, %v2223
          %vm2236 = vcmp.eq.s32.totalorder %v310, %v2223
          %vm2237 = vcmp.eq.s32.totalorder %v311, %v2223
          %vm2238 = vcmp.eq.s32.totalorder %v312, %v2223
          %vm2239 = vcmp.eq.s32.totalorder %v313, %v2223
          %vm2240 = vcmp.eq.s32.totalorder %v314, %v2223
          %vm2241 = vcmp.eq.s32.totalorder %v315, %v2223
          %vm2242 = vcmp.eq.s32.totalorder %v316, %v2223
          %vm2243 = vcmp.eq.s32.totalorder %v317, %v2223
          %vm2244 = vcmp.eq.s32.totalorder %v318, %v2223
          %vm2245 = vcmp.eq.s32.totalorder %v319, %v2223
          %vm2246 = vcmp.eq.s32.totalorder %v320, %v2223
          %vm2247 = vcmp.eq.s32.totalorder %v321, %v2223
          %vm2248 = vcmp.eq.s32.totalorder %v322, %v2223
          %vm2249 = vcmp.eq.s32.totalorder %v323, %v2223
          %vm2250 = vcmp.eq.s32.totalorder %v324, %v2223
          %vm2251 = vcmp.eq.s32.totalorder %v325, %v2223
          %vm2252 = vcmp.eq.s32.totalorder %v326, %v2223
          %vm2253 = vcmp.eq.s32.totalorder %v327, %v2223
          %vm2254 = vcmp.eq.s32.totalorder %v328, %v2223
          %vm2255 = vcmp.eq.s32.totalorder %v329, %v2223
          %v2256 = vlaneseq
          %v2257 = vshrl.u32 %v2256, 7
          %v2258 = vsub.s32 2, %v2257
          %v2259 = vrot.slane %v375, %v2258
          %v2260 = vsel %vm2224, %v2259, 0.0
          %v2261 = vsel %vm2225, %v2259, 0.0
          %v2262 = vsel %vm2226, %v2259, 0.0
          %v2263 = vsel %vm2227, %v2259, 0.0
          %v2264 = vsel %vm2228, %v2259, 0.0
          %v2265 = vsel %vm2229, %v2259, 0.0
          %v2266 = vsel %vm2230, %v2259, 0.0
          %v2267 = vsel %vm2231, %v2259, 0.0
          %v2268 = vsel %vm2232, %v2259, 0.0
          %v2269 = vsel %vm2233, %v2259, 0.0
          %v2270 = vsel %vm2234, %v2259, 0.0
          %v2271 = vsel %vm2235, %v2259, 0.0
          %v2272 = vsel %vm2236, %v2259, 0.0
          %v2273 = vsel %vm2237, %v2259, 0.0
          %v2274 = vsel %vm2238, %v2259, 0.0
          %v2275 = vsel %vm2239, %v2259, 0.0
          %v2276 = vsel %vm2240, %v2259, 0.0
          %v2277 = vsel %vm2241, %v2259, 0.0
          %v2278 = vsel %vm2242, %v2259, 0.0
          %v2279 = vsel %vm2243, %v2259, 0.0
          %v2280 = vsel %vm2244, %v2259, 0.0
          %v2281 = vsel %vm2245, %v2259, 0.0
          %v2282 = vsel %vm2246, %v2259, 0.0
          %v2283 = vsel %vm2247, %v2259, 0.0
          %v2284 = vsel %vm2248, %v2259, 0.0
          %v2285 = vsel %vm2249, %v2259, 0.0
          %v2286 = vsel %vm2250, %v2259, 0.0
          %v2287 = vsel %vm2251, %v2259, 0.0
          %v2288 = vsel %vm2252, %v2259, 0.0
          %v2289 = vsel %vm2253, %v2259, 0.0
          %v2290 = vsel %vm2254, %v2259, 0.0
          %v2291 = vsel %vm2255, %v2259, 0.0
          %v2292 = vadd.f32 %v2188, %v2260
          %v2293 = vadd.f32 %v2189, %v2261
          %v2294 = vadd.f32 %v2190, %v2262
          %v2295 = vadd.f32 %v2191, %v2263
          %v2296 = vadd.f32 %v2192, %v2264
          %v2297 = vadd.f32 %v2193, %v2265
          %v2298 = vadd.f32 %v2194, %v2266
          %v2299 = vadd.f32 %v2195, %v2267
          %v2300 = vadd.f32 %v2196, %v2268
          %v2301 = vadd.f32 %v2197, %v2269
          %v2302 = vadd.f32 %v2198, %v2270
          %v2303 = vadd.f32 %v2199, %v2271
          %v2304 = vadd.f32 %v2200, %v2272
          %v2305 = vadd.f32 %v2201, %v2273
          %v2306 = vadd.f32 %v2202, %v2274
          %v2307 = vadd.f32 %v2203, %v2275
          %v2308 = vadd.f32 %v2204, %v2276
          %v2309 = vadd.f32 %v2205, %v2277
          %v2310 = vadd.f32 %v2206, %v2278
          %v2311 = vadd.f32 %v2207, %v2279
          %v2312 = vadd.f32 %v2208, %v2280
          %v2313 = vadd.f32 %v2209, %v2281
          %v2314 = vadd.f32 %v2210, %v2282
          %v2315 = vadd.f32 %v2211, %v2283
          %v2316 = vadd.f32 %v2212, %v2284
          %v2317 = vadd.f32 %v2213, %v2285
          %v2318 = vadd.f32 %v2214, %v2286
          %v2319 = vadd.f32 %v2215, %v2287
          %v2320 = vadd.f32 %v2216, %v2288
          %v2321 = vadd.f32 %v2217, %v2289
          %v2322 = vadd.f32 %v2218, %v2290
          %v2323 = vadd.f32 %v2219, %v2291
          %v2324 = vlaneseq
          %v2325 = vshrl.u32 %v2324, 7
          %v2326 = vsub.s32 4, %v2325
          %v2327 = vrot.slane %v659, %v2326
          %vm2328 = vcmp.eq.s32.totalorder %v298, %v2327
          %vm2329 = vcmp.eq.s32.totalorder %v299, %v2327
          %vm2330 = vcmp.eq.s32.totalorder %v300, %v2327
          %vm2331 = vcmp.eq.s32.totalorder %v301, %v2327
          %vm2332 = vcmp.eq.s32.totalorder %v302, %v2327
          %vm2333 = vcmp.eq.s32.totalorder %v303, %v2327
          %vm2334 = vcmp.eq.s32.totalorder %v304, %v2327
          %vm2335 = vcmp.eq.s32.totalorder %v305, %v2327
          %vm2336 = vcmp.eq.s32.totalorder %v306, %v2327
          %vm2337 = vcmp.eq.s32.totalorder %v307, %v2327
          %vm2338 = vcmp.eq.s32.totalorder %v308, %v2327
          %vm2339 = vcmp.eq.s32.totalorder %v309, %v2327
          %vm2340 = vcmp.eq.s32.totalorder %v310, %v2327
          %vm2341 = vcmp.eq.s32.totalorder %v311, %v2327
          %vm2342 = vcmp.eq.s32.totalorder %v312, %v2327
          %vm2343 = vcmp.eq.s32.totalorder %v313, %v2327
          %vm2344 = vcmp.eq.s32.totalorder %v314, %v2327
          %vm2345 = vcmp.eq.s32.totalorder %v315, %v2327
          %vm2346 = vcmp.eq.s32.totalorder %v316, %v2327
          %vm2347 = vcmp.eq.s32.totalorder %v317, %v2327
          %vm2348 = vcmp.eq.s32.totalorder %v318, %v2327
          %vm2349 = vcmp.eq.s32.totalorder %v319, %v2327
          %vm2350 = vcmp.eq.s32.totalorder %v320, %v2327
          %vm2351 = vcmp.eq.s32.totalorder %v321, %v2327
          %vm2352 = vcmp.eq.s32.totalorder %v322, %v2327
          %vm2353 = vcmp.eq.s32.totalorder %v323, %v2327
          %vm2354 = vcmp.eq.s32.totalorder %v324, %v2327
          %vm2355 = vcmp.eq.s32.totalorder %v325, %v2327
          %vm2356 = vcmp.eq.s32.totalorder %v326, %v2327
          %vm2357 = vcmp.eq.s32.totalorder %v327, %v2327
          %vm2358 = vcmp.eq.s32.totalorder %v328, %v2327
          %vm2359 = vcmp.eq.s32.totalorder %v329, %v2327
          %v2360 = vlaneseq
          %v2361 = vshrl.u32 %v2360, 7
          %v2362 = vsub.s32 3, %v2361
          %v2363 = vrot.slane %v375, %v2362
          %v2364 = vsel %vm2328, %v2363, 0.0
          %v2365 = vsel %vm2329, %v2363, 0.0
          %v2366 = vsel %vm2330, %v2363, 0.0
          %v2367 = vsel %vm2331, %v2363, 0.0
          %v2368 = vsel %vm2332, %v2363, 0.0
          %v2369 = vsel %vm2333, %v2363, 0.0
          %v2370 = vsel %vm2334, %v2363, 0.0
          %v2371 = vsel %vm2335, %v2363, 0.0
          %v2372 = vsel %vm2336, %v2363, 0.0
          %v2373 = vsel %vm2337, %v2363, 0.0
          %v2374 = vsel %vm2338, %v2363, 0.0
          %v2375 = vsel %vm2339, %v2363, 0.0
          %v2376 = vsel %vm2340, %v2363, 0.0
          %v2377 = vsel %vm2341, %v2363, 0.0
          %v2378 = vsel %vm2342, %v2363, 0.0
          %v2379 = vsel %vm2343, %v2363, 0.0
          %v2380 = vsel %vm2344, %v2363, 0.0
          %v2381 = vsel %vm2345, %v2363, 0.0
          %v2382 = vsel %vm2346, %v2363, 0.0
          %v2383 = vsel %vm2347, %v2363, 0.0
          %v2384 = vsel %vm2348, %v2363, 0.0
          %v2385 = vsel %vm2349, %v2363, 0.0
          %v2386 = vsel %vm2350, %v2363, 0.0
          %v2387 = vsel %vm2351, %v2363, 0.0
          %v2388 = vsel %vm2352, %v2363, 0.0
          %v2389 = vsel %vm2353, %v2363, 0.0
          %v2390 = vsel %vm2354, %v2363, 0.0
          %v2391 = vsel %vm2355, %v2363, 0.0
          %v2392 = vsel %vm2356, %v2363, 0.0
          %v2393 = vsel %vm2357, %v2363, 0.0
          %v2394 = vsel %vm2358, %v2363, 0.0
          %v2395 = vsel %vm2359, %v2363, 0.0
          %v2396 = vadd.f32 %v2292, %v2364
          %v2397 = vadd.f32 %v2293, %v2365
          %v2398 = vadd.f32 %v2294, %v2366
          %v2399 = vadd.f32 %v2295, %v2367
          %v2400 = vadd.f32 %v2296, %v2368
          %v2401 = vadd.f32 %v2297, %v2369
          %v2402 = vadd.f32 %v2298, %v2370
          %v2403 = vadd.f32 %v2299, %v2371
          %v2404 = vadd.f32 %v2300, %v2372
          %v2405 = vadd.f32 %v2301, %v2373
          %v2406 = vadd.f32 %v2302, %v2374
          %v2407 = vadd.f32 %v2303, %v2375
          %v2408 = vadd.f32 %v2304, %v2376
          %v2409 = vadd.f32 %v2305, %v2377
          %v2410 = vadd.f32 %v2306, %v2378
          %v2411 = vadd.f32 %v2307, %v2379
          %v2412 = vadd.f32 %v2308, %v2380
          %v2413 = vadd.f32 %v2309, %v2381
          %v2414 = vadd.f32 %v2310, %v2382
          %v2415 = vadd.f32 %v2311, %v2383
          %v2416 = vadd.f32 %v2312, %v2384
          %v2417 = vadd.f32 %v2313, %v2385
          %v2418 = vadd.f32 %v2314, %v2386
          %v2419 = vadd.f32 %v2315, %v2387
          %v2420 = vadd.f32 %v2316, %v2388
          %v2421 = vadd.f32 %v2317, %v2389
          %v2422 = vadd.f32 %v2318, %v2390
          %v2423 = vadd.f32 %v2319, %v2391
          %v2424 = vadd.f32 %v2320, %v2392
          %v2425 = vadd.f32 %v2321, %v2393
          %v2426 = vadd.f32 %v2322, %v2394
          %v2427 = vadd.f32 %v2323, %v2395
          %v2428 = vadd.f32 %v2012, %v2396
          %v2429 = vadd.f32 %v2013, %v2397
          %v2430 = vadd.f32 %v2014, %v2398
          %v2431 = vadd.f32 %v2015, %v2399
          %v2432 = vadd.f32 %v2016, %v2400
          %v2433 = vadd.f32 %v2017, %v2401
          %v2434 = vadd.f32 %v2018, %v2402
          %v2435 = vadd.f32 %v2019, %v2403
          %v2436 = vadd.f32 %v2020, %v2404
          %v2437 = vadd.f32 %v2021, %v2405
          %v2438 = vadd.f32 %v2022, %v2406
          %v2439 = vadd.f32 %v2023, %v2407
          %v2440 = vadd.f32 %v2024, %v2408
          %v2441 = vadd.f32 %v2025, %v2409
          %v2442 = vadd.f32 %v2026, %v2410
          %v2443 = vadd.f32 %v2027, %v2411
          %v2444 = vadd.f32 %v2028, %v2412
          %v2445 = vadd.f32 %v2029, %v2413
          %v2446 = vadd.f32 %v2030, %v2414
          %v2447 = vadd.f32 %v2031, %v2415
          %v2448 = vadd.f32 %v2032, %v2416
          %v2449 = vadd.f32 %v2033, %v2417
          %v2450 = vadd.f32 %v2034, %v2418
          %v2451 = vadd.f32 %v2035, %v2419
          %v2452 = vadd.f32 %v2036, %v2420
          %v2453 = vadd.f32 %v2037, %v2421
          %v2454 = vadd.f32 %v2038, %v2422
          %v2455 = vadd.f32 %v2039, %v2423
          %v2456 = vadd.f32 %v2040, %v2424
          %v2457 = vadd.f32 %v2041, %v2425
          %v2458 = vadd.f32 %v2042, %v2426
          %v2459 = vadd.f32 %v2043, %v2427
          %v2460 = vlaneseq
          %v2461 = vshrl.u32 %v2460, 7
          %v2462 = vsub.s32 5, %v2461
          %v2463 = vrot.slane %v370, %v2462
          %vm2464 = vcmp.eq.s32.totalorder %v298, %v2463
          %vm2465 = vcmp.eq.s32.totalorder %v299, %v2463
          %vm2466 = vcmp.eq.s32.totalorder %v300, %v2463
          %vm2467 = vcmp.eq.s32.totalorder %v301, %v2463
          %vm2468 = vcmp.eq.s32.totalorder %v302, %v2463
          %vm2469 = vcmp.eq.s32.totalorder %v303, %v2463
          %vm2470 = vcmp.eq.s32.totalorder %v304, %v2463
          %vm2471 = vcmp.eq.s32.totalorder %v305, %v2463
          %vm2472 = vcmp.eq.s32.totalorder %v306, %v2463
          %vm2473 = vcmp.eq.s32.totalorder %v307, %v2463
          %vm2474 = vcmp.eq.s32.totalorder %v308, %v2463
          %vm2475 = vcmp.eq.s32.totalorder %v309, %v2463
          %vm2476 = vcmp.eq.s32.totalorder %v310, %v2463
          %vm2477 = vcmp.eq.s32.totalorder %v311, %v2463
          %vm2478 = vcmp.eq.s32.totalorder %v312, %v2463
          %vm2479 = vcmp.eq.s32.totalorder %v313, %v2463
          %vm2480 = vcmp.eq.s32.totalorder %v314, %v2463
          %vm2481 = vcmp.eq.s32.totalorder %v315, %v2463
          %vm2482 = vcmp.eq.s32.totalorder %v316, %v2463
          %vm2483 = vcmp.eq.s32.totalorder %v317, %v2463
          %vm2484 = vcmp.eq.s32.totalorder %v318, %v2463
          %vm2485 = vcmp.eq.s32.totalorder %v319, %v2463
          %vm2486 = vcmp.eq.s32.totalorder %v320, %v2463
          %vm2487 = vcmp.eq.s32.totalorder %v321, %v2463
          %vm2488 = vcmp.eq.s32.totalorder %v322, %v2463
          %vm2489 = vcmp.eq.s32.totalorder %v323, %v2463
          %vm2490 = vcmp.eq.s32.totalorder %v324, %v2463
          %vm2491 = vcmp.eq.s32.totalorder %v325, %v2463
          %vm2492 = vcmp.eq.s32.totalorder %v326, %v2463
          %vm2493 = vcmp.eq.s32.totalorder %v327, %v2463
          %vm2494 = vcmp.eq.s32.totalorder %v328, %v2463
          %vm2495 = vcmp.eq.s32.totalorder %v329, %v2463
          %v2496 = vlaneseq
          %v2497 = vshrl.u32 %v2496, 7
          %v2498 = vsub.s32 4, %v2497
          %v2499 = vrot.slane %v375, %v2498
          %v2500 = vsel %vm2464, %v2499, 0.0
          %v2501 = vsel %vm2465, %v2499, 0.0
          %v2502 = vsel %vm2466, %v2499, 0.0
          %v2503 = vsel %vm2467, %v2499, 0.0
          %v2504 = vsel %vm2468, %v2499, 0.0
          %v2505 = vsel %vm2469, %v2499, 0.0
          %v2506 = vsel %vm2470, %v2499, 0.0
          %v2507 = vsel %vm2471, %v2499, 0.0
          %v2508 = vsel %vm2472, %v2499, 0.0
          %v2509 = vsel %vm2473, %v2499, 0.0
          %v2510 = vsel %vm2474, %v2499, 0.0
          %v2511 = vsel %vm2475, %v2499, 0.0
          %v2512 = vsel %vm2476, %v2499, 0.0
          %v2513 = vsel %vm2477, %v2499, 0.0
          %v2514 = vsel %vm2478, %v2499, 0.0
          %v2515 = vsel %vm2479, %v2499, 0.0
          %v2516 = vsel %vm2480, %v2499, 0.0
          %v2517 = vsel %vm2481, %v2499, 0.0
          %v2518 = vsel %vm2482, %v2499, 0.0
          %v2519 = vsel %vm2483, %v2499, 0.0
          %v2520 = vsel %vm2484, %v2499, 0.0
          %v2521 = vsel %vm2485, %v2499, 0.0
          %v2522 = vsel %vm2486, %v2499, 0.0
          %v2523 = vsel %vm2487, %v2499, 0.0
          %v2524 = vsel %vm2488, %v2499, 0.0
          %v2525 = vsel %vm2489, %v2499, 0.0
          %v2526 = vsel %vm2490, %v2499, 0.0
          %v2527 = vsel %vm2491, %v2499, 0.0
          %v2528 = vsel %vm2492, %v2499, 0.0
          %v2529 = vsel %vm2493, %v2499, 0.0
          %v2530 = vsel %vm2494, %v2499, 0.0
          %v2531 = vsel %vm2495, %v2499, 0.0
          %v2532 = vlaneseq
          %v2533 = vshrl.u32 %v2532, 7
          %v2534 = vsub.s32 5, %v2533
          %v2535 = vrot.slane %v449, %v2534
          %vm2536 = vcmp.eq.s32.totalorder %v298, %v2535
          %vm2537 = vcmp.eq.s32.totalorder %v299, %v2535
          %vm2538 = vcmp.eq.s32.totalorder %v300, %v2535
          %vm2539 = vcmp.eq.s32.totalorder %v301, %v2535
          %vm2540 = vcmp.eq.s32.totalorder %v302, %v2535
          %vm2541 = vcmp.eq.s32.totalorder %v303, %v2535
          %vm2542 = vcmp.eq.s32.totalorder %v304, %v2535
          %vm2543 = vcmp.eq.s32.totalorder %v305, %v2535
          %vm2544 = vcmp.eq.s32.totalorder %v306, %v2535
          %vm2545 = vcmp.eq.s32.totalorder %v307, %v2535
          %vm2546 = vcmp.eq.s32.totalorder %v308, %v2535
          %vm2547 = vcmp.eq.s32.totalorder %v309, %v2535
          %vm2548 = vcmp.eq.s32.totalorder %v310, %v2535
          %vm2549 = vcmp.eq.s32.totalorder %v311, %v2535
          %vm2550 = vcmp.eq.s32.totalorder %v312, %v2535
          %vm2551 = vcmp.eq.s32.totalorder %v313, %v2535
          %vm2552 = vcmp.eq.s32.totalorder %v314, %v2535
          %vm2553 = vcmp.eq.s32.totalorder %v315, %v2535
          %vm2554 = vcmp.eq.s32.totalorder %v316, %v2535
          %vm2555 = vcmp.eq.s32.totalorder %v317, %v2535
          %vm2556 = vcmp.eq.s32.totalorder %v318, %v2535
          %vm2557 = vcmp.eq.s32.totalorder %v319, %v2535
          %vm2558 = vcmp.eq.s32.totalorder %v320, %v2535
          %vm2559 = vcmp.eq.s32.totalorder %v321, %v2535
          %vm2560 = vcmp.eq.s32.totalorder %v322, %v2535
          %vm2561 = vcmp.eq.s32.totalorder %v323, %v2535
          %vm2562 = vcmp.eq.s32.totalorder %v324, %v2535
          %vm2563 = vcmp.eq.s32.totalorder %v325, %v2535
          %vm2564 = vcmp.eq.s32.totalorder %v326, %v2535
          %vm2565 = vcmp.eq.s32.totalorder %v327, %v2535
          %vm2566 = vcmp.eq.s32.totalorder %v328, %v2535
          %vm2567 = vcmp.eq.s32.totalorder %v329, %v2535
          %v2568 = vlaneseq
          %v2569 = vshrl.u32 %v2568, 7
          %v2570 = vsub.s32 5, %v2569
          %v2571 = vrot.slane %v375, %v2570
          %v2572 = vsel %vm2536, %v2571, 0.0
          %v2573 = vsel %vm2537, %v2571, 0.0
          %v2574 = vsel %vm2538, %v2571, 0.0
          %v2575 = vsel %vm2539, %v2571, 0.0
          %v2576 = vsel %vm2540, %v2571, 0.0
          %v2577 = vsel %vm2541, %v2571, 0.0
          %v2578 = vsel %vm2542, %v2571, 0.0
          %v2579 = vsel %vm2543, %v2571, 0.0
          %v2580 = vsel %vm2544, %v2571, 0.0
          %v2581 = vsel %vm2545, %v2571, 0.0
          %v2582 = vsel %vm2546, %v2571, 0.0
          %v2583 = vsel %vm2547, %v2571, 0.0
          %v2584 = vsel %vm2548, %v2571, 0.0
          %v2585 = vsel %vm2549, %v2571, 0.0
          %v2586 = vsel %vm2550, %v2571, 0.0
          %v2587 = vsel %vm2551, %v2571, 0.0
          %v2588 = vsel %vm2552, %v2571, 0.0
          %v2589 = vsel %vm2553, %v2571, 0.0
          %v2590 = vsel %vm2554, %v2571, 0.0
          %v2591 = vsel %vm2555, %v2571, 0.0
          %v2592 = vsel %vm2556, %v2571, 0.0
          %v2593 = vsel %vm2557, %v2571, 0.0
          %v2594 = vsel %vm2558, %v2571, 0.0
          %v2595 = vsel %vm2559, %v2571, 0.0
          %v2596 = vsel %vm2560, %v2571, 0.0
          %v2597 = vsel %vm2561, %v2571, 0.0
          %v2598 = vsel %vm2562, %v2571, 0.0
          %v2599 = vsel %vm2563, %v2571, 0.0
          %v2600 = vsel %vm2564, %v2571, 0.0
          %v2601 = vsel %vm2565, %v2571, 0.0
          %v2602 = vsel %vm2566, %v2571, 0.0
          %v2603 = vsel %vm2567, %v2571, 0.0
          %v2604 = vadd.f32 %v2500, %v2572
          %v2605 = vadd.f32 %v2501, %v2573
          %v2606 = vadd.f32 %v2502, %v2574
          %v2607 = vadd.f32 %v2503, %v2575
          %v2608 = vadd.f32 %v2504, %v2576
          %v2609 = vadd.f32 %v2505, %v2577
          %v2610 = vadd.f32 %v2506, %v2578
          %v2611 = vadd.f32 %v2507, %v2579
          %v2612 = vadd.f32 %v2508, %v2580
          %v2613 = vadd.f32 %v2509, %v2581
          %v2614 = vadd.f32 %v2510, %v2582
          %v2615 = vadd.f32 %v2511, %v2583
          %v2616 = vadd.f32 %v2512, %v2584
          %v2617 = vadd.f32 %v2513, %v2585
          %v2618 = vadd.f32 %v2514, %v2586
          %v2619 = vadd.f32 %v2515, %v2587
          %v2620 = vadd.f32 %v2516, %v2588
          %v2621 = vadd.f32 %v2517, %v2589
          %v2622 = vadd.f32 %v2518, %v2590
          %v2623 = vadd.f32 %v2519, %v2591
          %v2624 = vadd.f32 %v2520, %v2592
          %v2625 = vadd.f32 %v2521, %v2593
          %v2626 = vadd.f32 %v2522, %v2594
          %v2627 = vadd.f32 %v2523, %v2595
          %v2628 = vadd.f32 %v2524, %v2596
          %v2629 = vadd.f32 %v2525, %v2597
          %v2630 = vadd.f32 %v2526, %v2598
          %v2631 = vadd.f32 %v2527, %v2599
          %v2632 = vadd.f32 %v2528, %v2600
          %v2633 = vadd.f32 %v2529, %v2601
          %v2634 = vadd.f32 %v2530, %v2602
          %v2635 = vadd.f32 %v2531, %v2603
          %v2636 = vlaneseq
          %v2637 = vshrl.u32 %v2636, 7
          %v2638 = vsub.s32 5, %v2637
          %v2639 = vrot.slane %v554, %v2638
          %vm2640 = vcmp.eq.s32.totalorder %v298, %v2639
          %vm2641 = vcmp.eq.s32.totalorder %v299, %v2639
          %vm2642 = vcmp.eq.s32.totalorder %v300, %v2639
          %vm2643 = vcmp.eq.s32.totalorder %v301, %v2639
          %vm2644 = vcmp.eq.s32.totalorder %v302, %v2639
          %vm2645 = vcmp.eq.s32.totalorder %v303, %v2639
          %vm2646 = vcmp.eq.s32.totalorder %v304, %v2639
          %vm2647 = vcmp.eq.s32.totalorder %v305, %v2639
          %vm2648 = vcmp.eq.s32.totalorder %v306, %v2639
          %vm2649 = vcmp.eq.s32.totalorder %v307, %v2639
          %vm2650 = vcmp.eq.s32.totalorder %v308, %v2639
          %vm2651 = vcmp.eq.s32.totalorder %v309, %v2639
          %vm2652 = vcmp.eq.s32.totalorder %v310, %v2639
          %vm2653 = vcmp.eq.s32.totalorder %v311, %v2639
          %vm2654 = vcmp.eq.s32.totalorder %v312, %v2639
          %vm2655 = vcmp.eq.s32.totalorder %v313, %v2639
          %vm2656 = vcmp.eq.s32.totalorder %v314, %v2639
          %vm2657 = vcmp.eq.s32.totalorder %v315, %v2639
          %vm2658 = vcmp.eq.s32.totalorder %v316, %v2639
          %vm2659 = vcmp.eq.s32.totalorder %v317, %v2639
          %vm2660 = vcmp.eq.s32.totalorder %v318, %v2639
          %vm2661 = vcmp.eq.s32.totalorder %v319, %v2639
          %vm2662 = vcmp.eq.s32.totalorder %v320, %v2639
          %vm2663 = vcmp.eq.s32.totalorder %v321, %v2639
          %vm2664 = vcmp.eq.s32.totalorder %v322, %v2639
          %vm2665 = vcmp.eq.s32.totalorder %v323, %v2639
          %vm2666 = vcmp.eq.s32.totalorder %v324, %v2639
          %vm2667 = vcmp.eq.s32.totalorder %v325, %v2639
          %vm2668 = vcmp.eq.s32.totalorder %v326, %v2639
          %vm2669 = vcmp.eq.s32.totalorder %v327, %v2639
          %vm2670 = vcmp.eq.s32.totalorder %v328, %v2639
          %vm2671 = vcmp.eq.s32.totalorder %v329, %v2639
          %v2672 = vlaneseq
          %v2673 = vshrl.u32 %v2672, 7
          %v2674 = vsub.s32 6, %v2673
          %v2675 = vrot.slane %v375, %v2674
          %v2676 = vsel %vm2640, %v2675, 0.0
          %v2677 = vsel %vm2641, %v2675, 0.0
          %v2678 = vsel %vm2642, %v2675, 0.0
          %v2679 = vsel %vm2643, %v2675, 0.0
          %v2680 = vsel %vm2644, %v2675, 0.0
          %v2681 = vsel %vm2645, %v2675, 0.0
          %v2682 = vsel %vm2646, %v2675, 0.0
          %v2683 = vsel %vm2647, %v2675, 0.0
          %v2684 = vsel %vm2648, %v2675, 0.0
          %v2685 = vsel %vm2649, %v2675, 0.0
          %v2686 = vsel %vm2650, %v2675, 0.0
          %v2687 = vsel %vm2651, %v2675, 0.0
          %v2688 = vsel %vm2652, %v2675, 0.0
          %v2689 = vsel %vm2653, %v2675, 0.0
          %v2690 = vsel %vm2654, %v2675, 0.0
          %v2691 = vsel %vm2655, %v2675, 0.0
          %v2692 = vsel %vm2656, %v2675, 0.0
          %v2693 = vsel %vm2657, %v2675, 0.0
          %v2694 = vsel %vm2658, %v2675, 0.0
          %v2695 = vsel %vm2659, %v2675, 0.0
          %v2696 = vsel %vm2660, %v2675, 0.0
          %v2697 = vsel %vm2661, %v2675, 0.0
          %v2698 = vsel %vm2662, %v2675, 0.0
          %v2699 = vsel %vm2663, %v2675, 0.0
          %v2700 = vsel %vm2664, %v2675, 0.0
          %v2701 = vsel %vm2665, %v2675, 0.0
          %v2702 = vsel %vm2666, %v2675, 0.0
          %v2703 = vsel %vm2667, %v2675, 0.0
          %v2704 = vsel %vm2668, %v2675, 0.0
          %v2705 = vsel %vm2669, %v2675, 0.0
          %v2706 = vsel %vm2670, %v2675, 0.0
          %v2707 = vsel %vm2671, %v2675, 0.0
          %v2708 = vadd.f32 %v2604, %v2676
          %v2709 = vadd.f32 %v2605, %v2677
          %v2710 = vadd.f32 %v2606, %v2678
          %v2711 = vadd.f32 %v2607, %v2679
          %v2712 = vadd.f32 %v2608, %v2680
          %v2713 = vadd.f32 %v2609, %v2681
          %v2714 = vadd.f32 %v2610, %v2682
          %v2715 = vadd.f32 %v2611, %v2683
          %v2716 = vadd.f32 %v2612, %v2684
          %v2717 = vadd.f32 %v2613, %v2685
          %v2718 = vadd.f32 %v2614, %v2686
          %v2719 = vadd.f32 %v2615, %v2687
          %v2720 = vadd.f32 %v2616, %v2688
          %v2721 = vadd.f32 %v2617, %v2689
          %v2722 = vadd.f32 %v2618, %v2690
          %v2723 = vadd.f32 %v2619, %v2691
          %v2724 = vadd.f32 %v2620, %v2692
          %v2725 = vadd.f32 %v2621, %v2693
          %v2726 = vadd.f32 %v2622, %v2694
          %v2727 = vadd.f32 %v2623, %v2695
          %v2728 = vadd.f32 %v2624, %v2696
          %v2729 = vadd.f32 %v2625, %v2697
          %v2730 = vadd.f32 %v2626, %v2698
          %v2731 = vadd.f32 %v2627, %v2699
          %v2732 = vadd.f32 %v2628, %v2700
          %v2733 = vadd.f32 %v2629, %v2701
          %v2734 = vadd.f32 %v2630, %v2702
          %v2735 = vadd.f32 %v2631, %v2703
          %v2736 = vadd.f32 %v2632, %v2704
          %v2737 = vadd.f32 %v2633, %v2705
          %v2738 = vadd.f32 %v2634, %v2706
          %v2739 = vadd.f32 %v2635, %v2707
          %v2740 = vlaneseq
          %v2741 = vshrl.u32 %v2740, 7
          %v2742 = vsub.s32 5, %v2741
          %v2743 = vrot.slane %v659, %v2742
          %vm2744 = vcmp.eq.s32.totalorder %v298, %v2743
          %vm2745 = vcmp.eq.s32.totalorder %v299, %v2743
          %vm2746 = vcmp.eq.s32.totalorder %v300, %v2743
          %vm2747 = vcmp.eq.s32.totalorder %v301, %v2743
          %vm2748 = vcmp.eq.s32.totalorder %v302, %v2743
          %vm2749 = vcmp.eq.s32.totalorder %v303, %v2743
          %vm2750 = vcmp.eq.s32.totalorder %v304, %v2743
          %vm2751 = vcmp.eq.s32.totalorder %v305, %v2743
          %vm2752 = vcmp.eq.s32.totalorder %v306, %v2743
          %vm2753 = vcmp.eq.s32.totalorder %v307, %v2743
          %vm2754 = vcmp.eq.s32.totalorder %v308, %v2743
          %vm2755 = vcmp.eq.s32.totalorder %v309, %v2743
          %vm2756 = vcmp.eq.s32.totalorder %v310, %v2743
          %vm2757 = vcmp.eq.s32.totalorder %v311, %v2743
          %vm2758 = vcmp.eq.s32.totalorder %v312, %v2743
          %vm2759 = vcmp.eq.s32.totalorder %v313, %v2743
          %vm2760 = vcmp.eq.s32.totalorder %v314, %v2743
          %vm2761 = vcmp.eq.s32.totalorder %v315, %v2743
          %vm2762 = vcmp.eq.s32.totalorder %v316, %v2743
          %vm2763 = vcmp.eq.s32.totalorder %v317, %v2743
          %vm2764 = vcmp.eq.s32.totalorder %v318, %v2743
          %vm2765 = vcmp.eq.s32.totalorder %v319, %v2743
          %vm2766 = vcmp.eq.s32.totalorder %v320, %v2743
          %vm2767 = vcmp.eq.s32.totalorder %v321, %v2743
          %vm2768 = vcmp.eq.s32.totalorder %v322, %v2743
          %vm2769 = vcmp.eq.s32.totalorder %v323, %v2743
          %vm2770 = vcmp.eq.s32.totalorder %v324, %v2743
          %vm2771 = vcmp.eq.s32.totalorder %v325, %v2743
          %vm2772 = vcmp.eq.s32.totalorder %v326, %v2743
          %vm2773 = vcmp.eq.s32.totalorder %v327, %v2743
          %vm2774 = vcmp.eq.s32.totalorder %v328, %v2743
          %vm2775 = vcmp.eq.s32.totalorder %v329, %v2743
          %v2776 = vlaneseq
          %v2777 = vshrl.u32 %v2776, 7
          %v2778 = vsub.s32 7, %v2777
          %v2779 = vrot.slane %v375, %v2778
          %v2780 = vsel %vm2744, %v2779, 0.0
          %v2781 = vsel %vm2745, %v2779, 0.0
          %v2782 = vsel %vm2746, %v2779, 0.0
          %v2783 = vsel %vm2747, %v2779, 0.0
          %v2784 = vsel %vm2748, %v2779, 0.0
          %v2785 = vsel %vm2749, %v2779, 0.0
          %v2786 = vsel %vm2750, %v2779, 0.0
          %v2787 = vsel %vm2751, %v2779, 0.0
          %v2788 = vsel %vm2752, %v2779, 0.0
          %v2789 = vsel %vm2753, %v2779, 0.0
          %v2790 = vsel %vm2754, %v2779, 0.0
          %v2791 = vsel %vm2755, %v2779, 0.0
          %v2792 = vsel %vm2756, %v2779, 0.0
          %v2793 = vsel %vm2757, %v2779, 0.0
          %v2794 = vsel %vm2758, %v2779, 0.0
          %v2795 = vsel %vm2759, %v2779, 0.0
          %v2796 = vsel %vm2760, %v2779, 0.0
          %v2797 = vsel %vm2761, %v2779, 0.0
          %v2798 = vsel %vm2762, %v2779, 0.0
          %v2799 = vsel %vm2763, %v2779, 0.0
          %v2800 = vsel %vm2764, %v2779, 0.0
          %v2801 = vsel %vm2765, %v2779, 0.0
          %v2802 = vsel %vm2766, %v2779, 0.0
          %v2803 = vsel %vm2767, %v2779, 0.0
          %v2804 = vsel %vm2768, %v2779, 0.0
          %v2805 = vsel %vm2769, %v2779, 0.0
          %v2806 = vsel %vm2770, %v2779, 0.0
          %v2807 = vsel %vm2771, %v2779, 0.0
          %v2808 = vsel %vm2772, %v2779, 0.0
          %v2809 = vsel %vm2773, %v2779, 0.0
          %v2810 = vsel %vm2774, %v2779, 0.0
          %v2811 = vsel %vm2775, %v2779, 0.0
          %v2812 = vadd.f32 %v2708, %v2780
          %v2813 = vadd.f32 %v2709, %v2781
          %v2814 = vadd.f32 %v2710, %v2782
          %v2815 = vadd.f32 %v2711, %v2783
          %v2816 = vadd.f32 %v2712, %v2784
          %v2817 = vadd.f32 %v2713, %v2785
          %v2818 = vadd.f32 %v2714, %v2786
          %v2819 = vadd.f32 %v2715, %v2787
          %v2820 = vadd.f32 %v2716, %v2788
          %v2821 = vadd.f32 %v2717, %v2789
          %v2822 = vadd.f32 %v2718, %v2790
          %v2823 = vadd.f32 %v2719, %v2791
          %v2824 = vadd.f32 %v2720, %v2792
          %v2825 = vadd.f32 %v2721, %v2793
          %v2826 = vadd.f32 %v2722, %v2794
          %v2827 = vadd.f32 %v2723, %v2795
          %v2828 = vadd.f32 %v2724, %v2796
          %v2829 = vadd.f32 %v2725, %v2797
          %v2830 = vadd.f32 %v2726, %v2798
          %v2831 = vadd.f32 %v2727, %v2799
          %v2832 = vadd.f32 %v2728, %v2800
          %v2833 = vadd.f32 %v2729, %v2801
          %v2834 = vadd.f32 %v2730, %v2802
          %v2835 = vadd.f32 %v2731, %v2803
          %v2836 = vadd.f32 %v2732, %v2804
          %v2837 = vadd.f32 %v2733, %v2805
          %v2838 = vadd.f32 %v2734, %v2806
          %v2839 = vadd.f32 %v2735, %v2807
          %v2840 = vadd.f32 %v2736, %v2808
          %v2841 = vadd.f32 %v2737, %v2809
          %v2842 = vadd.f32 %v2738, %v2810
          %v2843 = vadd.f32 %v2739, %v2811
          %v2844 = vadd.f32 %v2428, %v2812
          %v2845 = vadd.f32 %v2429, %v2813
          %v2846 = vadd.f32 %v2430, %v2814
          %v2847 = vadd.f32 %v2431, %v2815
          %v2848 = vadd.f32 %v2432, %v2816
          %v2849 = vadd.f32 %v2433, %v2817
          %v2850 = vadd.f32 %v2434, %v2818
          %v2851 = vadd.f32 %v2435, %v2819
          %v2852 = vadd.f32 %v2436, %v2820
          %v2853 = vadd.f32 %v2437, %v2821
          %v2854 = vadd.f32 %v2438, %v2822
          %v2855 = vadd.f32 %v2439, %v2823
          %v2856 = vadd.f32 %v2440, %v2824
          %v2857 = vadd.f32 %v2441, %v2825
          %v2858 = vadd.f32 %v2442, %v2826
          %v2859 = vadd.f32 %v2443, %v2827
          %v2860 = vadd.f32 %v2444, %v2828
          %v2861 = vadd.f32 %v2445, %v2829
          %v2862 = vadd.f32 %v2446, %v2830
          %v2863 = vadd.f32 %v2447, %v2831
          %v2864 = vadd.f32 %v2448, %v2832
          %v2865 = vadd.f32 %v2449, %v2833
          %v2866 = vadd.f32 %v2450, %v2834
          %v2867 = vadd.f32 %v2451, %v2835
          %v2868 = vadd.f32 %v2452, %v2836
          %v2869 = vadd.f32 %v2453, %v2837
          %v2870 = vadd.f32 %v2454, %v2838
          %v2871 = vadd.f32 %v2455, %v2839
          %v2872 = vadd.f32 %v2456, %v2840
          %v2873 = vadd.f32 %v2457, %v2841
          %v2874 = vadd.f32 %v2458, %v2842
          %v2875 = vadd.f32 %v2459, %v2843
          %v2876 = vlaneseq
          %v2877 = vshrl.u32 %v2876, 7
          %v2878 = vsub.s32 6, %v2877
          %v2879 = vrot.slane %v370, %v2878
          %vm2880 = vcmp.eq.s32.totalorder %v298, %v2879
          %vm2881 = vcmp.eq.s32.totalorder %v299, %v2879
          %vm2882 = vcmp.eq.s32.totalorder %v300, %v2879
          %vm2883 = vcmp.eq.s32.totalorder %v301, %v2879
          %vm2884 = vcmp.eq.s32.totalorder %v302, %v2879
          %vm2885 = vcmp.eq.s32.totalorder %v303, %v2879
          %vm2886 = vcmp.eq.s32.totalorder %v304, %v2879
          %vm2887 = vcmp.eq.s32.totalorder %v305, %v2879
          %vm2888 = vcmp.eq.s32.totalorder %v306, %v2879
          %vm2889 = vcmp.eq.s32.totalorder %v307, %v2879
          %vm2890 = vcmp.eq.s32.totalorder %v308, %v2879
          %vm2891 = vcmp.eq.s32.totalorder %v309, %v2879
          %vm2892 = vcmp.eq.s32.totalorder %v310, %v2879
          %vm2893 = vcmp.eq.s32.totalorder %v311, %v2879
          %vm2894 = vcmp.eq.s32.totalorder %v312, %v2879
          %vm2895 = vcmp.eq.s32.totalorder %v313, %v2879
          %vm2896 = vcmp.eq.s32.totalorder %v314, %v2879
          %vm2897 = vcmp.eq.s32.totalorder %v315, %v2879
          %vm2898 = vcmp.eq.s32.totalorder %v316, %v2879
          %vm2899 = vcmp.eq.s32.totalorder %v317, %v2879
          %vm2900 = vcmp.eq.s32.totalorder %v318, %v2879
          %vm2901 = vcmp.eq.s32.totalorder %v319, %v2879
          %vm2902 = vcmp.eq.s32.totalorder %v320, %v2879
          %vm2903 = vcmp.eq.s32.totalorder %v321, %v2879
          %vm2904 = vcmp.eq.s32.totalorder %v322, %v2879
          %vm2905 = vcmp.eq.s32.totalorder %v323, %v2879
          %vm2906 = vcmp.eq.s32.totalorder %v324, %v2879
          %vm2907 = vcmp.eq.s32.totalorder %v325, %v2879
          %vm2908 = vcmp.eq.s32.totalorder %v326, %v2879
          %vm2909 = vcmp.eq.s32.totalorder %v327, %v2879
          %vm2910 = vcmp.eq.s32.totalorder %v328, %v2879
          %vm2911 = vcmp.eq.s32.totalorder %v329, %v2879
          %v2912 = vlaneseq
          %v2913 = vshrl.u32 %v2912, 7
          %v2914 = vsub.s32 0, %v2913
          %v2915 = vrot.slane %v376, %v2914
          %v2916 = vsel %vm2880, %v2915, 0.0
          %v2917 = vsel %vm2881, %v2915, 0.0
          %v2918 = vsel %vm2882, %v2915, 0.0
          %v2919 = vsel %vm2883, %v2915, 0.0
          %v2920 = vsel %vm2884, %v2915, 0.0
          %v2921 = vsel %vm2885, %v2915, 0.0
          %v2922 = vsel %vm2886, %v2915, 0.0
          %v2923 = vsel %vm2887, %v2915, 0.0
          %v2924 = vsel %vm2888, %v2915, 0.0
          %v2925 = vsel %vm2889, %v2915, 0.0
          %v2926 = vsel %vm2890, %v2915, 0.0
          %v2927 = vsel %vm2891, %v2915, 0.0
          %v2928 = vsel %vm2892, %v2915, 0.0
          %v2929 = vsel %vm2893, %v2915, 0.0
          %v2930 = vsel %vm2894, %v2915, 0.0
          %v2931 = vsel %vm2895, %v2915, 0.0
          %v2932 = vsel %vm2896, %v2915, 0.0
          %v2933 = vsel %vm2897, %v2915, 0.0
          %v2934 = vsel %vm2898, %v2915, 0.0
          %v2935 = vsel %vm2899, %v2915, 0.0
          %v2936 = vsel %vm2900, %v2915, 0.0
          %v2937 = vsel %vm2901, %v2915, 0.0
          %v2938 = vsel %vm2902, %v2915, 0.0
          %v2939 = vsel %vm2903, %v2915, 0.0
          %v2940 = vsel %vm2904, %v2915, 0.0
          %v2941 = vsel %vm2905, %v2915, 0.0
          %v2942 = vsel %vm2906, %v2915, 0.0
          %v2943 = vsel %vm2907, %v2915, 0.0
          %v2944 = vsel %vm2908, %v2915, 0.0
          %v2945 = vsel %vm2909, %v2915, 0.0
          %v2946 = vsel %vm2910, %v2915, 0.0
          %v2947 = vsel %vm2911, %v2915, 0.0
          %v2948 = vlaneseq
          %v2949 = vshrl.u32 %v2948, 7
          %v2950 = vsub.s32 6, %v2949
          %v2951 = vrot.slane %v449, %v2950
          %vm2952 = vcmp.eq.s32.totalorder %v298, %v2951
          %vm2953 = vcmp.eq.s32.totalorder %v299, %v2951
          %vm2954 = vcmp.eq.s32.totalorder %v300, %v2951
          %vm2955 = vcmp.eq.s32.totalorder %v301, %v2951
          %vm2956 = vcmp.eq.s32.totalorder %v302, %v2951
          %vm2957 = vcmp.eq.s32.totalorder %v303, %v2951
          %vm2958 = vcmp.eq.s32.totalorder %v304, %v2951
          %vm2959 = vcmp.eq.s32.totalorder %v305, %v2951
          %vm2960 = vcmp.eq.s32.totalorder %v306, %v2951
          %vm2961 = vcmp.eq.s32.totalorder %v307, %v2951
          %vm2962 = vcmp.eq.s32.totalorder %v308, %v2951
          %vm2963 = vcmp.eq.s32.totalorder %v309, %v2951
          %vm2964 = vcmp.eq.s32.totalorder %v310, %v2951
          %vm2965 = vcmp.eq.s32.totalorder %v311, %v2951
          %vm2966 = vcmp.eq.s32.totalorder %v312, %v2951
          %vm2967 = vcmp.eq.s32.totalorder %v313, %v2951
          %vm2968 = vcmp.eq.s32.totalorder %v314, %v2951
          %vm2969 = vcmp.eq.s32.totalorder %v315, %v2951
          %vm2970 = vcmp.eq.s32.totalorder %v316, %v2951
          %vm2971 = vcmp.eq.s32.totalorder %v317, %v2951
          %vm2972 = vcmp.eq.s32.totalorder %v318, %v2951
          %vm2973 = vcmp.eq.s32.totalorder %v319, %v2951
          %vm2974 = vcmp.eq.s32.totalorder %v320, %v2951
          %vm2975 = vcmp.eq.s32.totalorder %v321, %v2951
          %vm2976 = vcmp.eq.s32.totalorder %v322, %v2951
          %vm2977 = vcmp.eq.s32.totalorder %v323, %v2951
          %vm2978 = vcmp.eq.s32.totalorder %v324, %v2951
          %vm2979 = vcmp.eq.s32.totalorder %v325, %v2951
          %vm2980 = vcmp.eq.s32.totalorder %v326, %v2951
          %vm2981 = vcmp.eq.s32.totalorder %v327, %v2951
          %vm2982 = vcmp.eq.s32.totalorder %v328, %v2951
          %vm2983 = vcmp.eq.s32.totalorder %v329, %v2951
          %v2984 = vlaneseq
          %v2985 = vshrl.u32 %v2984, 7
          %v2986 = vsub.s32 1, %v2985
          %v2987 = vrot.slane %v376, %v2986
          %v2988 = vsel %vm2952, %v2987, 0.0
          %v2989 = vsel %vm2953, %v2987, 0.0
          %v2990 = vsel %vm2954, %v2987, 0.0
          %v2991 = vsel %vm2955, %v2987, 0.0
          %v2992 = vsel %vm2956, %v2987, 0.0
          %v2993 = vsel %vm2957, %v2987, 0.0
          %v2994 = vsel %vm2958, %v2987, 0.0
          %v2995 = vsel %vm2959, %v2987, 0.0
          %v2996 = vsel %vm2960, %v2987, 0.0
          %v2997 = vsel %vm2961, %v2987, 0.0
          %v2998 = vsel %vm2962, %v2987, 0.0
          %v2999 = vsel %vm2963, %v2987, 0.0
          %v3000 = vsel %vm2964, %v2987, 0.0
          %v3001 = vsel %vm2965, %v2987, 0.0
          %v3002 = vsel %vm2966, %v2987, 0.0
          %v3003 = vsel %vm2967, %v2987, 0.0
          %v3004 = vsel %vm2968, %v2987, 0.0
          %v3005 = vsel %vm2969, %v2987, 0.0
          %v3006 = vsel %vm2970, %v2987, 0.0
          %v3007 = vsel %vm2971, %v2987, 0.0
          %v3008 = vsel %vm2972, %v2987, 0.0
          %v3009 = vsel %vm2973, %v2987, 0.0
          %v3010 = vsel %vm2974, %v2987, 0.0
          %v3011 = vsel %vm2975, %v2987, 0.0
          %v3012 = vsel %vm2976, %v2987, 0.0
          %v3013 = vsel %vm2977, %v2987, 0.0
          %v3014 = vsel %vm2978, %v2987, 0.0
          %v3015 = vsel %vm2979, %v2987, 0.0
          %v3016 = vsel %vm2980, %v2987, 0.0
          %v3017 = vsel %vm2981, %v2987, 0.0
          %v3018 = vsel %vm2982, %v2987, 0.0
          %v3019 = vsel %vm2983, %v2987, 0.0
          %v3020 = vadd.f32 %v2916, %v2988
          %v3021 = vadd.f32 %v2917, %v2989
          %v3022 = vadd.f32 %v2918, %v2990
          %v3023 = vadd.f32 %v2919, %v2991
          %v3024 = vadd.f32 %v2920, %v2992
          %v3025 = vadd.f32 %v2921, %v2993
          %v3026 = vadd.f32 %v2922, %v2994
          %v3027 = vadd.f32 %v2923, %v2995
          %v3028 = vadd.f32 %v2924, %v2996
          %v3029 = vadd.f32 %v2925, %v2997
          %v3030 = vadd.f32 %v2926, %v2998
          %v3031 = vadd.f32 %v2927, %v2999
          %v3032 = vadd.f32 %v2928, %v3000
          %v3033 = vadd.f32 %v2929, %v3001
          %v3034 = vadd.f32 %v2930, %v3002
          %v3035 = vadd.f32 %v2931, %v3003
          %v3036 = vadd.f32 %v2932, %v3004
          %v3037 = vadd.f32 %v2933, %v3005
          %v3038 = vadd.f32 %v2934, %v3006
          %v3039 = vadd.f32 %v2935, %v3007
          %v3040 = vadd.f32 %v2936, %v3008
          %v3041 = vadd.f32 %v2937, %v3009
          %v3042 = vadd.f32 %v2938, %v3010
          %v3043 = vadd.f32 %v2939, %v3011
          %v3044 = vadd.f32 %v2940, %v3012
          %v3045 = vadd.f32 %v2941, %v3013
          %v3046 = vadd.f32 %v2942, %v3014
          %v3047 = vadd.f32 %v2943, %v3015
          %v3048 = vadd.f32 %v2944, %v3016
          %v3049 = vadd.f32 %v2945, %v3017
          %v3050 = vadd.f32 %v2946, %v3018
          %v3051 = vadd.f32 %v2947, %v3019
          %v3052 = vlaneseq
          %v3053 = vshrl.u32 %v3052, 7
          %v3054 = vsub.s32 6, %v3053
          %v3055 = vrot.slane %v554, %v3054
          %vm3056 = vcmp.eq.s32.totalorder %v298, %v3055
          %vm3057 = vcmp.eq.s32.totalorder %v299, %v3055
          %vm3058 = vcmp.eq.s32.totalorder %v300, %v3055
          %vm3059 = vcmp.eq.s32.totalorder %v301, %v3055
          %vm3060 = vcmp.eq.s32.totalorder %v302, %v3055
          %vm3061 = vcmp.eq.s32.totalorder %v303, %v3055
          %vm3062 = vcmp.eq.s32.totalorder %v304, %v3055
          %vm3063 = vcmp.eq.s32.totalorder %v305, %v3055
          %vm3064 = vcmp.eq.s32.totalorder %v306, %v3055
          %vm3065 = vcmp.eq.s32.totalorder %v307, %v3055
          %vm3066 = vcmp.eq.s32.totalorder %v308, %v3055
          %vm3067 = vcmp.eq.s32.totalorder %v309, %v3055
          %vm3068 = vcmp.eq.s32.totalorder %v310, %v3055
          %vm3069 = vcmp.eq.s32.totalorder %v311, %v3055
          %vm3070 = vcmp.eq.s32.totalorder %v312, %v3055
          %vm3071 = vcmp.eq.s32.totalorder %v313, %v3055
          %vm3072 = vcmp.eq.s32.totalorder %v314, %v3055
          %vm3073 = vcmp.eq.s32.totalorder %v315, %v3055
          %vm3074 = vcmp.eq.s32.totalorder %v316, %v3055
          %vm3075 = vcmp.eq.s32.totalorder %v317, %v3055
          %vm3076 = vcmp.eq.s32.totalorder %v318, %v3055
          %vm3077 = vcmp.eq.s32.totalorder %v319, %v3055
          %vm3078 = vcmp.eq.s32.totalorder %v320, %v3055
          %vm3079 = vcmp.eq.s32.totalorder %v321, %v3055
          %vm3080 = vcmp.eq.s32.totalorder %v322, %v3055
          %vm3081 = vcmp.eq.s32.totalorder %v323, %v3055
          %vm3082 = vcmp.eq.s32.totalorder %v324, %v3055
          %vm3083 = vcmp.eq.s32.totalorder %v325, %v3055
          %vm3084 = vcmp.eq.s32.totalorder %v326, %v3055
          %vm3085 = vcmp.eq.s32.totalorder %v327, %v3055
          %vm3086 = vcmp.eq.s32.totalorder %v328, %v3055
          %vm3087 = vcmp.eq.s32.totalorder %v329, %v3055
          %v3088 = vlaneseq
          %v3089 = vshrl.u32 %v3088, 7
          %v3090 = vsub.s32 2, %v3089
          %v3091 = vrot.slane %v376, %v3090
          %v3092 = vsel %vm3056, %v3091, 0.0
          %v3093 = vsel %vm3057, %v3091, 0.0
          %v3094 = vsel %vm3058, %v3091, 0.0
          %v3095 = vsel %vm3059, %v3091, 0.0
          %v3096 = vsel %vm3060, %v3091, 0.0
          %v3097 = vsel %vm3061, %v3091, 0.0
          %v3098 = vsel %vm3062, %v3091, 0.0
          %v3099 = vsel %vm3063, %v3091, 0.0
          %v3100 = vsel %vm3064, %v3091, 0.0
          %v3101 = vsel %vm3065, %v3091, 0.0
          %v3102 = vsel %vm3066, %v3091, 0.0
          %v3103 = vsel %vm3067, %v3091, 0.0
          %v3104 = vsel %vm3068, %v3091, 0.0
          %v3105 = vsel %vm3069, %v3091, 0.0
          %v3106 = vsel %vm3070, %v3091, 0.0
          %v3107 = vsel %vm3071, %v3091, 0.0
          %v3108 = vsel %vm3072, %v3091, 0.0
          %v3109 = vsel %vm3073, %v3091, 0.0
          %v3110 = vsel %vm3074, %v3091, 0.0
          %v3111 = vsel %vm3075, %v3091, 0.0
          %v3112 = vsel %vm3076, %v3091, 0.0
          %v3113 = vsel %vm3077, %v3091, 0.0
          %v3114 = vsel %vm3078, %v3091, 0.0
          %v3115 = vsel %vm3079, %v3091, 0.0
          %v3116 = vsel %vm3080, %v3091, 0.0
          %v3117 = vsel %vm3081, %v3091, 0.0
          %v3118 = vsel %vm3082, %v3091, 0.0
          %v3119 = vsel %vm3083, %v3091, 0.0
          %v3120 = vsel %vm3084, %v3091, 0.0
          %v3121 = vsel %vm3085, %v3091, 0.0
          %v3122 = vsel %vm3086, %v3091, 0.0
          %v3123 = vsel %vm3087, %v3091, 0.0
          %v3124 = vadd.f32 %v3020, %v3092
          %v3125 = vadd.f32 %v3021, %v3093
          %v3126 = vadd.f32 %v3022, %v3094
          %v3127 = vadd.f32 %v3023, %v3095
          %v3128 = vadd.f32 %v3024, %v3096
          %v3129 = vadd.f32 %v3025, %v3097
          %v3130 = vadd.f32 %v3026, %v3098
          %v3131 = vadd.f32 %v3027, %v3099
          %v3132 = vadd.f32 %v3028, %v3100
          %v3133 = vadd.f32 %v3029, %v3101
          %v3134 = vadd.f32 %v3030, %v3102
          %v3135 = vadd.f32 %v3031, %v3103
          %v3136 = vadd.f32 %v3032, %v3104
          %v3137 = vadd.f32 %v3033, %v3105
          %v3138 = vadd.f32 %v3034, %v3106
          %v3139 = vadd.f32 %v3035, %v3107
          %v3140 = vadd.f32 %v3036, %v3108
          %v3141 = vadd.f32 %v3037, %v3109
          %v3142 = vadd.f32 %v3038, %v3110
          %v3143 = vadd.f32 %v3039, %v3111
          %v3144 = vadd.f32 %v3040, %v3112
          %v3145 = vadd.f32 %v3041, %v3113
          %v3146 = vadd.f32 %v3042, %v3114
          %v3147 = vadd.f32 %v3043, %v3115
          %v3148 = vadd.f32 %v3044, %v3116
          %v3149 = vadd.f32 %v3045, %v3117
          %v3150 = vadd.f32 %v3046, %v3118
          %v3151 = vadd.f32 %v3047, %v3119
          %v3152 = vadd.f32 %v3048, %v3120
          %v3153 = vadd.f32 %v3049, %v3121
          %v3154 = vadd.f32 %v3050, %v3122
          %v3155 = vadd.f32 %v3051, %v3123
          %v3156 = vlaneseq
          %v3157 = vshrl.u32 %v3156, 7
          %v3158 = vsub.s32 6, %v3157
          %v3159 = vrot.slane %v659, %v3158
          %vm3160 = vcmp.eq.s32.totalorder %v298, %v3159
          %vm3161 = vcmp.eq.s32.totalorder %v299, %v3159
          %vm3162 = vcmp.eq.s32.totalorder %v300, %v3159
          %vm3163 = vcmp.eq.s32.totalorder %v301, %v3159
          %vm3164 = vcmp.eq.s32.totalorder %v302, %v3159
          %vm3165 = vcmp.eq.s32.totalorder %v303, %v3159
          %vm3166 = vcmp.eq.s32.totalorder %v304, %v3159
          %vm3167 = vcmp.eq.s32.totalorder %v305, %v3159
          %vm3168 = vcmp.eq.s32.totalorder %v306, %v3159
          %vm3169 = vcmp.eq.s32.totalorder %v307, %v3159
          %vm3170 = vcmp.eq.s32.totalorder %v308, %v3159
          %vm3171 = vcmp.eq.s32.totalorder %v309, %v3159
          %vm3172 = vcmp.eq.s32.totalorder %v310, %v3159
          %vm3173 = vcmp.eq.s32.totalorder %v311, %v3159
          %vm3174 = vcmp.eq.s32.totalorder %v312, %v3159
          %vm3175 = vcmp.eq.s32.totalorder %v313, %v3159
          %vm3176 = vcmp.eq.s32.totalorder %v314, %v3159
          %vm3177 = vcmp.eq.s32.totalorder %v315, %v3159
          %vm3178 = vcmp.eq.s32.totalorder %v316, %v3159
          %vm3179 = vcmp.eq.s32.totalorder %v317, %v3159
          %vm3180 = vcmp.eq.s32.totalorder %v318, %v3159
          %vm3181 = vcmp.eq.s32.totalorder %v319, %v3159
          %vm3182 = vcmp.eq.s32.totalorder %v320, %v3159
          %vm3183 = vcmp.eq.s32.totalorder %v321, %v3159
          %vm3184 = vcmp.eq.s32.totalorder %v322, %v3159
          %vm3185 = vcmp.eq.s32.totalorder %v323, %v3159
          %vm3186 = vcmp.eq.s32.totalorder %v324, %v3159
          %vm3187 = vcmp.eq.s32.totalorder %v325, %v3159
          %vm3188 = vcmp.eq.s32.totalorder %v326, %v3159
          %vm3189 = vcmp.eq.s32.totalorder %v327, %v3159
          %vm3190 = vcmp.eq.s32.totalorder %v328, %v3159
          %vm3191 = vcmp.eq.s32.totalorder %v329, %v3159
          %v3192 = vlaneseq
          %v3193 = vshrl.u32 %v3192, 7
          %v3194 = vsub.s32 3, %v3193
          %v3195 = vrot.slane %v376, %v3194
          %v3196 = vsel %vm3160, %v3195, 0.0
          %v3197 = vsel %vm3161, %v3195, 0.0
          %v3198 = vsel %vm3162, %v3195, 0.0
          %v3199 = vsel %vm3163, %v3195, 0.0
          %v3200 = vsel %vm3164, %v3195, 0.0
          %v3201 = vsel %vm3165, %v3195, 0.0
          %v3202 = vsel %vm3166, %v3195, 0.0
          %v3203 = vsel %vm3167, %v3195, 0.0
          %v3204 = vsel %vm3168, %v3195, 0.0
          %v3205 = vsel %vm3169, %v3195, 0.0
          %v3206 = vsel %vm3170, %v3195, 0.0
          %v3207 = vsel %vm3171, %v3195, 0.0
          %v3208 = vsel %vm3172, %v3195, 0.0
          %v3209 = vsel %vm3173, %v3195, 0.0
          %v3210 = vsel %vm3174, %v3195, 0.0
          %v3211 = vsel %vm3175, %v3195, 0.0
          %v3212 = vsel %vm3176, %v3195, 0.0
          %v3213 = vsel %vm3177, %v3195, 0.0
          %v3214 = vsel %vm3178, %v3195, 0.0
          %v3215 = vsel %vm3179, %v3195, 0.0
          %v3216 = vsel %vm3180, %v3195, 0.0
          %v3217 = vsel %vm3181, %v3195, 0.0
          %v3218 = vsel %vm3182, %v3195, 0.0
          %v3219 = vsel %vm3183, %v3195, 0.0
          %v3220 = vsel %vm3184, %v3195, 0.0
          %v3221 = vsel %vm3185, %v3195, 0.0
          %v3222 = vsel %vm3186, %v3195, 0.0
          %v3223 = vsel %vm3187, %v3195, 0.0
          %v3224 = vsel %vm3188, %v3195, 0.0
          %v3225 = vsel %vm3189, %v3195, 0.0
          %v3226 = vsel %vm3190, %v3195, 0.0
          %v3227 = vsel %vm3191, %v3195, 0.0
          %v3228 = vadd.f32 %v3124, %v3196
          %v3229 = vadd.f32 %v3125, %v3197
          %v3230 = vadd.f32 %v3126, %v3198
          %v3231 = vadd.f32 %v3127, %v3199
          %v3232 = vadd.f32 %v3128, %v3200
          %v3233 = vadd.f32 %v3129, %v3201
          %v3234 = vadd.f32 %v3130, %v3202
          %v3235 = vadd.f32 %v3131, %v3203
          %v3236 = vadd.f32 %v3132, %v3204
          %v3237 = vadd.f32 %v3133, %v3205
          %v3238 = vadd.f32 %v3134, %v3206
          %v3239 = vadd.f32 %v3135, %v3207
          %v3240 = vadd.f32 %v3136, %v3208
          %v3241 = vadd.f32 %v3137, %v3209
          %v3242 = vadd.f32 %v3138, %v3210
          %v3243 = vadd.f32 %v3139, %v3211
          %v3244 = vadd.f32 %v3140, %v3212
          %v3245 = vadd.f32 %v3141, %v3213
          %v3246 = vadd.f32 %v3142, %v3214
          %v3247 = vadd.f32 %v3143, %v3215
          %v3248 = vadd.f32 %v3144, %v3216
          %v3249 = vadd.f32 %v3145, %v3217
          %v3250 = vadd.f32 %v3146, %v3218
          %v3251 = vadd.f32 %v3147, %v3219
          %v3252 = vadd.f32 %v3148, %v3220
          %v3253 = vadd.f32 %v3149, %v3221
          %v3254 = vadd.f32 %v3150, %v3222
          %v3255 = vadd.f32 %v3151, %v3223
          %v3256 = vadd.f32 %v3152, %v3224
          %v3257 = vadd.f32 %v3153, %v3225
          %v3258 = vadd.f32 %v3154, %v3226
          %v3259 = vadd.f32 %v3155, %v3227
          %v3260 = vadd.f32 %v2844, %v3228
          %v3261 = vadd.f32 %v2845, %v3229
          %v3262 = vadd.f32 %v2846, %v3230
          %v3263 = vadd.f32 %v2847, %v3231
          %v3264 = vadd.f32 %v2848, %v3232
          %v3265 = vadd.f32 %v2849, %v3233
          %v3266 = vadd.f32 %v2850, %v3234
          %v3267 = vadd.f32 %v2851, %v3235
          %v3268 = vadd.f32 %v2852, %v3236
          %v3269 = vadd.f32 %v2853, %v3237
          %v3270 = vadd.f32 %v2854, %v3238
          %v3271 = vadd.f32 %v2855, %v3239
          %v3272 = vadd.f32 %v2856, %v3240
          %v3273 = vadd.f32 %v2857, %v3241
          %v3274 = vadd.f32 %v2858, %v3242
          %v3275 = vadd.f32 %v2859, %v3243
          %v3276 = vadd.f32 %v2860, %v3244
          %v3277 = vadd.f32 %v2861, %v3245
          %v3278 = vadd.f32 %v2862, %v3246
          %v3279 = vadd.f32 %v2863, %v3247
          %v3280 = vadd.f32 %v2864, %v3248
          %v3281 = vadd.f32 %v2865, %v3249
          %v3282 = vadd.f32 %v2866, %v3250
          %v3283 = vadd.f32 %v2867, %v3251
          %v3284 = vadd.f32 %v2868, %v3252
          %v3285 = vadd.f32 %v2869, %v3253
          %v3286 = vadd.f32 %v2870, %v3254
          %v3287 = vadd.f32 %v2871, %v3255
          %v3288 = vadd.f32 %v2872, %v3256
          %v3289 = vadd.f32 %v2873, %v3257
          %v3290 = vadd.f32 %v2874, %v3258
          %v3291 = vadd.f32 %v2875, %v3259
          %v3292 = vlaneseq
          %v3293 = vshrl.u32 %v3292, 7
          %v3294 = vsub.s32 7, %v3293
          %v3295 = vrot.slane %v370, %v3294
          %vm3296 = vcmp.eq.s32.totalorder %v298, %v3295
          %vm3297 = vcmp.eq.s32.totalorder %v299, %v3295
          %vm3298 = vcmp.eq.s32.totalorder %v300, %v3295
          %vm3299 = vcmp.eq.s32.totalorder %v301, %v3295
          %vm3300 = vcmp.eq.s32.totalorder %v302, %v3295
          %vm3301 = vcmp.eq.s32.totalorder %v303, %v3295
          %vm3302 = vcmp.eq.s32.totalorder %v304, %v3295
          %vm3303 = vcmp.eq.s32.totalorder %v305, %v3295
          %vm3304 = vcmp.eq.s32.totalorder %v306, %v3295
          %vm3305 = vcmp.eq.s32.totalorder %v307, %v3295
          %vm3306 = vcmp.eq.s32.totalorder %v308, %v3295
          %vm3307 = vcmp.eq.s32.totalorder %v309, %v3295
          %vm3308 = vcmp.eq.s32.totalorder %v310, %v3295
          %vm3309 = vcmp.eq.s32.totalorder %v311, %v3295
          %vm3310 = vcmp.eq.s32.totalorder %v312, %v3295
          %vm3311 = vcmp.eq.s32.totalorder %v313, %v3295
          %vm3312 = vcmp.eq.s32.totalorder %v314, %v3295
          %vm3313 = vcmp.eq.s32.totalorder %v315, %v3295
          %vm3314 = vcmp.eq.s32.totalorder %v316, %v3295
          %vm3315 = vcmp.eq.s32.totalorder %v317, %v3295
          %vm3316 = vcmp.eq.s32.totalorder %v318, %v3295
          %vm3317 = vcmp.eq.s32.totalorder %v319, %v3295
          %vm3318 = vcmp.eq.s32.totalorder %v320, %v3295
          %vm3319 = vcmp.eq.s32.totalorder %v321, %v3295
          %vm3320 = vcmp.eq.s32.totalorder %v322, %v3295
          %vm3321 = vcmp.eq.s32.totalorder %v323, %v3295
          %vm3322 = vcmp.eq.s32.totalorder %v324, %v3295
          %vm3323 = vcmp.eq.s32.totalorder %v325, %v3295
          %vm3324 = vcmp.eq.s32.totalorder %v326, %v3295
          %vm3325 = vcmp.eq.s32.totalorder %v327, %v3295
          %vm3326 = vcmp.eq.s32.totalorder %v328, %v3295
          %vm3327 = vcmp.eq.s32.totalorder %v329, %v3295
          %v3328 = vlaneseq
          %v3329 = vshrl.u32 %v3328, 7
          %v3330 = vsub.s32 4, %v3329
          %v3331 = vrot.slane %v376, %v3330
          %v3332 = vsel %vm3296, %v3331, 0.0
          %v3333 = vsel %vm3297, %v3331, 0.0
          %v3334 = vsel %vm3298, %v3331, 0.0
          %v3335 = vsel %vm3299, %v3331, 0.0
          %v3336 = vsel %vm3300, %v3331, 0.0
          %v3337 = vsel %vm3301, %v3331, 0.0
          %v3338 = vsel %vm3302, %v3331, 0.0
          %v3339 = vsel %vm3303, %v3331, 0.0
          %v3340 = vsel %vm3304, %v3331, 0.0
          %v3341 = vsel %vm3305, %v3331, 0.0
          %v3342 = vsel %vm3306, %v3331, 0.0
          %v3343 = vsel %vm3307, %v3331, 0.0
          %v3344 = vsel %vm3308, %v3331, 0.0
          %v3345 = vsel %vm3309, %v3331, 0.0
          %v3346 = vsel %vm3310, %v3331, 0.0
          %v3347 = vsel %vm3311, %v3331, 0.0
          %v3348 = vsel %vm3312, %v3331, 0.0
          %v3349 = vsel %vm3313, %v3331, 0.0
          %v3350 = vsel %vm3314, %v3331, 0.0
          %v3351 = vsel %vm3315, %v3331, 0.0
          %v3352 = vsel %vm3316, %v3331, 0.0
          %v3353 = vsel %vm3317, %v3331, 0.0
          %v3354 = vsel %vm3318, %v3331, 0.0
          %v3355 = vsel %vm3319, %v3331, 0.0
          %v3356 = vsel %vm3320, %v3331, 0.0
          %v3357 = vsel %vm3321, %v3331, 0.0
          %v3358 = vsel %vm3322, %v3331, 0.0
          %v3359 = vsel %vm3323, %v3331, 0.0
          %v3360 = vsel %vm3324, %v3331, 0.0
          %v3361 = vsel %vm3325, %v3331, 0.0
          %v3362 = vsel %vm3326, %v3331, 0.0
          %v3363 = vsel %vm3327, %v3331, 0.0
          %v3364 = vlaneseq
          %v3365 = vshrl.u32 %v3364, 7
          %v3366 = vsub.s32 7, %v3365
          %v3367 = vrot.slane %v449, %v3366
          %vm3368 = vcmp.eq.s32.totalorder %v298, %v3367
          %vm3369 = vcmp.eq.s32.totalorder %v299, %v3367
          %vm3370 = vcmp.eq.s32.totalorder %v300, %v3367
          %vm3371 = vcmp.eq.s32.totalorder %v301, %v3367
          %vm3372 = vcmp.eq.s32.totalorder %v302, %v3367
          %vm3373 = vcmp.eq.s32.totalorder %v303, %v3367
          %vm3374 = vcmp.eq.s32.totalorder %v304, %v3367
          %vm3375 = vcmp.eq.s32.totalorder %v305, %v3367
          %vm3376 = vcmp.eq.s32.totalorder %v306, %v3367
          %vm3377 = vcmp.eq.s32.totalorder %v307, %v3367
          %vm3378 = vcmp.eq.s32.totalorder %v308, %v3367
          %vm3379 = vcmp.eq.s32.totalorder %v309, %v3367
          %vm3380 = vcmp.eq.s32.totalorder %v310, %v3367
          %vm3381 = vcmp.eq.s32.totalorder %v311, %v3367
          %vm3382 = vcmp.eq.s32.totalorder %v312, %v3367
          %vm3383 = vcmp.eq.s32.totalorder %v313, %v3367
          %vm3384 = vcmp.eq.s32.totalorder %v314, %v3367
          %vm3385 = vcmp.eq.s32.totalorder %v315, %v3367
          %vm3386 = vcmp.eq.s32.totalorder %v316, %v3367
          %vm3387 = vcmp.eq.s32.totalorder %v317, %v3367
          %vm3388 = vcmp.eq.s32.totalorder %v318, %v3367
          %vm3389 = vcmp.eq.s32.totalorder %v319, %v3367
          %vm3390 = vcmp.eq.s32.totalorder %v320, %v3367
          %vm3391 = vcmp.eq.s32.totalorder %v321, %v3367
          %vm3392 = vcmp.eq.s32.totalorder %v322, %v3367
          %vm3393 = vcmp.eq.s32.totalorder %v323, %v3367
          %vm3394 = vcmp.eq.s32.totalorder %v324, %v3367
          %vm3395 = vcmp.eq.s32.totalorder %v325, %v3367
          %vm3396 = vcmp.eq.s32.totalorder %v326, %v3367
          %vm3397 = vcmp.eq.s32.totalorder %v327, %v3367
          %vm3398 = vcmp.eq.s32.totalorder %v328, %v3367
          %vm3399 = vcmp.eq.s32.totalorder %v329, %v3367
          %v3400 = vlaneseq
          %v3401 = vshrl.u32 %v3400, 7
          %v3402 = vsub.s32 5, %v3401
          %v3403 = vrot.slane %v376, %v3402
          %v3404 = vsel %vm3368, %v3403, 0.0
          %v3405 = vsel %vm3369, %v3403, 0.0
          %v3406 = vsel %vm3370, %v3403, 0.0
          %v3407 = vsel %vm3371, %v3403, 0.0
          %v3408 = vsel %vm3372, %v3403, 0.0
          %v3409 = vsel %vm3373, %v3403, 0.0
          %v3410 = vsel %vm3374, %v3403, 0.0
          %v3411 = vsel %vm3375, %v3403, 0.0
          %v3412 = vsel %vm3376, %v3403, 0.0
          %v3413 = vsel %vm3377, %v3403, 0.0
          %v3414 = vsel %vm3378, %v3403, 0.0
          %v3415 = vsel %vm3379, %v3403, 0.0
          %v3416 = vsel %vm3380, %v3403, 0.0
          %v3417 = vsel %vm3381, %v3403, 0.0
          %v3418 = vsel %vm3382, %v3403, 0.0
          %v3419 = vsel %vm3383, %v3403, 0.0
          %v3420 = vsel %vm3384, %v3403, 0.0
          %v3421 = vsel %vm3385, %v3403, 0.0
          %v3422 = vsel %vm3386, %v3403, 0.0
          %v3423 = vsel %vm3387, %v3403, 0.0
          %v3424 = vsel %vm3388, %v3403, 0.0
          %v3425 = vsel %vm3389, %v3403, 0.0
          %v3426 = vsel %vm3390, %v3403, 0.0
          %v3427 = vsel %vm3391, %v3403, 0.0
          %v3428 = vsel %vm3392, %v3403, 0.0
          %v3429 = vsel %vm3393, %v3403, 0.0
          %v3430 = vsel %vm3394, %v3403, 0.0
          %v3431 = vsel %vm3395, %v3403, 0.0
          %v3432 = vsel %vm3396, %v3403, 0.0
          %v3433 = vsel %vm3397, %v3403, 0.0
          %v3434 = vsel %vm3398, %v3403, 0.0
          %v3435 = vsel %vm3399, %v3403, 0.0
          %v3436 = vadd.f32 %v3332, %v3404
          %v3437 = vadd.f32 %v3333, %v3405
          %v3438 = vadd.f32 %v3334, %v3406
          %v3439 = vadd.f32 %v3335, %v3407
          %v3440 = vadd.f32 %v3336, %v3408
          %v3441 = vadd.f32 %v3337, %v3409
          %v3442 = vadd.f32 %v3338, %v3410
          %v3443 = vadd.f32 %v3339, %v3411
          %v3444 = vadd.f32 %v3340, %v3412
          %v3445 = vadd.f32 %v3341, %v3413
          %v3446 = vadd.f32 %v3342, %v3414
          %v3447 = vadd.f32 %v3343, %v3415
          %v3448 = vadd.f32 %v3344, %v3416
          %v3449 = vadd.f32 %v3345, %v3417
          %v3450 = vadd.f32 %v3346, %v3418
          %v3451 = vadd.f32 %v3347, %v3419
          %v3452 = vadd.f32 %v3348, %v3420
          %v3453 = vadd.f32 %v3349, %v3421
          %v3454 = vadd.f32 %v3350, %v3422
          %v3455 = vadd.f32 %v3351, %v3423
          %v3456 = vadd.f32 %v3352, %v3424
          %v3457 = vadd.f32 %v3353, %v3425
          %v3458 = vadd.f32 %v3354, %v3426
          %v3459 = vadd.f32 %v3355, %v3427
          %v3460 = vadd.f32 %v3356, %v3428
          %v3461 = vadd.f32 %v3357, %v3429
          %v3462 = vadd.f32 %v3358, %v3430
          %v3463 = vadd.f32 %v3359, %v3431
          %v3464 = vadd.f32 %v3360, %v3432
          %v3465 = vadd.f32 %v3361, %v3433
          %v3466 = vadd.f32 %v3362, %v3434
          %v3467 = vadd.f32 %v3363, %v3435
          %v3468 = vlaneseq
          %v3469 = vshrl.u32 %v3468, 7
          %v3470 = vsub.s32 7, %v3469
          %v3471 = vrot.slane %v554, %v3470
          %vm3472 = vcmp.eq.s32.totalorder %v298, %v3471
          %vm3473 = vcmp.eq.s32.totalorder %v299, %v3471
          %vm3474 = vcmp.eq.s32.totalorder %v300, %v3471
          %vm3475 = vcmp.eq.s32.totalorder %v301, %v3471
          %vm3476 = vcmp.eq.s32.totalorder %v302, %v3471
          %vm3477 = vcmp.eq.s32.totalorder %v303, %v3471
          %vm3478 = vcmp.eq.s32.totalorder %v304, %v3471
          %vm3479 = vcmp.eq.s32.totalorder %v305, %v3471
          %vm3480 = vcmp.eq.s32.totalorder %v306, %v3471
          %vm3481 = vcmp.eq.s32.totalorder %v307, %v3471
          %vm3482 = vcmp.eq.s32.totalorder %v308, %v3471
          %vm3483 = vcmp.eq.s32.totalorder %v309, %v3471
          %vm3484 = vcmp.eq.s32.totalorder %v310, %v3471
          %vm3485 = vcmp.eq.s32.totalorder %v311, %v3471
          %vm3486 = vcmp.eq.s32.totalorder %v312, %v3471
          %vm3487 = vcmp.eq.s32.totalorder %v313, %v3471
          %vm3488 = vcmp.eq.s32.totalorder %v314, %v3471
          %vm3489 = vcmp.eq.s32.totalorder %v315, %v3471
          %vm3490 = vcmp.eq.s32.totalorder %v316, %v3471
          %vm3491 = vcmp.eq.s32.totalorder %v317, %v3471
          %vm3492 = vcmp.eq.s32.totalorder %v318, %v3471
          %vm3493 = vcmp.eq.s32.totalorder %v319, %v3471
          %vm3494 = vcmp.eq.s32.totalorder %v320, %v3471
          %vm3495 = vcmp.eq.s32.totalorder %v321, %v3471
          %vm3496 = vcmp.eq.s32.totalorder %v322, %v3471
          %vm3497 = vcmp.eq.s32.totalorder %v323, %v3471
          %vm3498 = vcmp.eq.s32.totalorder %v324, %v3471
          %vm3499 = vcmp.eq.s32.totalorder %v325, %v3471
          %vm3500 = vcmp.eq.s32.totalorder %v326, %v3471
          %vm3501 = vcmp.eq.s32.totalorder %v327, %v3471
          %vm3502 = vcmp.eq.s32.totalorder %v328, %v3471
          %vm3503 = vcmp.eq.s32.totalorder %v329, %v3471
          %v3504 = vlaneseq
          %v3505 = vshrl.u32 %v3504, 7
          %v3506 = vsub.s32 6, %v3505
          %v3507 = vrot.slane %v376, %v3506
          %v3508 = vsel %vm3472, %v3507, 0.0
          %v3509 = vsel %vm3473, %v3507, 0.0
          %v3510 = vsel %vm3474, %v3507, 0.0
          %v3511 = vsel %vm3475, %v3507, 0.0
          %v3512 = vsel %vm3476, %v3507, 0.0
          %v3513 = vsel %vm3477, %v3507, 0.0
          %v3514 = vsel %vm3478, %v3507, 0.0
          %v3515 = vsel %vm3479, %v3507, 0.0
          %v3516 = vsel %vm3480, %v3507, 0.0
          %v3517 = vsel %vm3481, %v3507, 0.0
          %v3518 = vsel %vm3482, %v3507, 0.0
          %v3519 = vsel %vm3483, %v3507, 0.0
          %v3520 = vsel %vm3484, %v3507, 0.0
          %v3521 = vsel %vm3485, %v3507, 0.0
          %v3522 = vsel %vm3486, %v3507, 0.0
          %v3523 = vsel %vm3487, %v3507, 0.0
          %v3524 = vsel %vm3488, %v3507, 0.0
          %v3525 = vsel %vm3489, %v3507, 0.0
          %v3526 = vsel %vm3490, %v3507, 0.0
          %v3527 = vsel %vm3491, %v3507, 0.0
          %v3528 = vsel %vm3492, %v3507, 0.0
          %v3529 = vsel %vm3493, %v3507, 0.0
          %v3530 = vsel %vm3494, %v3507, 0.0
          %v3531 = vsel %vm3495, %v3507, 0.0
          %v3532 = vsel %vm3496, %v3507, 0.0
          %v3533 = vsel %vm3497, %v3507, 0.0
          %v3534 = vsel %vm3498, %v3507, 0.0
          %v3535 = vsel %vm3499, %v3507, 0.0
          %v3536 = vsel %vm3500, %v3507, 0.0
          %v3537 = vsel %vm3501, %v3507, 0.0
          %v3538 = vsel %vm3502, %v3507, 0.0
          %v3539 = vsel %vm3503, %v3507, 0.0
          %v3540 = vadd.f32 %v3436, %v3508
          %v3541 = vadd.f32 %v3437, %v3509
          %v3542 = vadd.f32 %v3438, %v3510
          %v3543 = vadd.f32 %v3439, %v3511
          %v3544 = vadd.f32 %v3440, %v3512
          %v3545 = vadd.f32 %v3441, %v3513
          %v3546 = vadd.f32 %v3442, %v3514
          %v3547 = vadd.f32 %v3443, %v3515
          %v3548 = vadd.f32 %v3444, %v3516
          %v3549 = vadd.f32 %v3445, %v3517
          %v3550 = vadd.f32 %v3446, %v3518
          %v3551 = vadd.f32 %v3447, %v3519
          %v3552 = vadd.f32 %v3448, %v3520
          %v3553 = vadd.f32 %v3449, %v3521
          %v3554 = vadd.f32 %v3450, %v3522
          %v3555 = vadd.f32 %v3451, %v3523
          %v3556 = vadd.f32 %v3452, %v3524
          %v3557 = vadd.f32 %v3453, %v3525
          %v3558 = vadd.f32 %v3454, %v3526
          %v3559 = vadd.f32 %v3455, %v3527
          %v3560 = vadd.f32 %v3456, %v3528
          %v3561 = vadd.f32 %v3457, %v3529
          %v3562 = vadd.f32 %v3458, %v3530
          %v3563 = vadd.f32 %v3459, %v3531
          %v3564 = vadd.f32 %v3460, %v3532
          %v3565 = vadd.f32 %v3461, %v3533
          %v3566 = vadd.f32 %v3462, %v3534
          %v3567 = vadd.f32 %v3463, %v3535
          %v3568 = vadd.f32 %v3464, %v3536
          %v3569 = vadd.f32 %v3465, %v3537
          %v3570 = vadd.f32 %v3466, %v3538
          %v3571 = vadd.f32 %v3467, %v3539
          %v3572 = vlaneseq
          %v3573 = vshrl.u32 %v3572, 7
          %v3574 = vsub.s32 7, %v3573
          %v3575 = vrot.slane %v659, %v3574
          %vm3576 = vcmp.eq.s32.totalorder %v298, %v3575
          %vm3577 = vcmp.eq.s32.totalorder %v299, %v3575
          %vm3578 = vcmp.eq.s32.totalorder %v300, %v3575
          %vm3579 = vcmp.eq.s32.totalorder %v301, %v3575
          %vm3580 = vcmp.eq.s32.totalorder %v302, %v3575
          %vm3581 = vcmp.eq.s32.totalorder %v303, %v3575
          %vm3582 = vcmp.eq.s32.totalorder %v304, %v3575
          %vm3583 = vcmp.eq.s32.totalorder %v305, %v3575
          %vm3584 = vcmp.eq.s32.totalorder %v306, %v3575
          %vm3585 = vcmp.eq.s32.totalorder %v307, %v3575
          %vm3586 = vcmp.eq.s32.totalorder %v308, %v3575
          %vm3587 = vcmp.eq.s32.totalorder %v309, %v3575
          %vm3588 = vcmp.eq.s32.totalorder %v310, %v3575
          %vm3589 = vcmp.eq.s32.totalorder %v311, %v3575
          %vm3590 = vcmp.eq.s32.totalorder %v312, %v3575
          %vm3591 = vcmp.eq.s32.totalorder %v313, %v3575
          %vm3592 = vcmp.eq.s32.totalorder %v314, %v3575
          %vm3593 = vcmp.eq.s32.totalorder %v315, %v3575
          %vm3594 = vcmp.eq.s32.totalorder %v316, %v3575
          %vm3595 = vcmp.eq.s32.totalorder %v317, %v3575
          %vm3596 = vcmp.eq.s32.totalorder %v318, %v3575
          %vm3597 = vcmp.eq.s32.totalorder %v319, %v3575
          %vm3598 = vcmp.eq.s32.totalorder %v320, %v3575
          %vm3599 = vcmp.eq.s32.totalorder %v321, %v3575
          %vm3600 = vcmp.eq.s32.totalorder %v322, %v3575
          %vm3601 = vcmp.eq.s32.totalorder %v323, %v3575
          %vm3602 = vcmp.eq.s32.totalorder %v324, %v3575
          %vm3603 = vcmp.eq.s32.totalorder %v325, %v3575
          %vm3604 = vcmp.eq.s32.totalorder %v326, %v3575
          %vm3605 = vcmp.eq.s32.totalorder %v327, %v3575
          %vm3606 = vcmp.eq.s32.totalorder %v328, %v3575
          %vm3607 = vcmp.eq.s32.totalorder %v329, %v3575
          %v3608 = vlaneseq
          %v3609 = vshrl.u32 %v3608, 7
          %v3610 = vsub.s32 7, %v3609
          %v3611 = vrot.slane %v376, %v3610
          %v3612 = vsel %vm3576, %v3611, 0.0
          %v3613 = vsel %vm3577, %v3611, 0.0
          %v3614 = vsel %vm3578, %v3611, 0.0
          %v3615 = vsel %vm3579, %v3611, 0.0
          %v3616 = vsel %vm3580, %v3611, 0.0
          %v3617 = vsel %vm3581, %v3611, 0.0
          %v3618 = vsel %vm3582, %v3611, 0.0
          %v3619 = vsel %vm3583, %v3611, 0.0
          %v3620 = vsel %vm3584, %v3611, 0.0
          %v3621 = vsel %vm3585, %v3611, 0.0
          %v3622 = vsel %vm3586, %v3611, 0.0
          %v3623 = vsel %vm3587, %v3611, 0.0
          %v3624 = vsel %vm3588, %v3611, 0.0
          %v3625 = vsel %vm3589, %v3611, 0.0
          %v3626 = vsel %vm3590, %v3611, 0.0
          %v3627 = vsel %vm3591, %v3611, 0.0
          %v3628 = vsel %vm3592, %v3611, 0.0
          %v3629 = vsel %vm3593, %v3611, 0.0
          %v3630 = vsel %vm3594, %v3611, 0.0
          %v3631 = vsel %vm3595, %v3611, 0.0
          %v3632 = vsel %vm3596, %v3611, 0.0
          %v3633 = vsel %vm3597, %v3611, 0.0
          %v3634 = vsel %vm3598, %v3611, 0.0
          %v3635 = vsel %vm3599, %v3611, 0.0
          %v3636 = vsel %vm3600, %v3611, 0.0
          %v3637 = vsel %vm3601, %v3611, 0.0
          %v3638 = vsel %vm3602, %v3611, 0.0
          %v3639 = vsel %vm3603, %v3611, 0.0
          %v3640 = vsel %vm3604, %v3611, 0.0
          %v3641 = vsel %vm3605, %v3611, 0.0
          %v3642 = vsel %vm3606, %v3611, 0.0
          %v3643 = vsel %vm3607, %v3611, 0.0
          %v3644 = vadd.f32 %v3540, %v3612
          %v3645 = vadd.f32 %v3541, %v3613
          %v3646 = vadd.f32 %v3542, %v3614
          %v3647 = vadd.f32 %v3543, %v3615
          %v3648 = vadd.f32 %v3544, %v3616
          %v3649 = vadd.f32 %v3545, %v3617
          %v3650 = vadd.f32 %v3546, %v3618
          %v3651 = vadd.f32 %v3547, %v3619
          %v3652 = vadd.f32 %v3548, %v3620
          %v3653 = vadd.f32 %v3549, %v3621
          %v3654 = vadd.f32 %v3550, %v3622
          %v3655 = vadd.f32 %v3551, %v3623
          %v3656 = vadd.f32 %v3552, %v3624
          %v3657 = vadd.f32 %v3553, %v3625
          %v3658 = vadd.f32 %v3554, %v3626
          %v3659 = vadd.f32 %v3555, %v3627
          %v3660 = vadd.f32 %v3556, %v3628
          %v3661 = vadd.f32 %v3557, %v3629
          %v3662 = vadd.f32 %v3558, %v3630
          %v3663 = vadd.f32 %v3559, %v3631
          %v3664 = vadd.f32 %v3560, %v3632
          %v3665 = vadd.f32 %v3561, %v3633
          %v3666 = vadd.f32 %v3562, %v3634
          %v3667 = vadd.f32 %v3563, %v3635
          %v3668 = vadd.f32 %v3564, %v3636
          %v3669 = vadd.f32 %v3565, %v3637
          %v3670 = vadd.f32 %v3566, %v3638
          %v3671 = vadd.f32 %v3567, %v3639
          %v3672 = vadd.f32 %v3568, %v3640
          %v3673 = vadd.f32 %v3569, %v3641
          %v3674 = vadd.f32 %v3570, %v3642
          %v3675 = vadd.f32 %v3571, %v3643
          %v3676 = vadd.f32 %v3260, %v3644
          %v3677 = vadd.f32 %v3261, %v3645
          %v3678 = vadd.f32 %v3262, %v3646
          %v3679 = vadd.f32 %v3263, %v3647
          %v3680 = vadd.f32 %v3264, %v3648
          %v3681 = vadd.f32 %v3265, %v3649
          %v3682 = vadd.f32 %v3266, %v3650
          %v3683 = vadd.f32 %v3267, %v3651
          %v3684 = vadd.f32 %v3268, %v3652
          %v3685 = vadd.f32 %v3269, %v3653
          %v3686 = vadd.f32 %v3270, %v3654
          %v3687 = vadd.f32 %v3271, %v3655
          %v3688 = vadd.f32 %v3272, %v3656
          %v3689 = vadd.f32 %v3273, %v3657
          %v3690 = vadd.f32 %v3274, %v3658
          %v3691 = vadd.f32 %v3275, %v3659
          %v3692 = vadd.f32 %v3276, %v3660
          %v3693 = vadd.f32 %v3277, %v3661
          %v3694 = vadd.f32 %v3278, %v3662
          %v3695 = vadd.f32 %v3279, %v3663
          %v3696 = vadd.f32 %v3280, %v3664
          %v3697 = vadd.f32 %v3281, %v3665
          %v3698 = vadd.f32 %v3282, %v3666
          %v3699 = vadd.f32 %v3283, %v3667
          %v3700 = vadd.f32 %v3284, %v3668
          %v3701 = vadd.f32 %v3285, %v3669
          %v3702 = vadd.f32 %v3286, %v3670
          %v3703 = vadd.f32 %v3287, %v3671
          %v3704 = vadd.f32 %v3288, %v3672
          %v3705 = vadd.f32 %v3289, %v3673
          %v3706 = vadd.f32 %v3290, %v3674
          %v3707 = vadd.f32 %v3291, %v3675
        $region49: #{tpu_custom_call.1} parent=31 // loop_footer
          %s335 = sadd.s32 1, %s331
        $region50: #{tpu_custom_call.1} parent=31 // loop_footer_branch
          %330 = sbr.rel target = $region46
        $region51: #{tpu_custom_call.1} parent=31 // loop_exit
          _
        %v3708 = vld [vmem:[#allocation7] sm:$0xff]
        %v3709 = vpack.c.bf16 %v337, %v336
        %v3710 = vpack.c.bf16 %v339, %v338
        %v3711 = vpack.c.bf16 %v341, %v340
        %v3712 = vpack.c.bf16 %v343, %v342
        %v3713 = vpack.c.bf16 %v345, %v344
        %v3714 = vpack.c.bf16 %v347, %v346
        %v3715 = vpack.c.bf16 %v349, %v348
        %v3716 = vpack.c.bf16 %v351, %v350
        %v3717 = vpack.c.bf16 %v353, %v352
        %v3718 = vpack.c.bf16 %v355, %v354
        %v3719 = vpack.c.bf16 %v357, %v356
        %v3720 = vpack.c.bf16 %v359, %v358
        %v3721 = vpack.c.bf16 %v361, %v360
        %v3722 = vpack.c.bf16 %v363, %v362
        %v3723 = vpack.c.bf16 %v365, %v364
        %v3724 = vpack.c.bf16 %v367, %v366
        %v3726 = vunpack.c.l.b16 %v3708
        %v3727 = vunpack.c.h.b16 %v3708
        %v3728 = vpack.c.b16 %v3726, %v3726
        %v3729 = vpack.c.b16 %v3727, %v3727
        %3732 = vmatprep.subr.bf16.mxu0 0
        %3733 = vmatpush1.bf16.msra.mxu0 %v3716
        %3734 = vmatprep.subr.bf16.mxu0 0
        %3735 = vmatpush1.bf16.msra.mxu0 %v3715
        %3736 = vmatprep.subr.bf16.mxu0 0
        %3737 = vmatpush1.bf16.msra.mxu0 %v3714
        %3738 = vmatprep.subr.bf16.mxu0 0
        %3739 = vmatpush1.bf16.msra.mxu0 %v3713
        %3740 = vmatprep.subr.bf16.mxu0 0
        %3741 = vmatpush1.bf16.msra.mxu0 %v3712
        %3742 = vmatprep.subr.bf16.mxu0 0
        %3743 = vmatpush1.bf16.msra.mxu0 %v3711
        %3744 = vmatprep.subr.bf16.mxu0 0
        %3745 = vmatpush1.bf16.msra.mxu0 %v3710
        %3746 = vmatprep.subr.bf16.mxu0 0
        %3747 = vmatpush1.bf16.msra.mxu0 %v3709
        %3748 = vmatprep.subr.bf16.mxu0 0
        %3749 = vmatpush2.bf16.msra.mxu0 %v3724
        %3750 = vmatprep.subr.bf16.mxu0 0
        %3751 = vmatpush2.bf16.msra.mxu0 %v3723
        %3752 = vmatprep.subr.bf16.mxu0 0
        %3753 = vmatpush2.bf16.msra.mxu0 %v3722
        %3754 = vmatprep.subr.bf16.mxu0 0
        %3755 = vmatpush2.bf16.msra.mxu0 %v3721
        %3756 = vmatprep.subr.bf16.mxu0 0
        %3757 = vmatpush2.bf16.msra.mxu0 %v3720
        %3758 = vmatprep.subr.bf16.mxu0 0
        %3759 = vmatpush2.bf16.msra.mxu0 %v3719
        %3760 = vmatprep.subr.bf16.mxu0 0
        %3761 = vmatpush2.bf16.msra.mxu0 %v3718
        %3762 = vmatprep.subr.bf16.mxu0 0
        %3763 = vmatpush2.bf16.msra.mxu0 %v3717
        %3764 = vmatprep.mubr.bf16.mxu0 %v3729
        %3765 = vmatmul.mubr.bf16.gmra.mxu0 %v3728
        %v3766 = vpop.f32.mrf.mxu0
        %v3767 = vadd.f32 0.0, %v3766
        %v3768 = vpop.f32.mrf.mxu0
        %v3769 = vpop.f32.mrf.mxu0
        %v3770 = vpop.f32.mrf.mxu0
        %3771 = vdwg.mxu0
        %p3772 = scmp.eq.s32.totalorder %s28, 0
        // Predicated region
        $region52: #{tpu_custom_call.1} parent=31 // pred_check
          %p3773 = pneg %p3772
        $region53: #{tpu_custom_call.1} parent=31 // pred_check_branch
          %3775 = sbr.rel (%p3773) target = $region55
        $region54: #{tpu_custom_call.1} parent=31 // pred_region
          %3776 = vst [vmem:[%s260] sm:$0xff] %v3767
        $region55: #{tpu_custom_call.1} parent=31 // pred_fallthru
          _
        %p3777 = scmp.gt.s32.totalorder %s28, 0
        // Predicated region
        $region56: #{tpu_custom_call.1} parent=31 // pred_check
          %p3778 = pneg %p3777
        $region57: #{tpu_custom_call.1} parent=31 // pred_check_branch
          %3780 = sbr.rel (%p3778) target = $region59
        $region58: #{tpu_custom_call.1} parent=31 // pred_region
          %v3781 = vld [vmem:[%s260] sm:$0xff]
          %v3782 = vadd.f32 %v3781, %v3767
          %3783 = vst [vmem:[%s260] sm:$0xff] %v3782
        $region59: #{tpu_custom_call.1} parent=31 // pred_fallthru
          _
        %s3784 = sand.u32 %s121, 1
        %s3785 = scalar_lea.sflag [#allocation4], %s3784
        %s3786 = sand.u32 %s121, 1
        %s3787 = smul.addr %s3786, 8
        %s3788 = scalar_lea.vmem [#allocation8], %s3787
        // Predicated region
        $region60: #{tpu_custom_call.1} parent=31 // pred_check
          %p3789 = pneg %p131
        $region61: #{tpu_custom_call.1} parent=31 // pred_check_branch
          %3791 = sbr.rel (%p3789) target = $region63
        $region62: #{tpu_custom_call.1} parent=31 // pred_region
          %s3793 = ssub.s32 128, 128
          %3794 = vsyncadd %s3785, %s3793
          %s3795 = smul.addr %s27, 128
          %s3796 = scalar_lea.hbm %s3, %s3795
          %s3798 = sshll.u32 %s3788, 4
          %s3799 = int_to_ptr.vmem [resolvable:$true] %s3798
          %3801 = dma.vmem_to_hbm [thread:$0]  %s3799, 128, %s3796, %s3785
        $region63: #{tpu_custom_call.1} parent=31 // pred_fallthru
          _
      $region32: #{tpu_custom_call.1} parent=5 // pred_fallthru
        _
      %p3802 = scmp.le.s32.totalorder 2, %s18
      // Predicated region
      $region64: #{tpu_custom_call.1} parent=5 // pred_check
        %p3803 = pneg %p3802
      $region65: #{tpu_custom_call.1} parent=5 // pred_check_branch
        %3805 = sbr.rel (%p3803) target = $region67
      $region66: #{tpu_custom_call.1} parent=5 // pred_region
        %s3806 = ssub.s32 %s18, 2
        // Predicated region
        $region68: #{tpu_custom_call.1} parent=66 // pred_check
          %p3807 = pneg %p137
        $region69: #{tpu_custom_call.1} parent=66 // pred_check_branch
          %3809 = sbr.rel (%p3807) target = $region71
        $region70: #{tpu_custom_call.1} parent=66 // pred_region
          %s3810 = sand.u32 %s122, 1
          %s3811 = scalar_lea.sflag [#allocation4], %s3810
          %s3812 = sand.u32 %s122, 1
          %s3813 = smul.addr %s3812, 8
          %s3814 = scalar_lea.vmem [#allocation8], %s3813
          %3815 = dma.done %s3811, 128
        $region71: #{tpu_custom_call.1} parent=66 // pred_fallthru
          _
      $region67: #{tpu_custom_call.1} parent=5 // pred_fallthru
        _
    $region6: #{tpu_custom_call.1} parent=1 // loop_footer
      %s22 = sadd.s32 1, %s18
    $region7: #{tpu_custom_call.1} parent=1 // loop_footer_branch
      %17 = sbr.rel target = $region3
    $region8: #{tpu_custom_call.1} parent=1 // loop_exit
      _
    %3816 = vsyncpa [#allocation3], 1
    %s3817 = scalar_lea.sflag [#allocation3], 1
    %3818 = vsyncpa %s3817, 1
    %3819 = vsyncpa [#allocation6], 1
    %s3820 = scalar_lea.sflag [#allocation6], 1
    %3821 = vsyncpa %s3820, 1
    %3822 = vsyncpa [#allocation4], 1
    %s3823 = scalar_lea.sflag [#allocation4], 1
    %3824 = vsyncpa %s3823, 1

</llo_original>
